<compile_context>
chip_gen: v5e
topology: v5e:2x2
jax: 0.10.0
libtpu: 0.0.40
codegen_flags: <defaults>
</compile_context>

<pallas_src>
import functools
import math

import jax
import jax.numpy as jnp
from jax import lax
from jax.experimental import pallas as pl
from jax.experimental.pallas import tpu as pltpu


# ----------------------------- Pallas kernel -----------------------------
def _keypoint_transformer_kernel(
    x_ref, pe_ref,                     # (T, D) input slice, (T, H) pos. enc.
    w_in_ref, b_in_ref,                # input_proj                (D, H), (1, H)
    wqkv_ref, bqkv_ref,                # per-layer QKV (head-batched) (3NH,H,HD)/(3NH,1,HD)
    wo_ref, bo_ref,                    # per-layer attn out proj   (NH,HD,H)/(1,H)
    ln1_g_ref, ln1_b_ref,              # per-layer norm1           (1, H)
    w1_ref, b1_ref,                    # per-layer FFN linear1     (H, FF)/(1, FF)
    w2_ref, b2_ref,                    # per-layer FFN linear2     (FF, H)/(1, H)
    ln2_g_ref, ln2_b_ref,              # per-layer norm2           (1, H)
    w_out_ref, b_out_ref,              # output_proj               (H, D)/(1, D)
    out_ref,                           # (1, D) output slice for this batch elem
    h_ref,                             # VMEM scratch: residual stream (T, H) f32
    *, num_heads,
):
    T, H = h_ref.shape
    NH = num_heads
    HD = H // NH
    l = pl.program_id(1)
    eps = 1e-5                         # PyTorch LayerNorm default
    inv_h = 1.0 / H                    # host-folded constant

    # ---- layer 0: input projection + positional encoding ----
    @pl.when(l == 0)
    def _():
        h0 = jnp.dot(x_ref[...], w_in_ref[...],
                     preferred_element_type=jnp.float32) + b_in_ref[...]
        h_ref[...] = h0 + pe_ref[...]

    def layer_norm(v, g, b):
        # single-pass: both reductions are independent (issued in parallel)
        s1 = jnp.sum(v, axis=-1, keepdims=True)
        s2 = jnp.sum(v * v, axis=-1, keepdims=True)
        mu = s1 * inv_h
        var = s2 * inv_h - mu * mu
        return (v - mu) * lax.rsqrt(var + eps) * g + b

    h = h_ref[...]                                        # (T, H) f32
    h_lp = h.astype(wqkv_ref.dtype)                       # bf16 for the MXU

    # ---- multi-head self-attention (head-batched, no lane slicing) ----
    # QKV projection: leading-batch batched matmul over (which, head) pairs.
    hb = jnp.broadcast_to(h_lp[None], (3 * NH, T, H))
    qkv = jnp.einsum('nth,nhd->ntd', hb, wqkv_ref[...],
                     preferred_element_type=jnp.float32) + bqkv_ref[...]
    q = qkv[0:NH]                                         # (NH, T, HD) scale pre-folded
    k = qkv[NH:2 * NH]
    v = qkv[2 * NH:3 * NH]

    s = jnp.einsum('hqd,hkd->hqk', q, k,
                   preferred_element_type=jnp.float32)    # (NH, T, T)
    s = s - jnp.max(s, axis=-1, keepdims=True)
    p = jnp.exp(s)
    p = p * pl.reciprocal(jnp.sum(p, axis=-1, keepdims=True), approx=True)
    ctx = jnp.einsum('hqk,hkd->hqd', p, v,
                     preferred_element_type=jnp.float32)  # (NH, T, HD)

    # out-projection merged per head, head merge = cheap leading-dim sum
    attn = jnp.sum(
        jnp.einsum('htd,hdj->htj', ctx.astype(wo_ref.dtype), wo_ref[...],
                   preferred_element_type=jnp.float32),
        axis=0) + bo_ref[...]                             # (T, H)

    h = layer_norm(h + attn, ln1_g_ref[...], ln1_b_ref[...])

    # ---- feed-forward (ReLU), lane-dense on FF dim ----
    ff = jnp.dot(h.astype(w1_ref.dtype), w1_ref[...],
                 preferred_element_type=jnp.float32) + b1_ref[...]
    ff = jnp.maximum(ff, 0.0)
    ff = jnp.dot(ff.astype(w2_ref.dtype), w2_ref[...],
                 preferred_element_type=jnp.float32) + b2_ref[...]
    h = layer_norm(h + ff, ln2_g_ref[...], ln2_b_ref[...])

    h_ref[...] = h

    # ---- last layer: take final time step, project to input_dim ----
    @pl.when(l == pl.num_programs(1) - 1)
    def _():
        last = h[T - 1:T, :]                              # (1, H)
        out_ref[...] = (jnp.dot(last, w_out_ref[...],
                                preferred_element_type=jnp.float32)
                        + b_out_ref[...])


# ----------------------------- wrapper -----------------------------
def make_positional_encoding(d_model, max_len=500):
    """Same table as the PyTorch PositionalEncoding module."""
    position = jnp.arange(max_len, dtype=jnp.float32)[:, None]
    div_term = jnp.exp(jnp.arange(0, d_model, 2, dtype=jnp.float32)
                       * (-math.log(10000.0) / d_model))
    ang = position * div_term
    pe = jnp.zeros((max_len, d_model), jnp.float32)
    pe = pe.at[:, 0::2].set(jnp.sin(ang))
    pe = pe.at[:, 1::2].set(jnp.cos(ang))
    return pe


def keypoint_transformer_forward(x, pe_table, params, *, num_heads):
    """x: (B, T, input_dim) float32. Returns (B, input_dim)."""
    B, T, D = x.shape
    H = params["w_in"].shape[1]
    L = params["wqkv_h"].shape[0]
    FF = params["w1"].shape[2]
    NH = num_heads
    HD = H // NH
    pe = pe_table[:T]                                     # (T, H)

    in_specs = [
        pl.BlockSpec((None, T, D), lambda b, l: (b, 0, 0)),            # x
        pl.BlockSpec((T, H), lambda b, l: (0, 0)),                     # pe
        pl.BlockSpec((D, H), lambda b, l: (0, 0)),                     # w_in
        pl.BlockSpec((1, H), lambda b, l: (0, 0)),                     # b_in
        pl.BlockSpec((None, 3 * NH, H, HD), lambda b, l: (l, 0, 0, 0)),  # wqkv_h
        pl.BlockSpec((None, 3 * NH, 1, HD), lambda b, l: (l, 0, 0, 0)),  # bqkv_h
        pl.BlockSpec((None, NH, HD, H), lambda b, l: (l, 0, 0, 0)),    # wo_h
        pl.BlockSpec((None, 1, H), lambda b, l: (l, 0, 0)),            # bo
        pl.BlockSpec((None, 1, H), lambda b, l: (l, 0, 0)),            # ln1_g
        pl.BlockSpec((None, 1, H), lambda b, l: (l, 0, 0)),            # ln1_b
        pl.BlockSpec((None, H, FF), lambda b, l: (l, 0, 0)),           # w1
        pl.BlockSpec((None, 1, FF), lambda b, l: (l, 0, 0)),           # b1
        pl.BlockSpec((None, FF, H), lambda b, l: (l, 0, 0)),           # w2
        pl.BlockSpec((None, 1, H), lambda b, l: (l, 0, 0)),            # b2
        pl.BlockSpec((None, 1, H), lambda b, l: (l, 0, 0)),            # ln2_g
        pl.BlockSpec((None, 1, H), lambda b, l: (l, 0, 0)),            # ln2_b
        pl.BlockSpec((H, D), lambda b, l: (0, 0)),                     # w_out
        pl.BlockSpec((1, D), lambda b, l: (0, 0)),                     # b_out
    ]
    out_specs = pl.BlockSpec((None, 1, D), lambda b, l: (b, 0, 0))

    out = pl.pallas_call(
        functools.partial(_keypoint_transformer_kernel, num_heads=num_heads),
        out_shape=jax.ShapeDtypeStruct((B, 1, D), jnp.float32),
        grid_spec=pltpu.PrefetchScalarGridSpec(
            num_scalar_prefetch=0,
            grid=(B, L),
            in_specs=in_specs,
            out_specs=out_specs,
            scratch_shapes=[pltpu.VMEM((T, H), jnp.float32)]),
        compiler_params=pltpu.CompilerParams(
            dimension_semantics=("parallel", "arbitrary")),
    )(x, pe,
      params["w_in"], params["b_in"],
      params["wqkv_h"], params["bqkv_h"],
      params["wo_h"], params["bo"],
      params["ln1_g"], params["ln1_b"],
      params["w1"], params["b1"],
      params["w2"], params["b2"],
      params["ln2_g"], params["ln2_b"],
      params["w_out"], params["b_out"])
    return out.reshape(B, D)


# ----------------------------- parameters -----------------------------
def init_params(key, input_dim, hidden_dim, ff_dim, num_layers):
    """Deterministic init mirroring PyTorch shapes; matmul weights stored
    pre-transposed so the kernel computes activ @ W (lane-dense)."""
    def uni(k, shape, fan_in):
        s = 1.0 / math.sqrt(fan_in)
        return jax.random.uniform(k, shape, jnp.float32, -s, s)

    H, L = hidden_dim, num_layers
    ks = iter(jax.random.split(key, 12))
    return {
        "w_in": uni(next(ks), (input_dim, H), input_dim),
        "b_in": uni(next(ks), (1, H), input_dim),
        # fused in_proj (QKV) stored (L, H, 3H); out_proj stored (L, H, H)
        "wqkv": uni(next(ks), (L, H, 3 * H), H),
        "bqkv": uni(next(ks), (L, 1, 3 * H), H),
        "wo":   uni(next(ks), (L, H, H), H),
        "bo":   uni(next(ks), (L, 1, H), H),
        "ln1_g": jnp.ones((L, 1, H), jnp.float32),
        "ln1_b": jnp.zeros((L, 1, H), jnp.float32),
        "ln2_g": jnp.ones((L, 1, H), jnp.float32),
        "ln2_b": jnp.zeros((L, 1, H), jnp.float32),
        "w1": uni(next(ks), (L, H, ff_dim), H),
        "b1": uni(next(ks), (L, 1, ff_dim), H),
        "w2": uni(next(ks), (L, ff_dim, H), ff_dim),
        "b2": uni(next(ks), (L, 1, H), ff_dim),
        "w_out": uni(next(ks), (H, input_dim), H),
        "b_out": uni(next(ks), (1, input_dim), H),
    }


def prepare_params(params, *, num_heads, weight_dtype=jnp.bfloat16):
    """One-time host transform (NOT per-call input prescaling):
       * head-batched attention weight layout (zero in-kernel relayouts),
       * 1/sqrt(head_dim) folded into Q projection weight + bias,
       * large matrices cast to bf16 (halves HBM->VMEM weight DMA)."""
    p = dict(params)
    L, H, _ = p["wqkv"].shape
    NH = num_heads
    HD = H // NH
    scale = 1.0 / math.sqrt(HD)

    # (L, H, 3H) -> (L, 3*NH, H, HD), n = which*NH + head (which in {Q,K,V})
    wqkv_h = (p.pop("wqkv").reshape(L, H, 3, NH, HD)
              .transpose(0, 2, 3, 1, 4).reshape(L, 3 * NH, H, HD))
    bqkv_h = p.pop("bqkv").reshape(L, 3 * NH, 1, HD)
    wqkv_h = wqkv_h.at[:, :NH].multiply(scale)    # fold softmax scale into Q
    bqkv_h = bqkv_h.at[:, :NH].multiply(scale)
    wo_h = p.pop("wo").reshape(L, NH, HD, H)      # (L, NH, HD, H)

    p["wqkv_h"] = wqkv_h.astype(weight_dtype)
    p["bqkv_h"] = bqkv_h                           # biases stay f32
    p["wo_h"] = wo_h.astype(weight_dtype)
    p["w1"] = p["w1"].astype(weight_dtype)
    p["w2"] = p["w2"].astype(weight_dtype)
    return p


# ----------------------------- main -----------------------------
if __name__ == "__main__":
    B, T = 2, 8
    INPUT_DIM, HIDDEN_DIM, NUM_HEADS, NUM_LAYERS = 4, 32, 4, 2
    FF_DIM = 2048   # nn.TransformerEncoderLayer default dim_feedforward

    root = jax.random.PRNGKey(0)
    k_x, k_p = jax.random.split(root)

    x = jax.random.normal(k_x, (B, T, INPUT_DIM), jnp.float32)
    raw_params = init_params(k_p, INPUT_DIM, HIDDEN_DIM, FF_DIM, NUM_LAYERS)
    params = prepare_params(raw_params, num_heads=NUM_HEADS)
    pe_table = make_positional_encoding(HIDDEN_DIM, max_len=500)

    # TODO(synk): src_key_padding_mask path (mask is not None) is not implemented;
    # this kernel covers the mask=None forward. Dropout is identity (eval mode).
    out = keypoint_transformer_forward(x, pe_table, params, num_heads=NUM_HEADS)
    jax.block_until_ready(out)

    assert out.shape == (B, INPUT_DIM)
    assert bool(jnp.all(jnp.isfinite(out)))
    print("KERNEL_OK")
</pallas_src>

<mosaic_0001>
module attributes {stable_mosaic.version = 11 : i64} {
  func.func @_keypoint_transformer_kernel(%arg0: i32, %arg1: i32, %arg2: memref<1x8x4xf32, #tpu.memory_space<vmem>>, %arg3: memref<8x32xf32, #tpu.memory_space<vmem>>, %arg4: memref<4x32xf32, #tpu.memory_space<vmem>>, %arg5: memref<1x32xf32, #tpu.memory_space<vmem>>, %arg6: memref<1x12x32x8xbf16, #tpu.memory_space<vmem>>, %arg7: memref<1x12x1x8xf32, #tpu.memory_space<vmem>>, %arg8: memref<1x4x8x32xbf16, #tpu.memory_space<vmem>>, %arg9: memref<1x1x32xf32, #tpu.memory_space<vmem>>, %arg10: memref<1x1x32xf32, #tpu.memory_space<vmem>>, %arg11: memref<1x1x32xf32, #tpu.memory_space<vmem>>, %arg12: memref<1x32x2048xbf16, #tpu.memory_space<vmem>>, %arg13: memref<1x1x2048xf32, #tpu.memory_space<vmem>>, %arg14: memref<1x2048x32xbf16, #tpu.memory_space<vmem>>, %arg15: memref<1x1x32xf32, #tpu.memory_space<vmem>>, %arg16: memref<1x1x32xf32, #tpu.memory_space<vmem>>, %arg17: memref<1x1x32xf32, #tpu.memory_space<vmem>>, %arg18: memref<32x4xf32, #tpu.memory_space<vmem>>, %arg19: memref<1x4xf32, #tpu.memory_space<vmem>>, %arg20: memref<1x1x4xf32, #tpu.memory_space<vmem>>, %arg21: memref<8x32xf32, #tpu.memory_space<vmem>>) attributes {dimension_semantics = [#tpu.dimension_semantics<parallel>, #tpu.dimension_semantics<arbitrary>], iteration_bounds = array<i64: 2, 2>, scalar_prefetch = 0 : i64, scratch_operands = 1 : i64, tpu.core_type = #tpu.core_type<tc>, window_params = [{transform_indices = @transform_0, window_bounds = array<i64: 1, 8, 4>}, {pipeline_mode = #tpu.pipeline_mode<synchronous>, transform_indices = @transform_1, window_bounds = array<i64: 8, 32>}, {pipeline_mode = #tpu.pipeline_mode<synchronous>, transform_indices = @transform_2, window_bounds = array<i64: 4, 32>}, {pipeline_mode = #tpu.pipeline_mode<synchronous>, transform_indices = @transform_3, window_bounds = array<i64: 1, 32>}, {transform_indices = @transform_4, window_bounds = array<i64: 1, 12, 32, 8>}, {transform_indices = @transform_5, window_bounds = array<i64: 1, 12, 1, 8>}, {transform_indices = @transform_6, window_bounds = array<i64: 1, 4, 8, 32>}, {transform_indices = @transform_7, window_bounds = array<i64: 1, 1, 32>}, {transform_indices = @transform_8, window_bounds = array<i64: 1, 1, 32>}, {transform_indices = @transform_9, window_bounds = array<i64: 1, 1, 32>}, {transform_indices = @transform_10, window_bounds = array<i64: 1, 32, 2048>}, {transform_indices = @transform_11, window_bounds = array<i64: 1, 1, 2048>}, {transform_indices = @transform_12, window_bounds = array<i64: 1, 2048, 32>}, {transform_indices = @transform_13, window_bounds = array<i64: 1, 1, 32>}, {transform_indices = @transform_14, window_bounds = array<i64: 1, 1, 32>}, {transform_indices = @transform_15, window_bounds = array<i64: 1, 1, 32>}, {pipeline_mode = #tpu.pipeline_mode<synchronous>, transform_indices = @transform_16, window_bounds = array<i64: 32, 4>}, {pipeline_mode = #tpu.pipeline_mode<synchronous>, transform_indices = @transform_17, window_bounds = array<i64: 1, 4>}, {transform_indices = @transform_18, window_bounds = array<i64: 1, 1, 4>}]} {
    %c0_i32 = arith.constant 0 : i32
    %0 = arith.cmpi eq, %arg1, %c0_i32 : i32
    %1 = arith.extui %0 : i1 to i32
    %c0_i32_0 = arith.constant 0 : i32
    %2 = arith.cmpi ne, %1, %c0_i32_0 : i32
    scf.if %2 {
      %c0_63 = arith.constant 0 : index
      %c0_64 = arith.constant 0 : index
      %c0_65 = arith.constant 0 : index
      %115 = vector.load %arg2[%c0_63, %c0_64, %c0_65] : memref<1x8x4xf32, #tpu.memory_space<vmem>>, vector<1x8x4xf32>
      %116 = vector.shape_cast %115 : vector<1x8x4xf32> to vector<8x4xf32>
      %c0_66 = arith.constant 0 : index
      %c0_67 = arith.constant 0 : index
      %117 = vector.load %arg4[%c0_66, %c0_67] : memref<4x32xf32, #tpu.memory_space<vmem>>, vector<4x32xf32>
      %cst_68 = arith.constant dense<0.000000e+00> : vector<8x32xf32>
      %118 = tpu.matmul %116, %117, %cst_68 {dimension_numbers = #tpu.dot_dimension_numbers<[1], [0], [0], [1], [0, 0, 1, 1], [], []>} : vector<8x4xf32>, vector<4x32xf32>, vector<8x32xf32> -> vector<8x32xf32>
      %c0_69 = arith.constant 0 : index
      %c0_70 = arith.constant 0 : index
      %119 = vector.load %arg5[%c0_69, %c0_70] : memref<1x32xf32, #tpu.memory_space<vmem>>, vector<1x32xf32>
      %120 = vector.broadcast %119 : vector<1x32xf32> to vector<8x32xf32>
      %121 = arith.addf %118, %120 : vector<8x32xf32>
      %c0_71 = arith.constant 0 : index
      %c0_72 = arith.constant 0 : index
      %122 = vector.load %arg3[%c0_71, %c0_72] : memref<8x32xf32, #tpu.memory_space<vmem>>, vector<8x32xf32>
      %123 = arith.addf %121, %122 : vector<8x32xf32>
      %c0_73 = arith.constant 0 : index
      %c0_74 = arith.constant 0 : index
      %124 = vector.load %arg21[%c0_73, %c0_74] : memref<8x32xf32, #tpu.memory_space<vmem>>, vector<8x32xf32>
      tpu.vector_store %arg21[%c0_73, %c0_74], %123 {strides = array<i32>} : memref<8x32xf32, #tpu.memory_space<vmem>>, vector<8x32xf32>,
    } else {
    }
    %c0 = arith.constant 0 : index
    %c0_1 = arith.constant 0 : index
    %3 = vector.load %arg21[%c0, %c0_1] : memref<8x32xf32, #tpu.memory_space<vmem>>, vector<8x32xf32>
    %4 = arith.truncf %3 : vector<8x32xf32> to vector<8x32xbf16>
    %5 = vector.shape_cast %4 : vector<8x32xbf16> to vector<1x8x32xbf16>
    %6 = vector.shape_cast %5 : vector<1x8x32xbf16> to vector<1x8x32xbf16>
    %7 = vector.broadcast %6 : vector<1x8x32xbf16> to vector<12x8x32xbf16>
    %c0_2 = arith.constant 0 : index
    %c0_3 = arith.constant 0 : index
    %c0_4 = arith.constant 0 : index
    %c0_5 = arith.constant 0 : index
    %8 = vector.load %arg6[%c0_2, %c0_3, %c0_4, %c0_5] : memref<1x12x32x8xbf16, #tpu.memory_space<vmem>>, vector<1x12x32x8xbf16>
    %9 = vector.shape_cast %8 : vector<1x12x32x8xbf16> to vector<12x32x8xbf16>
    "tpu.trace_start"() <{level = 10 : i32, message = "nth,nhd->ntd"}> : () -> ()
    %cst = arith.constant dense<0.000000e+00> : vector<12x8x8xf32>
    %10 = tpu.matmul %7, %9, %cst {dimension_numbers = #tpu.dot_dimension_numbers<[2], [1], [1], [2], [0, 0, 0, 1, 1, 2], [0], [0]>} : vector<12x8x32xbf16>, vector<12x32x8xbf16>, vector<12x8x8xf32> -> vector<12x8x8xf32>
    "tpu.trace_stop"() : () -> ()
    %c0_6 = arith.constant 0 : index
    %c0_7 = arith.constant 0 : index
    %c0_8 = arith.constant 0 : index
    %c0_9 = arith.constant 0 : index
    %11 = vector.load %arg7[%c0_6, %c0_7, %c0_8, %c0_9] : memref<1x12x1x8xf32, #tpu.memory_space<vmem>>, vector<1x12x1x8xf32>
    %12 = vector.shape_cast %11 : vector<1x12x1x8xf32> to vector<12x1x8xf32>
    %13 = vector.broadcast %12 : vector<12x1x8xf32> to vector<12x8x8xf32>
    %14 = arith.addf %10, %13 : vector<12x8x8xf32>
    %15 = vector.extract_strided_slice %14 {offsets = [0, 0, 0], sizes = [4, 8, 8], strides = [1, 1, 1]} : vector<12x8x8xf32> to vector<4x8x8xf32>
    %16 = vector.extract_strided_slice %14 {offsets = [4, 0, 0], sizes = [4, 8, 8], strides = [1, 1, 1]} : vector<12x8x8xf32> to vector<4x8x8xf32>
    %17 = vector.extract_strided_slice %14 {offsets = [8, 0, 0], sizes = [4, 8, 8], strides = [1, 1, 1]} : vector<12x8x8xf32> to vector<4x8x8xf32>
    "tpu.trace_start"() <{level = 10 : i32, message = "hqd,hkd->hqk"}> : () -> ()
    %cst_10 = arith.constant dense<0.000000e+00> : vector<4x8x8xf32>
    %18 = tpu.matmul %15, %16, %cst_10 {dimension_numbers = #tpu.dot_dimension_numbers<[2], [2], [1], [1], [0, 0, 0, 1, 1, 1], [0], [0]>} : vector<4x8x8xf32>, vector<4x8x8xf32>, vector<4x8x8xf32> -> vector<4x8x8xf32>
    "tpu.trace_stop"() : () -> ()
    %cst_11 = arith.constant dense<0xFF800000> : vector<4x8xf32>
    %19 = vector.multi_reduction <maximumf>, %18, %cst_11 [2] : vector<4x8x8xf32> to vector<4x8xf32>
    %20 = vector.shape_cast %19 : vector<4x8xf32> to vector<4x8x1xf32>
    %21 = vector.broadcast %20 : vector<4x8x1xf32> to vector<4x8x8xf32>
    %22 = arith.subf %18, %21 : vector<4x8x8xf32>
    %23 = math.exp %22 : vector<4x8x8xf32>
    %cst_12 = arith.constant dense<0.000000e+00> : vector<4x8xf32>
    %24 = vector.multi_reduction <add>, %23, %cst_12 [2] : vector<4x8x8xf32> to vector<4x8xf32>
    %25 = vector.shape_cast %24 : vector<4x8xf32> to vector<4x8x1xf32>
    %26 = tpu.reciprocal %25 {approx = true} : vector<4x8x1xf32> -> vector<4x8x1xf32>
    %27 = vector.broadcast %26 : vector<4x8x1xf32> to vector<4x8x8xf32>
    %28 = arith.mulf %23, %27 : vector<4x8x8xf32>
    "tpu.trace_start"() <{level = 10 : i32, message = "hqk,hkd->hqd"}> : () -> ()
    %cst_13 = arith.constant dense<0.000000e+00> : vector<4x8x8xf32>
    %29 = tpu.matmul %28, %17, %cst_13 {dimension_numbers = #tpu.dot_dimension_numbers<[2], [1], [1], [2], [0, 0, 0, 1, 1, 2], [0], [0]>} : vector<4x8x8xf32>, vector<4x8x8xf32>, vector<4x8x8xf32> -> vector<4x8x8xf32>
    "tpu.trace_stop"() : () -> ()
    %30 = arith.truncf %29 : vector<4x8x8xf32> to vector<4x8x8xbf16>
    %c0_14 = arith.constant 0 : index
    %c0_15 = arith.constant 0 : index
    %c0_16 = arith.constant 0 : index
    %c0_17 = arith.constant 0 : index
    %31 = vector.load %arg8[%c0_14, %c0_15, %c0_16, %c0_17] : memref<1x4x8x32xbf16, #tpu.memory_space<vmem>>, vector<1x4x8x32xbf16>
    %32 = vector.shape_cast %31 : vector<1x4x8x32xbf16> to vector<4x8x32xbf16>
    "tpu.trace_start"() <{level = 10 : i32, message = "htd,hdj->htj"}> : () -> ()
    %cst_18 = arith.constant dense<0.000000e+00> : vector<4x8x32xf32>
    %33 = tpu.matmul %30, %32, %cst_18 {dimension_numbers = #tpu.dot_dimension_numbers<[2], [1], [1], [2], [0, 0, 0, 1, 1, 2], [0], [0]>} : vector<4x8x8xbf16>, vector<4x8x32xbf16>, vector<4x8x32xf32> -> vector<4x8x32xf32>
    "tpu.trace_stop"() : () -> ()
    %cst_19 = arith.constant dense<0.000000e+00> : vector<8x32xf32>
    %34 = vector.multi_reduction <add>, %33, %cst_19 [0] : vector<4x8x32xf32> to vector<8x32xf32>
    %c0_20 = arith.constant 0 : index
    %c0_21 = arith.constant 0 : index
    %c0_22 = arith.constant 0 : index
    %35 = vector.load %arg9[%c0_20, %c0_21, %c0_22] : memref<1x1x32xf32, #tpu.memory_space<vmem>>, vector<1x1x32xf32>
    %36 = vector.shape_cast %35 : vector<1x1x32xf32> to vector<1x32xf32>
    %37 = vector.broadcast %36 : vector<1x32xf32> to vector<8x32xf32>
    %38 = arith.addf %34, %37 : vector<8x32xf32>
    %39 = arith.addf %3, %38 : vector<8x32xf32>
    %c0_23 = arith.constant 0 : index
    %c0_24 = arith.constant 0 : index
    %c0_25 = arith.constant 0 : index
    %40 = vector.load %arg10[%c0_23, %c0_24, %c0_25] : memref<1x1x32xf32, #tpu.memory_space<vmem>>, vector<1x1x32xf32>
    %41 = vector.shape_cast %40 : vector<1x1x32xf32> to vector<1x32xf32>
    %c0_26 = arith.constant 0 : index
    %c0_27 = arith.constant 0 : index
    %c0_28 = arith.constant 0 : index
    %42 = vector.load %arg11[%c0_26, %c0_27, %c0_28] : memref<1x1x32xf32, #tpu.memory_space<vmem>>, vector<1x1x32xf32>
    %43 = vector.shape_cast %42 : vector<1x1x32xf32> to vector<1x32xf32>
    %cst_29 = arith.constant dense<0.000000e+00> : vector<8xf32>
    %44 = vector.multi_reduction <add>, %39, %cst_29 [1] : vector<8x32xf32> to vector<8xf32>
    %45 = vector.shape_cast %44 : vector<8xf32> to vector<8x1xf32>
    %46 = arith.mulf %39, %39 : vector<8x32xf32>
    %cst_30 = arith.constant dense<0.000000e+00> : vector<8xf32>
    %47 = vector.multi_reduction <add>, %46, %cst_30 [1] : vector<8x32xf32> to vector<8xf32>
    %48 = vector.shape_cast %47 : vector<8xf32> to vector<8x1xf32>
    %cst_31 = arith.constant 3.125000e-02 : f32
    %49 = vector.broadcast %cst_31 : f32 to vector<8x1xf32>
    %50 = arith.mulf %45, %49 : vector<8x1xf32>
    %cst_32 = arith.constant 3.125000e-02 : f32
    %51 = vector.broadcast %cst_32 : f32 to vector<8x1xf32>
    %52 = arith.mulf %48, %51 : vector<8x1xf32>
    %53 = arith.mulf %50, %50 : vector<8x1xf32>
    %54 = arith.subf %52, %53 : vector<8x1xf32>
    %55 = vector.broadcast %50 : vector<8x1xf32> to vector<8x32xf32>
    %56 = arith.subf %39, %55 : vector<8x32xf32>
    %cst_33 = arith.constant 9.99999974E-6 : f32
    %57 = vector.broadcast %cst_33 : f32 to vector<8x1xf32>
    %58 = arith.addf %54, %57 : vector<8x1xf32>
    %59 = math.rsqrt %58 : vector<8x1xf32>
    %60 = vector.broadcast %59 : vector<8x1xf32> to vector<8x32xf32>
    %61 = arith.mulf %56, %60 : vector<8x32xf32>
    %62 = vector.broadcast %41 : vector<1x32xf32> to vector<8x32xf32>
    %63 = arith.mulf %61, %62 : vector<8x32xf32>
    %64 = vector.broadcast %43 : vector<1x32xf32> to vector<8x32xf32>
    %65 = arith.addf %63, %64 : vector<8x32xf32>
    %66 = arith.truncf %65 : vector<8x32xf32> to vector<8x32xbf16>
    %c0_34 = arith.constant 0 : index
    %c0_35 = arith.constant 0 : index
    %c0_36 = arith.constant 0 : index
    %67 = vector.load %arg12[%c0_34, %c0_35, %c0_36] : memref<1x32x2048xbf16, #tpu.memory_space<vmem>>, vector<1x32x2048xbf16>
    %68 = vector.shape_cast %67 : vector<1x32x2048xbf16> to vector<32x2048xbf16>
    %cst_37 = arith.constant dense<0.000000e+00> : vector<8x2048xf32>
    %69 = tpu.matmul %66, %68, %cst_37 {dimension_numbers = #tpu.dot_dimension_numbers<[1], [0], [0], [1], [0, 0, 1, 1], [], []>} : vector<8x32xbf16>, vector<32x2048xbf16>, vector<8x2048xf32> -> vector<8x2048xf32>
    %c0_38 = arith.constant 0 : index
    %c0_39 = arith.constant 0 : index
    %c0_40 = arith.constant 0 : index
    %70 = vector.load %arg13[%c0_38, %c0_39, %c0_40] : memref<1x1x2048xf32, #tpu.memory_space<vmem>>, vector<1x1x2048xf32>
    %71 = vector.shape_cast %70 : vector<1x1x2048xf32> to vector<1x2048xf32>
    %72 = vector.broadcast %71 : vector<1x2048xf32> to vector<8x2048xf32>
    %73 = arith.addf %69, %72 : vector<8x2048xf32>
    %cst_41 = arith.constant 0.000000e+00 : f32
    %74 = vector.broadcast %cst_41 : f32 to vector<8x2048xf32>
    %75 = arith.maximumf %73, %74 : vector<8x2048xf32>
    %76 = arith.truncf %75 : vector<8x2048xf32> to vector<8x2048xbf16>
    %c0_42 = arith.constant 0 : index
    %c0_43 = arith.constant 0 : index
    %c0_44 = arith.constant 0 : index
    %77 = vector.load %arg14[%c0_42, %c0_43, %c0_44] : memref<1x2048x32xbf16, #tpu.memory_space<vmem>>, vector<1x2048x32xbf16>
    %78 = vector.shape_cast %77 : vector<1x2048x32xbf16> to vector<2048x32xbf16>
    %cst_45 = arith.constant dense<0.000000e+00> : vector<8x32xf32>
    %79 = tpu.matmul %76, %78, %cst_45 {dimension_numbers = #tpu.dot_dimension_numbers<[1], [0], [0], [1], [0, 0, 1, 1], [], []>} : vector<8x2048xbf16>, vector<2048x32xbf16>, vector<8x32xf32> -> vector<8x32xf32>
    %c0_46 = arith.constant 0 : index
    %c0_47 = arith.constant 0 : index
    %c0_48 = arith.constant 0 : index
    %80 = vector.load %arg15[%c0_46, %c0_47, %c0_48] : memref<1x1x32xf32, #tpu.memory_space<vmem>>, vector<1x1x32xf32>
    %81 = vector.shape_cast %80 : vector<1x1x32xf32> to vector<1x32xf32>
    %82 = vector.broadcast %81 : vector<1x32xf32> to vector<8x32xf32>
    %83 = arith.addf %79, %82 : vector<8x32xf32>
    %84 = arith.addf %65, %83 : vector<8x32xf32>
    %c0_49 = arith.constant 0 : index
    %c0_50 = arith.constant 0 : index
    %c0_51 = arith.constant 0 : index
    %85 = vector.load %arg16[%c0_49, %c0_50, %c0_51] : memref<1x1x32xf32, #tpu.memory_space<vmem>>, vector<1x1x32xf32>
    %86 = vector.shape_cast %85 : vector<1x1x32xf32> to vector<1x32xf32>
    %c0_52 = arith.constant 0 : index
    %c0_53 = arith.constant 0 : index
    %c0_54 = arith.constant 0 : index
    %87 = vector.load %arg17[%c0_52, %c0_53, %c0_54] : memref<1x1x32xf32, #tpu.memory_space<vmem>>, vector<1x1x32xf32>
    %88 = vector.shape_cast %87 : vector<1x1x32xf32> to vector<1x32xf32>
    %cst_55 = arith.constant dense<0.000000e+00> : vector<8xf32>
    %89 = vector.multi_reduction <add>, %84, %cst_55 [1] : vector<8x32xf32> to vector<8xf32>
    %90 = vector.shape_cast %89 : vector<8xf32> to vector<8x1xf32>
    %91 = arith.mulf %84, %84 : vector<8x32xf32>
    %cst_56 = arith.constant dense<0.000000e+00> : vector<8xf32>
    %92 = vector.multi_reduction <add>, %91, %cst_56 [1] : vector<8x32xf32> to vector<8xf32>
    %93 = vector.shape_cast %92 : vector<8xf32> to vector<8x1xf32>
    %cst_57 = arith.constant 3.125000e-02 : f32
    %94 = vector.broadcast %cst_57 : f32 to vector<8x1xf32>
    %95 = arith.mulf %90, %94 : vector<8x1xf32>
    %cst_58 = arith.constant 3.125000e-02 : f32
    %96 = vector.broadcast %cst_58 : f32 to vector<8x1xf32>
    %97 = arith.mulf %93, %96 : vector<8x1xf32>
    %98 = arith.mulf %95, %95 : vector<8x1xf32>
    %99 = arith.subf %97, %98 : vector<8x1xf32>
    %100 = vector.broadcast %95 : vector<8x1xf32> to vector<8x32xf32>
    %101 = arith.subf %84, %100 : vector<8x32xf32>
    %cst_59 = arith.constant 9.99999974E-6 : f32
    %102 = vector.broadcast %cst_59 : f32 to vector<8x1xf32>
    %103 = arith.addf %99, %102 : vector<8x1xf32>
    %104 = math.rsqrt %103 : vector<8x1xf32>
    %105 = vector.broadcast %104 : vector<8x1xf32> to vector<8x32xf32>
    %106 = arith.mulf %101, %105 : vector<8x32xf32>
    %107 = vector.broadcast %86 : vector<1x32xf32> to vector<8x32xf32>
    %108 = arith.mulf %106, %107 : vector<8x32xf32>
    %109 = vector.broadcast %88 : vector<1x32xf32> to vector<8x32xf32>
    %110 = arith.addf %108, %109 : vector<8x32xf32>
    %c0_60 = arith.constant 0 : index
    %c0_61 = arith.constant 0 : index
    %111 = vector.load %arg21[%c0_60, %c0_61] : memref<8x32xf32, #tpu.memory_space<vmem>>, vector<8x32xf32>
    tpu.vector_store %arg21[%c0_60, %c0_61], %110 {strides = array<i32>} : memref<8x32xf32, #tpu.memory_space<vmem>>, vector<8x32xf32>,
    %c1_i32 = arith.constant 1 : i32
    %112 = arith.cmpi eq, %arg1, %c1_i32 : i32
    %113 = arith.extui %112 : i1 to i32
    %c0_i32_62 = arith.constant 0 : i32
    %114 = arith.cmpi ne, %113, %c0_i32_62 : i32
    scf.if %114 {
      %115 = vector.extract_strided_slice %110 {offsets = [7, 0], sizes = [1, 32], strides = [1, 1]} : vector<8x32xf32> to vector<1x32xf32>
      %c0_63 = arith.constant 0 : index
      %c0_64 = arith.constant 0 : index
      %116 = vector.load %arg18[%c0_63, %c0_64] : memref<32x4xf32, #tpu.memory_space<vmem>>, vector<32x4xf32>
      %cst_65 = arith.constant dense<0.000000e+00> : vector<1x4xf32>
      %117 = tpu.matmul %115, %116, %cst_65 {dimension_numbers = #tpu.dot_dimension_numbers<[1], [0], [0], [1], [0, 0, 1, 1], [], []>} : vector<1x32xf32>, vector<32x4xf32>, vector<1x4xf32> -> vector<1x4xf32>
      %c0_66 = arith.constant 0 : index
      %c0_67 = arith.constant 0 : index
      %118 = vector.load %arg19[%c0_66, %c0_67] : memref<1x4xf32, #tpu.memory_space<vmem>>, vector<1x4xf32>
      %119 = arith.addf %117, %118 : vector<1x4xf32>
      %c0_68 = arith.constant 0 : index
      %c0_69 = arith.constant 0 : index
      %c0_70 = arith.constant 0 : index
      %120 = vector.load %arg20[%c0_68, %c0_69, %c0_70] : memref<1x1x4xf32, #tpu.memory_space<vmem>>, vector<1x1x4xf32>
      %121 = vector.shape_cast %120 : vector<1x1x4xf32> to vector<1x4xf32>
      %122 = vector.shape_cast %119 : vector<1x4xf32> to vector<1x1x4xf32>
      tpu.vector_store %arg20[%c0_68, %c0_69, %c0_70], %122 {strides = array<i32>} : memref<1x1x4xf32, #tpu.memory_space<vmem>>, vector<1x1x4xf32>,
    } else {
    }
    return
  }
  func.func @transform_0(%arg0: i32, %arg1: i32) -> (i32, i32, i32) {
    %c0_i32 = arith.constant 0 : i32
    %c0_i32_0 = arith.constant 0 : i32
    %c0_i32_1 = arith.constant 0 : i32
    return %arg0, %c0_i32, %c0_i32_0 : i32, i32, i32
  }
  func.func @transform_1(%arg0: i32, %arg1: i32) -> (i32, i32) {
    %c0_i32 = arith.constant 0 : i32
    %c0_i32_0 = arith.constant 0 : i32
    %c0_i32_1 = arith.constant 0 : i32
    return %c0_i32, %c0_i32_0 : i32, i32
  }
  func.func @transform_2(%arg0: i32, %arg1: i32) -> (i32, i32) {
    %c0_i32 = arith.constant 0 : i32
    %c0_i32_0 = arith.constant 0 : i32
    %c0_i32_1 = arith.constant 0 : i32
    return %c0_i32, %c0_i32_0 : i32, i32
  }
  func.func @transform_3(%arg0: i32, %arg1: i32) -> (i32, i32) {
    %c0_i32 = arith.constant 0 : i32
    %c0_i32_0 = arith.constant 0 : i32
    %c0_i32_1 = arith.constant 0 : i32
    return %c0_i32, %c0_i32_0 : i32, i32
  }
  func.func @transform_4(%arg0: i32, %arg1: i32) -> (i32, i32, i32, i32) {
    %c0_i32 = arith.constant 0 : i32
    %c0_i32_0 = arith.constant 0 : i32
    %c0_i32_1 = arith.constant 0 : i32
    %c0_i32_2 = arith.constant 0 : i32
    return %arg1, %c0_i32, %c0_i32_0, %c0_i32_1 : i32, i32, i32, i32
  }
  func.func @transform_5(%arg0: i32, %arg1: i32) -> (i32, i32, i32, i32) {
    %c0_i32 = arith.constant 0 : i32
    %c0_i32_0 = arith.constant 0 : i32
    %c0_i32_1 = arith.constant 0 : i32
    %c0_i32_2 = arith.constant 0 : i32
    return %arg1, %c0_i32, %c0_i32_0, %c0_i32_1 : i32, i32, i32, i32
  }
  func.func @transform_6(%arg0: i32, %arg1: i32) -> (i32, i32, i32, i32) {
    %c0_i32 = arith.constant 0 : i32
    %c0_i32_0 = arith.constant 0 : i32
    %c0_i32_1 = arith.constant 0 : i32
    %c0_i32_2 = arith.constant 0 : i32
    return %arg1, %c0_i32, %c0_i32_0, %c0_i32_1 : i32, i32, i32, i32
  }
  func.func @transform_7(%arg0: i32, %arg1: i32) -> (i32, i32, i32) {
    %c0_i32 = arith.constant 0 : i32
    %c0_i32_0 = arith.constant 0 : i32
    %c0_i32_1 = arith.constant 0 : i32
    return %arg1, %c0_i32, %c0_i32_0 : i32, i32, i32
  }
  func.func @transform_8(%arg0: i32, %arg1: i32) -> (i32, i32, i32) {
    %c0_i32 = arith.constant 0 : i32
    %c0_i32_0 = arith.constant 0 : i32
    %c0_i32_1 = arith.constant 0 : i32
    return %arg1, %c0_i32, %c0_i32_0 : i32, i32, i32
  }
  func.func @transform_9(%arg0: i32, %arg1: i32) -> (i32, i32, i32) {
    %c0_i32 = arith.constant 0 : i32
    %c0_i32_0 = arith.constant 0 : i32
    %c0_i32_1 = arith.constant 0 : i32
    return %arg1, %c0_i32, %c0_i32_0 : i32, i32, i32
  }
  func.func @transform_10(%arg0: i32, %arg1: i32) -> (i32, i32, i32) {
    %c0_i32 = arith.constant 0 : i32
    %c0_i32_0 = arith.constant 0 : i32
    %c0_i32_1 = arith.constant 0 : i32
    return %arg1, %c0_i32, %c0_i32_0 : i32, i32, i32
  }
  func.func @transform_11(%arg0: i32, %arg1: i32) -> (i32, i32, i32) {
    %c0_i32 = arith.constant 0 : i32
    %c0_i32_0 = arith.constant 0 : i32
    %c0_i32_1 = arith.constant 0 : i32
    return %arg1, %c0_i32, %c0_i32_0 : i32, i32, i32
  }
  func.func @transform_12(%arg0: i32, %arg1: i32) -> (i32, i32, i32) {
    %c0_i32 = arith.constant 0 : i32
    %c0_i32_0 = arith.constant 0 : i32
    %c0_i32_1 = arith.constant 0 : i32
    return %arg1, %c0_i32, %c0_i32_0 : i32, i32, i32
  }
  func.func @transform_13(%arg0: i32, %arg1: i32) -> (i32, i32, i32) {
    %c0_i32 = arith.constant 0 : i32
    %c0_i32_0 = arith.constant 0 : i32
    %c0_i32_1 = arith.constant 0 : i32
    return %arg1, %c0_i32, %c0_i32_0 : i32, i32, i32
  }
  func.func @transform_14(%arg0: i32, %arg1: i32) -> (i32, i32, i32) {
    %c0_i32 = arith.constant 0 : i32
    %c0_i32_0 = arith.constant 0 : i32
    %c0_i32_1 = arith.constant 0 : i32
    return %arg1, %c0_i32, %c0_i32_0 : i32, i32, i32
  }
  func.func @transform_15(%arg0: i32, %arg1: i32) -> (i32, i32, i32) {
    %c0_i32 = arith.constant 0 : i32
    %c0_i32_0 = arith.constant 0 : i32
    %c0_i32_1 = arith.constant 0 : i32
    return %arg1, %c0_i32, %c0_i32_0 : i32, i32, i32
  }
  func.func @transform_16(%arg0: i32, %arg1: i32) -> (i32, i32) {
    %c0_i32 = arith.constant 0 : i32
    %c0_i32_0 = arith.constant 0 : i32
    %c0_i32_1 = arith.constant 0 : i32
    return %c0_i32, %c0_i32_0 : i32, i32
  }
  func.func @transform_17(%arg0: i32, %arg1: i32) -> (i32, i32) {
    %c0_i32 = arith.constant 0 : i32
    %c0_i32_0 = arith.constant 0 : i32
    %c0_i32_1 = arith.constant 0 : i32
    return %c0_i32, %c0_i32_0 : i32, i32
  }
  func.func @transform_18(%arg0: i32, %arg1: i32) -> (i32, i32, i32) {
    %c0_i32 = arith.constant 0 : i32
    %c0_i32_0 = arith.constant 0 : i32
    %c0_i32_1 = arith.constant 0 : i32
    return %arg0, %c0_i32, %c0_i32_0 : i32, i32, i32
  }
}

</mosaic_0001>

<llo_original>
// kernel: tpu_custom_call.1
$region0: #{tpu_custom_call.1}
  #allocation0 [shape = 'u32[]', space=smem, size = 0x4, offset = 0x4, fixed_abs, tag = 'smem constant byte address 0x4 - core index']
  #allocation1 [shape = 'u32[72,128]{1,0:T(1,128)}', space=vmem, size = 0x9000, scoped, tag = 'internal scratch']
  #allocation2 [shape = 'f32[8,32]{1,0:T(8,128)}', space=vmem, size = 0x1000, scoped, tag = 'scratch operand']
  %s0 = inlined_call_operand.vmem [shape: f32[2,8,4], index: 0, kind: input, shape index: {}]
  %s1 = inlined_call_operand.vmem [shape: f32[8,32], index: 1, kind: input, shape index: {}]
  %s2 = inlined_call_operand.vmem [shape: f32[4,32], index: 2, kind: input, shape index: {}]
  %s3 = inlined_call_operand.vmem [shape: f32[1,32], index: 3, kind: input, shape index: {}]
  %s4 = inlined_call_operand.vmem [shape: bf16[2,12,32,8], index: 4, kind: input, shape index: {}]
  %s5 = inlined_call_operand.vmem [shape: f32[2,12,1,8], index: 5, kind: input, shape index: {}]
  %s6 = inlined_call_operand.vmem [shape: bf16[2,4,8,32], index: 6, kind: input, shape index: {}]
  %s7 = inlined_call_operand.vmem [shape: f32[2,1,32], index: 7, kind: input, shape index: {}]
  %s8 = inlined_call_operand.vmem [shape: f32[2,1,32], index: 8, kind: input, shape index: {}]
  %s9 = inlined_call_operand.vmem [shape: f32[2,1,32], index: 9, kind: input, shape index: {}]
  %s10 = inlined_call_operand.vmem [shape: bf16[2,32,2048], index: 10, kind: input, shape index: {}]
  %s11 = inlined_call_operand.vmem [shape: f32[2,1,2048], index: 11, kind: input, shape index: {}]
  %s12 = inlined_call_operand.vmem [shape: bf16[2,2048,32], index: 12, kind: input, shape index: {}]
  %s13 = inlined_call_operand.vmem [shape: f32[2,1,32], index: 13, kind: input, shape index: {}]
  %s14 = inlined_call_operand.vmem [shape: f32[2,1,32], index: 14, kind: input, shape index: {}]
  %s15 = inlined_call_operand.vmem [shape: f32[2,1,32], index: 15, kind: input, shape index: {}]
  %s16 = inlined_call_operand.vmem [shape: f32[32,4], index: 16, kind: input, shape index: {}]
  %s17 = inlined_call_operand.vmem [shape: f32[1,4], index: 17, kind: input, shape index: {}]
  %s18 = inlined_call_operand.hbm [shape: f32[2,1,4], index: 18, kind: output, shape index: {}]
  %s19 = sld [smem:[#allocation0]]
  $region113: #{tpu_custom_call.1} parent=0
    _
  %s21 = ssub.s32 1, %s19
  %s22 = scalar_select 0, %s21, %s19
  $region1: #{tpu_custom_call.1} parent=0
    #allocation3 [shape = 'u8[1024]{0}', space=vmem, size = 0x400, scoped, tag = 'output window, operand 0']
    #allocation4 [shape = 's32[2]{0}', space=sflag, size = 0x8, scoped, tag = 'scoped memory for tpu_custom_call.1']
    %23 = vsyncpa [#allocation4], 0
    %s24 = scalar_lea.sflag [#allocation4], 1
    %25 = vsyncpa %s24, 0
    loop: start=0, step=1, limit=6
    $region2: #{tpu_custom_call.1} parent=1 // loop_pre_header
      _
    $region3: #{tpu_custom_call.1} parent=1 // loop_header
      %s27 = sphi 0, %s31
      %p28 = scmp.ge.s32.totalorder %s27, 6
      %s34 = sphi 0, %s46
      %s35 = sphi 0, %s42
      %s36 = sphi 0, %s34
      %s37 = sphi 0, %s35
      %s38 = sphi 0, %s36
      %s39 = sphi 0, %s37
      %s49 = sphi 0, %s51
      %s52 = sphi 0, %s49
      %s53 = sphi 0, %s52
      %s69 = sphi 0, %s53
      %s73 = sphi 0, %s73
      %s75 = sphi 0, %s73
      %s76 = sphi 0, %s75
      %s90 = sphi 0, %s76
      %s94 = sphi 0, %s94
      %s96 = sphi 0, %s94
      %s97 = sphi 0, %s96
      %s111 = sphi 0, %s97
      %s115 = sphi 0, %s115
      %s117 = sphi 0, %s115
      %s118 = sphi 0, %s117
      %s132 = sphi 0, %s118
      %s138 = sphi 0, %s140
      %s141 = sphi 0, %s138
      %s142 = sphi 0, %s141
      %s158 = sphi 0, %s142
      %s164 = sphi 0, %s166
      %s167 = sphi 0, %s164
      %s168 = sphi 0, %s167
      %s184 = sphi 0, %s168
      %s190 = sphi 0, %s192
      %s193 = sphi 0, %s190
      %s194 = sphi 0, %s193
      %s210 = sphi 0, %s194
      %s216 = sphi 0, %s218
      %s219 = sphi 0, %s216
      %s220 = sphi 0, %s219
      %s236 = sphi 0, %s220
      %s242 = sphi 0, %s244
      %s245 = sphi 0, %s242
      %s246 = sphi 0, %s245
      %s262 = sphi 0, %s246
      %s268 = sphi 0, %s270
      %s271 = sphi 0, %s268
      %s272 = sphi 0, %s271
      %s288 = sphi 0, %s272
      %s294 = sphi 0, %s296
      %s297 = sphi 0, %s294
      %s298 = sphi 0, %s297
      %s314 = sphi 0, %s298
      %s320 = sphi 0, %s322
      %s323 = sphi 0, %s320
      %s324 = sphi 0, %s323
      %s340 = sphi 0, %s324
      %s346 = sphi 0, %s348
      %s349 = sphi 0, %s346
      %s350 = sphi 0, %s349
      %s366 = sphi 0, %s350
      %s372 = sphi 0, %s374
      %s375 = sphi 0, %s372
      %s376 = sphi 0, %s375
      %s392 = sphi 0, %s376
      %s398 = sphi 0, %s400
      %s401 = sphi 0, %s398
      %s402 = sphi 0, %s401
      %s418 = sphi 0, %s402
      %s424 = sphi 0, %s426
      %s427 = sphi 0, %s424
      %s428 = sphi 0, %s427
      %s444 = sphi 0, %s428
      %s448 = sphi 0, %s448
      %s450 = sphi 0, %s448
      %s451 = sphi 0, %s450
      %s465 = sphi 0, %s451
      %s469 = sphi 0, %s469
      %s471 = sphi 0, %s469
      %s472 = sphi 0, %s471
      %s486 = sphi 0, %s472
      %s492 = sphi 0, %s494
      %s495 = sphi 0, %s492
      %s496 = sphi 0, %s495
      %s512 = sphi 0, %s496
    $region4: #{tpu_custom_call.1} parent=1 // loop_header_branch
      %30 = sbr.rel (%p28) target = $region8
    $region5: #{tpu_custom_call.1} parent=1 // loop_body
      %s32 = ssub.s32 %s27, 1
      %s33 = ssub.s32 %s27, 2
      %s40 = sadd.s32 1, %s35
      %p41 = scmp.ge.s32.totalorder %s40, 2
      %s42 = scalar_select %p41, 0, %s40
      %s43 = sadd.s32 1, %s34
      %s44 = scalar_select %p41, %s43, %s34
      %p45 = scmp.ge.s32.totalorder %s44, 2
      %s46 = scalar_select %p45, 0, %s44
      %s47 = ssub.s32 %s34, %s46
      %p48 = scmp.eq.s32.totalorder %s47, 0
      %s50 = sadd.s32 %s49, 1
      %s51 = scalar_select %p48, %s49, %s50
      %p54 = pneg %p48
      %p55 = scmp.eq.s32.totalorder %s27, 3
      %p56 = por %p54, %p55
      %p57 = scmp.ne.s32.totalorder %s49, %s52
      %p58 = scmp.eq.s32.totalorder %s27, 0
      %p59 = por %p57, %p58
      %p60 = scmp.ne.s32.totalorder %s49, %s52
      %p61 = scmp.eq.s32.totalorder %s32, 3
      %p62 = por %p60, %p61
      %p63 = scmp.ne.s32.totalorder %s52, %s53
      %p64 = scmp.eq.s32.totalorder %s32, 0
      %p65 = por %p63, %p64
      %p66 = scmp.ne.s32.totalorder %s52, %s53
      %p67 = scmp.eq.s32.totalorder %s33, 3
      %p68 = por %p66, %p67
      %p70 = scmp.ne.s32.totalorder %s53, %s69
      %p71 = scmp.eq.s32.totalorder %s33, 0
      %p72 = por %p70, %p71
      %s74 = sadd.s32 %s73, 1
      %p77 = scmp.eq.s32.totalorder %s27, 3
      %p78 = scmp.ne.s32.totalorder %s73, %s75
      %p79 = scmp.eq.s32.totalorder %s27, 0
      %p80 = por %p78, %p79
      %p81 = scmp.ne.s32.totalorder %s73, %s75
      %p82 = scmp.eq.s32.totalorder %s32, 3
      %p83 = por %p81, %p82
      %p84 = scmp.ne.s32.totalorder %s75, %s76
      %p85 = scmp.eq.s32.totalorder %s32, 0
      %p86 = por %p84, %p85
      %p87 = scmp.ne.s32.totalorder %s75, %s76
      %p88 = scmp.eq.s32.totalorder %s33, 3
      %p89 = por %p87, %p88
      %p91 = scmp.ne.s32.totalorder %s76, %s90
      %p92 = scmp.eq.s32.totalorder %s33, 0
      %p93 = por %p91, %p92
      %s95 = sadd.s32 %s94, 1
      %p98 = scmp.eq.s32.totalorder %s27, 3
      %p99 = scmp.ne.s32.totalorder %s94, %s96
      %p100 = scmp.eq.s32.totalorder %s27, 0
      %p101 = por %p99, %p100
      %p102 = scmp.ne.s32.totalorder %s94, %s96
      %p103 = scmp.eq.s32.totalorder %s32, 3
      %p104 = por %p102, %p103
      %p105 = scmp.ne.s32.totalorder %s96, %s97
      %p106 = scmp.eq.s32.totalorder %s32, 0
      %p107 = por %p105, %p106
      %p108 = scmp.ne.s32.totalorder %s96, %s97
      %p109 = scmp.eq.s32.totalorder %s33, 3
      %p110 = por %p108, %p109
      %p112 = scmp.ne.s32.totalorder %s97, %s111
      %p113 = scmp.eq.s32.totalorder %s33, 0
      %p114 = por %p112, %p113
      %s116 = sadd.s32 %s115, 1
      %p119 = scmp.eq.s32.totalorder %s27, 3
      %p120 = scmp.ne.s32.totalorder %s115, %s117
      %p121 = scmp.eq.s32.totalorder %s27, 0
      %p122 = por %p120, %p121
      %p123 = scmp.ne.s32.totalorder %s115, %s117
      %p124 = scmp.eq.s32.totalorder %s32, 3
      %p125 = por %p123, %p124
      %p126 = scmp.ne.s32.totalorder %s117, %s118
      %p127 = scmp.eq.s32.totalorder %s32, 0
      %p128 = por %p126, %p127
      %p129 = scmp.ne.s32.totalorder %s117, %s118
      %p130 = scmp.eq.s32.totalorder %s33, 3
      %p131 = por %p129, %p130
      %p133 = scmp.ne.s32.totalorder %s118, %s132
      %p134 = scmp.eq.s32.totalorder %s33, 0
      %p135 = por %p133, %p134
      %s136 = ssub.s32 %s35, %s42
      %p137 = scmp.eq.s32.totalorder %s136, 0
      %s139 = sadd.s32 %s138, 1
      %s140 = scalar_select %p137, %s138, %s139
      %p143 = pneg %p137
      %p144 = scmp.eq.s32.totalorder %s27, 3
      %p145 = por %p143, %p144
      %p146 = scmp.ne.s32.totalorder %s138, %s141
      %p147 = scmp.eq.s32.totalorder %s27, 0
      %p148 = por %p146, %p147
      %p149 = scmp.ne.s32.totalorder %s138, %s141
      %p150 = scmp.eq.s32.totalorder %s32, 3
      %p151 = por %p149, %p150
      %p152 = scmp.ne.s32.totalorder %s141, %s142
      %p153 = scmp.eq.s32.totalorder %s32, 0
      %p154 = por %p152, %p153
      %p155 = scmp.ne.s32.totalorder %s141, %s142
      %p156 = scmp.eq.s32.totalorder %s33, 3
      %p157 = por %p155, %p156
      %p159 = scmp.ne.s32.totalorder %s142, %s158
      %p160 = scmp.eq.s32.totalorder %s33, 0
      %p161 = por %p159, %p160
      %s162 = ssub.s32 %s35, %s42
      %p163 = scmp.eq.s32.totalorder %s162, 0
      %s165 = sadd.s32 %s164, 1
      %s166 = scalar_select %p163, %s164, %s165
      %p169 = pneg %p163
      %p170 = scmp.eq.s32.totalorder %s27, 3
      %p171 = por %p169, %p170
      %p172 = scmp.ne.s32.totalorder %s164, %s167
      %p173 = scmp.eq.s32.totalorder %s27, 0
      %p174 = por %p172, %p173
      %p175 = scmp.ne.s32.totalorder %s164, %s167
      %p176 = scmp.eq.s32.totalorder %s32, 3
      %p177 = por %p175, %p176
      %p178 = scmp.ne.s32.totalorder %s167, %s168
      %p179 = scmp.eq.s32.totalorder %s32, 0
      %p180 = por %p178, %p179
      %p181 = scmp.ne.s32.totalorder %s167, %s168
      %p182 = scmp.eq.s32.totalorder %s33, 3
      %p183 = por %p181, %p182
      %p185 = scmp.ne.s32.totalorder %s168, %s184
      %p186 = scmp.eq.s32.totalorder %s33, 0
      %p187 = por %p185, %p186
      %s188 = ssub.s32 %s35, %s42
      %p189 = scmp.eq.s32.totalorder %s188, 0
      %s191 = sadd.s32 %s190, 1
      %s192 = scalar_select %p189, %s190, %s191
      %p195 = pneg %p189
      %p196 = scmp.eq.s32.totalorder %s27, 3
      %p197 = por %p195, %p196
      %p198 = scmp.ne.s32.totalorder %s190, %s193
      %p199 = scmp.eq.s32.totalorder %s27, 0
      %p200 = por %p198, %p199
      %p201 = scmp.ne.s32.totalorder %s190, %s193
      %p202 = scmp.eq.s32.totalorder %s32, 3
      %p203 = por %p201, %p202
      %p204 = scmp.ne.s32.totalorder %s193, %s194
      %p205 = scmp.eq.s32.totalorder %s32, 0
      %p206 = por %p204, %p205
      %p207 = scmp.ne.s32.totalorder %s193, %s194
      %p208 = scmp.eq.s32.totalorder %s33, 3
      %p209 = por %p207, %p208
      %p211 = scmp.ne.s32.totalorder %s194, %s210
      %p212 = scmp.eq.s32.totalorder %s33, 0
      %p213 = por %p211, %p212
      %s214 = ssub.s32 %s35, %s42
      %p215 = scmp.eq.s32.totalorder %s214, 0
      %s217 = sadd.s32 %s216, 1
      %s218 = scalar_select %p215, %s216, %s217
      %p221 = pneg %p215
      %p222 = scmp.eq.s32.totalorder %s27, 3
      %p223 = por %p221, %p222
      %p224 = scmp.ne.s32.totalorder %s216, %s219
      %p225 = scmp.eq.s32.totalorder %s27, 0
      %p226 = por %p224, %p225
      %p227 = scmp.ne.s32.totalorder %s216, %s219
      %p228 = scmp.eq.s32.totalorder %s32, 3
      %p229 = por %p227, %p228
      %p230 = scmp.ne.s32.totalorder %s219, %s220
      %p231 = scmp.eq.s32.totalorder %s32, 0
      %p232 = por %p230, %p231
      %p233 = scmp.ne.s32.totalorder %s219, %s220
      %p234 = scmp.eq.s32.totalorder %s33, 3
      %p235 = por %p233, %p234
      %p237 = scmp.ne.s32.totalorder %s220, %s236
      %p238 = scmp.eq.s32.totalorder %s33, 0
      %p239 = por %p237, %p238
      %s240 = ssub.s32 %s35, %s42
      %p241 = scmp.eq.s32.totalorder %s240, 0
      %s243 = sadd.s32 %s242, 1
      %s244 = scalar_select %p241, %s242, %s243
      %p247 = pneg %p241
      %p248 = scmp.eq.s32.totalorder %s27, 3
      %p249 = por %p247, %p248
      %p250 = scmp.ne.s32.totalorder %s242, %s245
      %p251 = scmp.eq.s32.totalorder %s27, 0
      %p252 = por %p250, %p251
      %p253 = scmp.ne.s32.totalorder %s242, %s245
      %p254 = scmp.eq.s32.totalorder %s32, 3
      %p255 = por %p253, %p254
      %p256 = scmp.ne.s32.totalorder %s245, %s246
      %p257 = scmp.eq.s32.totalorder %s32, 0
      %p258 = por %p256, %p257
      %p259 = scmp.ne.s32.totalorder %s245, %s246
      %p260 = scmp.eq.s32.totalorder %s33, 3
      %p261 = por %p259, %p260
      %p263 = scmp.ne.s32.totalorder %s246, %s262
      %p264 = scmp.eq.s32.totalorder %s33, 0
      %p265 = por %p263, %p264
      %s266 = ssub.s32 %s35, %s42
      %p267 = scmp.eq.s32.totalorder %s266, 0
      %s269 = sadd.s32 %s268, 1
      %s270 = scalar_select %p267, %s268, %s269
      %p273 = pneg %p267
      %p274 = scmp.eq.s32.totalorder %s27, 3
      %p275 = por %p273, %p274
      %p276 = scmp.ne.s32.totalorder %s268, %s271
      %p277 = scmp.eq.s32.totalorder %s27, 0
      %p278 = por %p276, %p277
      %p279 = scmp.ne.s32.totalorder %s268, %s271
      %p280 = scmp.eq.s32.totalorder %s32, 3
      %p281 = por %p279, %p280
      %p282 = scmp.ne.s32.totalorder %s271, %s272
      %p283 = scmp.eq.s32.totalorder %s32, 0
      %p284 = por %p282, %p283
      %p285 = scmp.ne.s32.totalorder %s271, %s272
      %p286 = scmp.eq.s32.totalorder %s33, 3
      %p287 = por %p285, %p286
      %p289 = scmp.ne.s32.totalorder %s272, %s288
      %p290 = scmp.eq.s32.totalorder %s33, 0
      %p291 = por %p289, %p290
      %s292 = ssub.s32 %s35, %s42
      %p293 = scmp.eq.s32.totalorder %s292, 0
      %s295 = sadd.s32 %s294, 1
      %s296 = scalar_select %p293, %s294, %s295
      %p299 = pneg %p293
      %p300 = scmp.eq.s32.totalorder %s27, 3
      %p301 = por %p299, %p300
      %p302 = scmp.ne.s32.totalorder %s294, %s297
      %p303 = scmp.eq.s32.totalorder %s27, 0
      %p304 = por %p302, %p303
      %p305 = scmp.ne.s32.totalorder %s294, %s297
      %p306 = scmp.eq.s32.totalorder %s32, 3
      %p307 = por %p305, %p306
      %p308 = scmp.ne.s32.totalorder %s297, %s298
      %p309 = scmp.eq.s32.totalorder %s32, 0
      %p310 = por %p308, %p309
      %p311 = scmp.ne.s32.totalorder %s297, %s298
      %p312 = scmp.eq.s32.totalorder %s33, 3
      %p313 = por %p311, %p312
      %p315 = scmp.ne.s32.totalorder %s298, %s314
      %p316 = scmp.eq.s32.totalorder %s33, 0
      %p317 = por %p315, %p316
      %s318 = ssub.s32 %s35, %s42
      %p319 = scmp.eq.s32.totalorder %s318, 0
      %s321 = sadd.s32 %s320, 1
      %s322 = scalar_select %p319, %s320, %s321
      %p325 = pneg %p319
      %p326 = scmp.eq.s32.totalorder %s27, 3
      %p327 = por %p325, %p326
      %p328 = scmp.ne.s32.totalorder %s320, %s323
      %p329 = scmp.eq.s32.totalorder %s27, 0
      %p330 = por %p328, %p329
      %p331 = scmp.ne.s32.totalorder %s320, %s323
      %p332 = scmp.eq.s32.totalorder %s32, 3
      %p333 = por %p331, %p332
      %p334 = scmp.ne.s32.totalorder %s323, %s324
      %p335 = scmp.eq.s32.totalorder %s32, 0
      %p336 = por %p334, %p335
      %p337 = scmp.ne.s32.totalorder %s323, %s324
      %p338 = scmp.eq.s32.totalorder %s33, 3
      %p339 = por %p337, %p338
      %p341 = scmp.ne.s32.totalorder %s324, %s340
      %p342 = scmp.eq.s32.totalorder %s33, 0
      %p343 = por %p341, %p342
      %s344 = ssub.s32 %s35, %s42
      %p345 = scmp.eq.s32.totalorder %s344, 0
      %s347 = sadd.s32 %s346, 1
      %s348 = scalar_select %p345, %s346, %s347
      %p351 = pneg %p345
      %p352 = scmp.eq.s32.totalorder %s27, 3
      %p353 = por %p351, %p352
      %p354 = scmp.ne.s32.totalorder %s346, %s349
      %p355 = scmp.eq.s32.totalorder %s27, 0
      %p356 = por %p354, %p355
      %p357 = scmp.ne.s32.totalorder %s346, %s349
      %p358 = scmp.eq.s32.totalorder %s32, 3
      %p359 = por %p357, %p358
      %p360 = scmp.ne.s32.totalorder %s349, %s350
      %p361 = scmp.eq.s32.totalorder %s32, 0
      %p362 = por %p360, %p361
      %p363 = scmp.ne.s32.totalorder %s349, %s350
      %p364 = scmp.eq.s32.totalorder %s33, 3
      %p365 = por %p363, %p364
      %p367 = scmp.ne.s32.totalorder %s350, %s366
      %p368 = scmp.eq.s32.totalorder %s33, 0
      %p369 = por %p367, %p368
      %s370 = ssub.s32 %s35, %s42
      %p371 = scmp.eq.s32.totalorder %s370, 0
      %s373 = sadd.s32 %s372, 1
      %s374 = scalar_select %p371, %s372, %s373
      %p377 = pneg %p371
      %p378 = scmp.eq.s32.totalorder %s27, 3
      %p379 = por %p377, %p378
      %p380 = scmp.ne.s32.totalorder %s372, %s375
      %p381 = scmp.eq.s32.totalorder %s27, 0
      %p382 = por %p380, %p381
      %p383 = scmp.ne.s32.totalorder %s372, %s375
      %p384 = scmp.eq.s32.totalorder %s32, 3
      %p385 = por %p383, %p384
      %p386 = scmp.ne.s32.totalorder %s375, %s376
      %p387 = scmp.eq.s32.totalorder %s32, 0
      %p388 = por %p386, %p387
      %p389 = scmp.ne.s32.totalorder %s375, %s376
      %p390 = scmp.eq.s32.totalorder %s33, 3
      %p391 = por %p389, %p390
      %p393 = scmp.ne.s32.totalorder %s376, %s392
      %p394 = scmp.eq.s32.totalorder %s33, 0
      %p395 = por %p393, %p394
      %s396 = ssub.s32 %s35, %s42
      %p397 = scmp.eq.s32.totalorder %s396, 0
      %s399 = sadd.s32 %s398, 1
      %s400 = scalar_select %p397, %s398, %s399
      %p403 = pneg %p397
      %p404 = scmp.eq.s32.totalorder %s27, 3
      %p405 = por %p403, %p404
      %p406 = scmp.ne.s32.totalorder %s398, %s401
      %p407 = scmp.eq.s32.totalorder %s27, 0
      %p408 = por %p406, %p407
      %p409 = scmp.ne.s32.totalorder %s398, %s401
      %p410 = scmp.eq.s32.totalorder %s32, 3
      %p411 = por %p409, %p410
      %p412 = scmp.ne.s32.totalorder %s401, %s402
      %p413 = scmp.eq.s32.totalorder %s32, 0
      %p414 = por %p412, %p413
      %p415 = scmp.ne.s32.totalorder %s401, %s402
      %p416 = scmp.eq.s32.totalorder %s33, 3
      %p417 = por %p415, %p416
      %p419 = scmp.ne.s32.totalorder %s402, %s418
      %p420 = scmp.eq.s32.totalorder %s33, 0
      %p421 = por %p419, %p420
      %s422 = ssub.s32 %s35, %s42
      %p423 = scmp.eq.s32.totalorder %s422, 0
      %s425 = sadd.s32 %s424, 1
      %s426 = scalar_select %p423, %s424, %s425
      %p429 = pneg %p423
      %p430 = scmp.eq.s32.totalorder %s27, 3
      %p431 = por %p429, %p430
      %p432 = scmp.ne.s32.totalorder %s424, %s427
      %p433 = scmp.eq.s32.totalorder %s27, 0
      %p434 = por %p432, %p433
      %p435 = scmp.ne.s32.totalorder %s424, %s427
      %p436 = scmp.eq.s32.totalorder %s32, 3
      %p437 = por %p435, %p436
      %p438 = scmp.ne.s32.totalorder %s427, %s428
      %p439 = scmp.eq.s32.totalorder %s32, 0
      %p440 = por %p438, %p439
      %p441 = scmp.ne.s32.totalorder %s427, %s428
      %p442 = scmp.eq.s32.totalorder %s33, 3
      %p443 = por %p441, %p442
      %p445 = scmp.ne.s32.totalorder %s428, %s444
      %p446 = scmp.eq.s32.totalorder %s33, 0
      %p447 = por %p445, %p446
      %s449 = sadd.s32 %s448, 1
      %p452 = scmp.eq.s32.totalorder %s27, 3
      %p453 = scmp.ne.s32.totalorder %s448, %s450
      %p454 = scmp.eq.s32.totalorder %s27, 0
      %p455 = por %p453, %p454
      %p456 = scmp.ne.s32.totalorder %s448, %s450
      %p457 = scmp.eq.s32.totalorder %s32, 3
      %p458 = por %p456, %p457
      %p459 = scmp.ne.s32.totalorder %s450, %s451
      %p460 = scmp.eq.s32.totalorder %s32, 0
      %p461 = por %p459, %p460
      %p462 = scmp.ne.s32.totalorder %s450, %s451
      %p463 = scmp.eq.s32.totalorder %s33, 3
      %p464 = por %p462, %p463
      %p466 = scmp.ne.s32.totalorder %s451, %s465
      %p467 = scmp.eq.s32.totalorder %s33, 0
      %p468 = por %p466, %p467
      %s470 = sadd.s32 %s469, 1
      %p473 = scmp.eq.s32.totalorder %s27, 3
      %p474 = scmp.ne.s32.totalorder %s469, %s471
      %p475 = scmp.eq.s32.totalorder %s27, 0
      %p476 = por %p474, %p475
      %p477 = scmp.ne.s32.totalorder %s469, %s471
      %p478 = scmp.eq.s32.totalorder %s32, 3
      %p479 = por %p477, %p478
      %p480 = scmp.ne.s32.totalorder %s471, %s472
      %p481 = scmp.eq.s32.totalorder %s32, 0
      %p482 = por %p480, %p481
      %p483 = scmp.ne.s32.totalorder %s471, %s472
      %p484 = scmp.eq.s32.totalorder %s33, 3
      %p485 = por %p483, %p484
      %p487 = scmp.ne.s32.totalorder %s472, %s486
      %p488 = scmp.eq.s32.totalorder %s33, 0
      %p489 = por %p487, %p488
      %s490 = ssub.s32 %s34, %s46
      %p491 = scmp.eq.s32.totalorder %s490, 0
      %s493 = sadd.s32 %s492, 1
      %s494 = scalar_select %p491, %s492, %s493
      %p497 = pneg %p491
      %p498 = scmp.eq.s32.totalorder %s27, 3
      %p499 = por %p497, %p498
      %p500 = scmp.ne.s32.totalorder %s492, %s495
      %p501 = scmp.eq.s32.totalorder %s27, 0
      %p502 = por %p500, %p501
      %p503 = scmp.ne.s32.totalorder %s492, %s495
      %p504 = scmp.eq.s32.totalorder %s32, 3
      %p505 = por %p503, %p504
      %p506 = scmp.ne.s32.totalorder %s495, %s496
      %p507 = scmp.eq.s32.totalorder %s32, 0
      %p508 = por %p506, %p507
      %p509 = scmp.ne.s32.totalorder %s495, %s496
      %p510 = scmp.eq.s32.totalorder %s33, 3
      %p511 = por %p509, %p510
      %p513 = scmp.ne.s32.totalorder %s496, %s512
      %p514 = scmp.eq.s32.totalorder %s33, 0
      %p515 = por %p513, %p514
      %p516 = scmp.le.s32.totalorder 1, %s27
      %p517 = scmp.lt.s32.totalorder %s27, 5
      %p518 = pnand %p516, %p517
      %p519 = pneg %p518
      // Predicated region
      $region9: #{tpu_custom_call.1} parent=5 // pred_check
        _
      $region10: #{tpu_custom_call.1} parent=5 // pred_check_branch
        %521 = sbr.rel (%p518) target = $region12
      $region11: #{tpu_custom_call.1} parent=5 // pred_region
        %s522 = ssub.s32 %s27, 1
        // Predicated region
        $region13: #{tpu_custom_call.1} parent=11 // pred_check
          %p523 = pneg %p86
        $region14: #{tpu_custom_call.1} parent=11 // pred_check_branch
          %525 = sbr.rel (%p523) target = $region16
        $region15: #{tpu_custom_call.1} parent=11 // pred_region
          _
        $region16: #{tpu_custom_call.1} parent=11 // pred_fallthru
          _
        // Predicated region
        $region17: #{tpu_custom_call.1} parent=11 // pred_check
          %p526 = pneg %p107
        $region18: #{tpu_custom_call.1} parent=11 // pred_check_branch
          %528 = sbr.rel (%p526) target = $region20
        $region19: #{tpu_custom_call.1} parent=11 // pred_region
          _
        $region20: #{tpu_custom_call.1} parent=11 // pred_fallthru
          _
        // Predicated region
        $region21: #{tpu_custom_call.1} parent=11 // pred_check
          %p529 = pneg %p128
        $region22: #{tpu_custom_call.1} parent=11 // pred_check_branch
          %531 = sbr.rel (%p529) target = $region24
        $region23: #{tpu_custom_call.1} parent=11 // pred_region
          _
        $region24: #{tpu_custom_call.1} parent=11 // pred_fallthru
          _
        // Predicated region
        $region25: #{tpu_custom_call.1} parent=11 // pred_check
          %p532 = pneg %p461
        $region26: #{tpu_custom_call.1} parent=11 // pred_check_branch
          %534 = sbr.rel (%p532) target = $region28
        $region27: #{tpu_custom_call.1} parent=11 // pred_region
          _
        $region28: #{tpu_custom_call.1} parent=11 // pred_fallthru
          _
        // Predicated region
        $region29: #{tpu_custom_call.1} parent=11 // pred_check
          %p535 = pneg %p482
        $region30: #{tpu_custom_call.1} parent=11 // pred_check_branch
          %537 = sbr.rel (%p535) target = $region32
        $region31: #{tpu_custom_call.1} parent=11 // pred_region
          _
        $region32: #{tpu_custom_call.1} parent=11 // pred_fallthru
          _
      $region12: #{tpu_custom_call.1} parent=5 // pred_fallthru
        _
      %p538 = scmp.lt.s32.totalorder %s27, 4
      // Predicated region
      $region33: #{tpu_custom_call.1} parent=5 // pred_check
        %p539 = pneg %p538
      $region34: #{tpu_custom_call.1} parent=5 // pred_check_branch
        %541 = sbr.rel (%p539) target = $region36
      $region35: #{tpu_custom_call.1} parent=5 // pred_region
        // Predicated region
        $region37: #{tpu_custom_call.1} parent=35 // pred_check
          %p542 = pneg %p59
        $region38: #{tpu_custom_call.1} parent=35 // pred_check_branch
          %544 = sbr.rel (%p542) target = $region40
        $region39: #{tpu_custom_call.1} parent=35 // pred_region
          %p545 = scmp.lt.s32.totalorder %s34, 1
          %s546 = scalar_select %p545, %s34, 1
          %s547 = smul.addr %s546, 8
          %s548 = scalar_lea.vmem %s0, %s547
        $region40: #{tpu_custom_call.1} parent=35 // pred_fallthru
          _
        // Predicated region
        $region41: #{tpu_custom_call.1} parent=35 // pred_check
          %p549 = pneg %p148
        $region42: #{tpu_custom_call.1} parent=35 // pred_check_branch
          %551 = sbr.rel (%p549) target = $region44
        $region43: #{tpu_custom_call.1} parent=35 // pred_region
          %p552 = scmp.lt.s32.totalorder %s35, 1
          %s553 = scalar_select %p552, %s35, 1
          %s554 = smul.addr %s553, 48
          %s555 = smul.addr %s554, 4
          %s556 = scalar_lea.vmem %s4, %s555
        $region44: #{tpu_custom_call.1} parent=35 // pred_fallthru
          _
        // Predicated region
        $region45: #{tpu_custom_call.1} parent=35 // pred_check
          %p557 = pneg %p174
        $region46: #{tpu_custom_call.1} parent=35 // pred_check_branch
          %559 = sbr.rel (%p557) target = $region48
        $region47: #{tpu_custom_call.1} parent=35 // pred_region
          %p560 = scmp.lt.s32.totalorder %s35, 1
          %s561 = scalar_select %p560, %s35, 1
          %s562 = smul.addr %s561, 12
          %s563 = scalar_lea.vmem %s5, %s562
        $region48: #{tpu_custom_call.1} parent=35 // pred_fallthru
          _
        // Predicated region
        $region49: #{tpu_custom_call.1} parent=35 // pred_check
          %p564 = pneg %p200
        $region50: #{tpu_custom_call.1} parent=35 // pred_check_branch
          %566 = sbr.rel (%p564) target = $region52
        $region51: #{tpu_custom_call.1} parent=35 // pred_region
          %p567 = scmp.lt.s32.totalorder %s35, 1
          %s568 = scalar_select %p567, %s35, 1
          %s569 = smul.addr %s568, 4
          %s570 = smul.addr %s569, 4
          %s571 = scalar_lea.vmem %s6, %s570
        $region52: #{tpu_custom_call.1} parent=35 // pred_fallthru
          _
        // Predicated region
        $region53: #{tpu_custom_call.1} parent=35 // pred_check
          %p572 = pneg %p226
        $region54: #{tpu_custom_call.1} parent=35 // pred_check_branch
          %574 = sbr.rel (%p572) target = $region56
        $region55: #{tpu_custom_call.1} parent=35 // pred_region
          %p575 = scmp.lt.s32.totalorder %s35, 1
          %s576 = scalar_select %p575, %s35, 1
          %s577 = scalar_lea.vmem %s7, %s576
        $region56: #{tpu_custom_call.1} parent=35 // pred_fallthru
          _
        // Predicated region
        $region57: #{tpu_custom_call.1} parent=35 // pred_check
          %p578 = pneg %p252
        $region58: #{tpu_custom_call.1} parent=35 // pred_check_branch
          %580 = sbr.rel (%p578) target = $region60
        $region59: #{tpu_custom_call.1} parent=35 // pred_region
          %p581 = scmp.lt.s32.totalorder %s35, 1
          %s582 = scalar_select %p581, %s35, 1
          %s583 = scalar_lea.vmem %s8, %s582
        $region60: #{tpu_custom_call.1} parent=35 // pred_fallthru
          _
        // Predicated region
        $region61: #{tpu_custom_call.1} parent=35 // pred_check
          %p584 = pneg %p278
        $region62: #{tpu_custom_call.1} parent=35 // pred_check_branch
          %586 = sbr.rel (%p584) target = $region64
        $region63: #{tpu_custom_call.1} parent=35 // pred_region
          %p587 = scmp.lt.s32.totalorder %s35, 1
          %s588 = scalar_select %p587, %s35, 1
          %s589 = scalar_lea.vmem %s9, %s588
        $region64: #{tpu_custom_call.1} parent=35 // pred_fallthru
          _
        // Predicated region
        $region65: #{tpu_custom_call.1} parent=35 // pred_check
          %p590 = pneg %p304
        $region66: #{tpu_custom_call.1} parent=35 // pred_check_branch
          %592 = sbr.rel (%p590) target = $region68
        $region67: #{tpu_custom_call.1} parent=35 // pred_region
          %p593 = scmp.lt.s32.totalorder %s35, 1
          %s594 = scalar_select %p593, %s35, 1
          %s595 = smul.addr %s594, 64
          %s596 = smul.addr %s595, 4
          %s597 = scalar_lea.vmem %s10, %s596
        $region68: #{tpu_custom_call.1} parent=35 // pred_fallthru
          _
        // Predicated region
        $region69: #{tpu_custom_call.1} parent=35 // pred_check
          %p598 = pneg %p330
        $region70: #{tpu_custom_call.1} parent=35 // pred_check_branch
          %600 = sbr.rel (%p598) target = $region72
        $region71: #{tpu_custom_call.1} parent=35 // pred_region
          %p601 = scmp.lt.s32.totalorder %s35, 1
          %s602 = scalar_select %p601, %s35, 1
          %s603 = smul.addr %s602, 16
          %s604 = scalar_lea.vmem %s11, %s603
        $region72: #{tpu_custom_call.1} parent=35 // pred_fallthru
          _
        // Predicated region
        $region73: #{tpu_custom_call.1} parent=35 // pred_check
          %p605 = pneg %p356
        $region74: #{tpu_custom_call.1} parent=35 // pred_check_branch
          %607 = sbr.rel (%p605) target = $region76
        $region75: #{tpu_custom_call.1} parent=35 // pred_region
          %p608 = scmp.lt.s32.totalorder %s35, 1
          %s609 = scalar_select %p608, %s35, 1
          %s610 = smul.addr %s609, 256
          %s611 = smul.addr %s610, 4
          %s612 = scalar_lea.vmem %s12, %s611
        $region76: #{tpu_custom_call.1} parent=35 // pred_fallthru
          _
        // Predicated region
        $region77: #{tpu_custom_call.1} parent=35 // pred_check
          %p613 = pneg %p382
        $region78: #{tpu_custom_call.1} parent=35 // pred_check_branch
          %615 = sbr.rel (%p613) target = $region80
        $region79: #{tpu_custom_call.1} parent=35 // pred_region
          %p616 = scmp.lt.s32.totalorder %s35, 1
          %s617 = scalar_select %p616, %s35, 1
          %s618 = scalar_lea.vmem %s13, %s617
        $region80: #{tpu_custom_call.1} parent=35 // pred_fallthru
          _
        // Predicated region
        $region81: #{tpu_custom_call.1} parent=35 // pred_check
          %p619 = pneg %p408
        $region82: #{tpu_custom_call.1} parent=35 // pred_check_branch
          %621 = sbr.rel (%p619) target = $region84
        $region83: #{tpu_custom_call.1} parent=35 // pred_region
          %p622 = scmp.lt.s32.totalorder %s35, 1
          %s623 = scalar_select %p622, %s35, 1
          %s624 = scalar_lea.vmem %s14, %s623
        $region84: #{tpu_custom_call.1} parent=35 // pred_fallthru
          _
        // Predicated region
        $region85: #{tpu_custom_call.1} parent=35 // pred_check
          %p625 = pneg %p434
        $region86: #{tpu_custom_call.1} parent=35 // pred_check_branch
          %627 = sbr.rel (%p625) target = $region88
        $region87: #{tpu_custom_call.1} parent=35 // pred_region
          %p628 = scmp.lt.s32.totalorder %s35, 1
          %s629 = scalar_select %p628, %s35, 1
          %s630 = scalar_lea.vmem %s15, %s629
        $region88: #{tpu_custom_call.1} parent=35 // pred_fallthru
          _
      $region36: #{tpu_custom_call.1} parent=5 // pred_fallthru
        _
      %p631 = scmp.le.s32.totalorder 1, %s27
      %p632 = scmp.lt.s32.totalorder %s27, 5
      %p633 = pnand %p631, %p632
      %p634 = pneg %p633
      // Predicated region
      $region89: #{tpu_custom_call.1} parent=5 // pred_check
        _
      $region90: #{tpu_custom_call.1} parent=5 // pred_check_branch
        %636 = sbr.rel (%p633) target = $region92
      $region91: #{tpu_custom_call.1} parent=5 // pred_region
        %s637 = ssub.s32 %s27, 1
        %p638 = scmp.lt.s32.totalorder %s36, 1
        %s639 = scalar_select %p638, %s36, 1
        %s640 = smul.addr %s639, 8
        %s641 = scalar_lea.vmem %s0, %s640
        %p642 = pneg %p65
        %p643 = pneg %p62
        %p644 = pneg %p86
        %p645 = pneg %p83
        %p646 = pneg %p107
        %p647 = pneg %p104
        %p648 = pneg %p128
        %p649 = pneg %p125
        %p650 = scmp.lt.s32.totalorder %s37, 1
        %s651 = scalar_select %p650, %s37, 1
        %s652 = smul.addr %s651, 48
        %s653 = smul.addr %s652, 4
        %s654 = scalar_lea.vmem %s4, %s653
        %p655 = pneg %p154
        %p656 = pneg %p151
        %p657 = scmp.lt.s32.totalorder %s37, 1
        %s658 = scalar_select %p657, %s37, 1
        %s659 = smul.addr %s658, 12
        %s660 = scalar_lea.vmem %s5, %s659
        %p661 = pneg %p180
        %p662 = pneg %p177
        %p663 = scmp.lt.s32.totalorder %s37, 1
        %s664 = scalar_select %p663, %s37, 1
        %s665 = smul.addr %s664, 4
        %s666 = smul.addr %s665, 4
        %s667 = scalar_lea.vmem %s6, %s666
        %p668 = pneg %p206
        %p669 = pneg %p203
        %p670 = scmp.lt.s32.totalorder %s37, 1
        %s671 = scalar_select %p670, %s37, 1
        %s672 = scalar_lea.vmem %s7, %s671
        %p673 = pneg %p232
        %p674 = pneg %p229
        %p675 = scmp.lt.s32.totalorder %s37, 1
        %s676 = scalar_select %p675, %s37, 1
        %s677 = scalar_lea.vmem %s8, %s676
        %p678 = pneg %p258
        %p679 = pneg %p255
        %p680 = scmp.lt.s32.totalorder %s37, 1
        %s681 = scalar_select %p680, %s37, 1
        %s682 = scalar_lea.vmem %s9, %s681
        %p683 = pneg %p284
        %p684 = pneg %p281
        %p685 = scmp.lt.s32.totalorder %s37, 1
        %s686 = scalar_select %p685, %s37, 1
        %s687 = smul.addr %s686, 64
        %s688 = smul.addr %s687, 4
        %s689 = scalar_lea.vmem %s10, %s688
        %p690 = pneg %p310
        %p691 = pneg %p307
        %p692 = scmp.lt.s32.totalorder %s37, 1
        %s693 = scalar_select %p692, %s37, 1
        %s694 = smul.addr %s693, 16
        %s695 = scalar_lea.vmem %s11, %s694
        %p696 = pneg %p336
        %p697 = pneg %p333
        %p698 = scmp.lt.s32.totalorder %s37, 1
        %s699 = scalar_select %p698, %s37, 1
        %s700 = smul.addr %s699, 256
        %s701 = smul.addr %s700, 4
        %s702 = scalar_lea.vmem %s12, %s701
        %p703 = pneg %p362
        %p704 = pneg %p359
        %p705 = scmp.lt.s32.totalorder %s37, 1
        %s706 = scalar_select %p705, %s37, 1
        %s707 = scalar_lea.vmem %s13, %s706
        %p708 = pneg %p388
        %p709 = pneg %p385
        %p710 = scmp.lt.s32.totalorder %s37, 1
        %s711 = scalar_select %p710, %s37, 1
        %s712 = scalar_lea.vmem %s14, %s711
        %p713 = pneg %p414
        %p714 = pneg %p411
        %p715 = scmp.lt.s32.totalorder %s37, 1
        %s716 = scalar_select %p715, %s37, 1
        %s717 = scalar_lea.vmem %s15, %s716
        %p718 = pneg %p440
        %p719 = pneg %p437
        %p720 = pneg %p461
        %p721 = pneg %p458
        %p722 = pneg %p482
        %p723 = pneg %p479
        %p724 = pneg %p508
        %p725 = pneg %p505
        %s726 = sand.u32 %s495, 1
        %s727 = scalar_lea.sflag [#allocation4], %s726
        %s728 = sand.u32 %s495, 1
        %s729 = scalar_lea.vmem [#allocation3], %s728
        %p730 = scmp.lt.s32.totalorder %s36, 1
        %s731 = scalar_select %p730, %s36, 1
        %s732 = smul.addr %s731, 8
        %s733 = scalar_lea.vmem %s0, %s732
        %p734 = scmp.lt.s32.totalorder %s37, 1
        %s735 = scalar_select %p734, %s37, 1
        %s736 = smul.addr %s735, 48
        %s737 = smul.addr %s736, 4
        %s738 = scalar_lea.vmem %s4, %s737
        %p739 = scmp.lt.s32.totalorder %s37, 1
        %s740 = scalar_select %p739, %s37, 1
        %s741 = smul.addr %s740, 12
        %s742 = scalar_lea.vmem %s5, %s741
        %p743 = scmp.lt.s32.totalorder %s37, 1
        %s744 = scalar_select %p743, %s37, 1
        %s745 = smul.addr %s744, 4
        %s746 = smul.addr %s745, 4
        %s747 = scalar_lea.vmem %s6, %s746
        %p748 = scmp.lt.s32.totalorder %s37, 1
        %s749 = scalar_select %p748, %s37, 1
        %s750 = scalar_lea.vmem %s7, %s749
        %p751 = scmp.lt.s32.totalorder %s37, 1
        %s752 = scalar_select %p751, %s37, 1
        %s753 = scalar_lea.vmem %s8, %s752
        %p754 = scmp.lt.s32.totalorder %s37, 1
        %s755 = scalar_select %p754, %s37, 1
        %s756 = scalar_lea.vmem %s9, %s755
        %p757 = scmp.lt.s32.totalorder %s37, 1
        %s758 = scalar_select %p757, %s37, 1
        %s759 = smul.addr %s758, 64
        %s760 = smul.addr %s759, 4
        %s761 = scalar_lea.vmem %s10, %s760
        %p762 = scmp.lt.s32.totalorder %s37, 1
        %s763 = scalar_select %p762, %s37, 1
        %s764 = smul.addr %s763, 16
        %s765 = scalar_lea.vmem %s11, %s764
        %p766 = scmp.lt.s32.totalorder %s37, 1
        %s767 = scalar_select %p766, %s37, 1
        %s768 = smul.addr %s767, 256
        %s769 = smul.addr %s768, 4
        %s770 = scalar_lea.vmem %s12, %s769
        %p771 = scmp.lt.s32.totalorder %s37, 1
        %s772 = scalar_select %p771, %s37, 1
        %s773 = scalar_lea.vmem %s13, %s772
        %p774 = scmp.lt.s32.totalorder %s37, 1
        %s775 = scalar_select %p774, %s37, 1
        %s776 = scalar_lea.vmem %s14, %s775
        %p777 = scmp.lt.s32.totalorder %s37, 1
        %s778 = scalar_select %p777, %s37, 1
        %s779 = scalar_lea.vmem %s15, %s778
        %p781 = scmp.eq.s32.totalorder %s37, 0
        // Predicated region
        $region93: #{tpu_custom_call.1} parent=91 // pred_check
          %p782 = pneg %p781
        $region94: #{tpu_custom_call.1} parent=91 // pred_check_branch
          %784 = sbr.rel (%p782) target = $region96
        $region95: #{tpu_custom_call.1} parent=91 // pred_region
          %v785 = vld [vmem:[%s733] sm:$0xff]
          %v786 = vld [vmem:[%s2] sm:$0xf]
          %v787 = vld [vmem:[%s3] sm:$0x1]
          %v789 = vperm.slane %v787, 0
          %vm791 = vcmask 31744
          %v793 = vsel %vm791, %v785, 0
          %vm795 = vcmask 1043456
          %v797 = vsel %vm795, %v786, 0
          %799 = vmatpush.msra.mxu0 0.0
          %800 = vmatpush.msra.mxu0 0.0
          %801 = vmatpush.msra.mxu0 0.0
          %802 = vmatpush.msra.mxu0 0.0
          %803 = vmatpush.msra.mxu0 0.0
          %804 = vmatpush.msra.mxu0 0.0
          %805 = vmatpush.msra.mxu0 0.0
          %806 = vmatpush.msra.mxu0 0.0
          %807 = vmatpush.msra.mxu0 0.0
          %808 = vmatpush.msra.mxu0 0.0
          %809 = vmatpush.msra.mxu0 0.0
          %810 = vmatpush.msra.mxu0 0.0
          %811 = vmatpush.msra.mxu0 0.0
          %812 = vmatpush.msra.mxu0 0.0
          %813 = vmatpush.msra.mxu0 0.0
          %814 = vmatpush.msra.mxu0 %v797
          %815 = vmatmul.f32.gmra.mxu0 %v793
          %v816 = vpop.f32.mrf.mxu0
          %v817 = vadd.f32 %v789, %v816
          %818 = vdwg.mxu0
          %v819 = vld [vmem:[%s1] sm:$0xff]
          %v820 = vadd.f32 %v817, %v819
          %vm821 = vcmask 261120
          %822 = vst.msk [vmem:[#allocation2] sm:$0xff] %vm821, %v820
        $region96: #{tpu_custom_call.1} parent=91 // pred_fallthru
          _
        %v823 = vld [vmem:[#allocation2] sm:$0xff]
        %v824 = vpack.c.bf16 %v823, %v823
        %v825 = vld [vmem:[%s738] sm:$0xf]
        %v826 = vld [vmem:[%s738 + $0x4] sm:$0xf]
        %v827 = vld [vmem:[%s738 + $0x8] sm:$0xf]
        %v828 = vld [vmem:[%s738 + $0xc] sm:$0xf]
        %v829 = vld [vmem:[%s738 + $0x10] sm:$0xf]
        %v830 = vld [vmem:[%s738 + $0x14] sm:$0xf]
        %v831 = vld [vmem:[%s738 + $0x18] sm:$0xf]
        %v832 = vld [vmem:[%s738 + $0x1c] sm:$0xf]
        %v833 = vld [vmem:[%s738 + $0x20] sm:$0xf]
        %v834 = vld [vmem:[%s738 + $0x24] sm:$0xf]
        %v835 = vld [vmem:[%s738 + $0x28] sm:$0xf]
        %v836 = vld [vmem:[%s738 + $0x2c] sm:$0xf]
        %v837 = vld [vmem:[%s738 + $0x30] sm:$0xf]
        %v838 = vld [vmem:[%s738 + $0x34] sm:$0xf]
        %v839 = vld [vmem:[%s738 + $0x38] sm:$0xf]
        %v840 = vld [vmem:[%s738 + $0x3c] sm:$0xf]
        %v841 = vld [vmem:[%s738 + $0x40] sm:$0xf]
        %v842 = vld [vmem:[%s738 + $0x44] sm:$0xf]
        %v843 = vld [vmem:[%s738 + $0x48] sm:$0xf]
        %v844 = vld [vmem:[%s738 + $0x4c] sm:$0xf]
        %v845 = vld [vmem:[%s738 + $0x50] sm:$0xf]
        %v846 = vld [vmem:[%s738 + $0x54] sm:$0xf]
        %v847 = vld [vmem:[%s738 + $0x58] sm:$0xf]
        %v848 = vld [vmem:[%s738 + $0x5c] sm:$0xf]
        %v849 = vld [vmem:[%s738 + $0x60] sm:$0xf]
        %v850 = vld [vmem:[%s738 + $0x64] sm:$0xf]
        %v851 = vld [vmem:[%s738 + $0x68] sm:$0xf]
        %v852 = vld [vmem:[%s738 + $0x6c] sm:$0xf]
        %v853 = vld [vmem:[%s738 + $0x70] sm:$0xf]
        %v854 = vld [vmem:[%s738 + $0x74] sm:$0xf]
        %v855 = vld [vmem:[%s738 + $0x78] sm:$0xf]
        %v856 = vld [vmem:[%s738 + $0x7c] sm:$0xf]
        %v857 = vld [vmem:[%s738 + $0x80] sm:$0xf]
        %v858 = vld [vmem:[%s738 + $0x84] sm:$0xf]
        %v859 = vld [vmem:[%s738 + $0x88] sm:$0xf]
        %v860 = vld [vmem:[%s738 + $0x8c] sm:$0xf]
        %v861 = vld [vmem:[%s738 + $0x90] sm:$0xf]
        %v862 = vld [vmem:[%s738 + $0x94] sm:$0xf]
        %v863 = vld [vmem:[%s738 + $0x98] sm:$0xf]
        %v864 = vld [vmem:[%s738 + $0x9c] sm:$0xf]
        %v865 = vld [vmem:[%s738 + $0xa0] sm:$0xf]
        %v866 = vld [vmem:[%s738 + $0xa4] sm:$0xf]
        %v867 = vld [vmem:[%s738 + $0xa8] sm:$0xf]
        %v868 = vld [vmem:[%s738 + $0xac] sm:$0xf]
        %v869 = vld [vmem:[%s738 + $0xb0] sm:$0xf]
        %v870 = vld [vmem:[%s738 + $0xb4] sm:$0xf]
        %v871 = vld [vmem:[%s738 + $0xb8] sm:$0xf]
        %v872 = vld [vmem:[%s738 + $0xbc] sm:$0xf]
        %v873 = vld [vmem:[%s742] sm:$0x1]
        %v874 = vld [vmem:[%s742 + $0x1] sm:$0x1]
        %v875 = vld [vmem:[%s742 + $0x2] sm:$0x1]
        %v876 = vld [vmem:[%s742 + $0x3] sm:$0x1]
        %v877 = vld [vmem:[%s742 + $0x4] sm:$0x1]
        %v878 = vld [vmem:[%s742 + $0x5] sm:$0x1]
        %v879 = vld [vmem:[%s742 + $0x6] sm:$0x1]
        %v880 = vld [vmem:[%s742 + $0x7] sm:$0x1]
        %v881 = vld [vmem:[%s742 + $0x8] sm:$0x1]
        %v882 = vld [vmem:[%s742 + $0x9] sm:$0x1]
        %v883 = vld [vmem:[%s742 + $0xa] sm:$0x1]
        %v884 = vld [vmem:[%s742 + $0xb] sm:$0x1]
        %v897 = vperm.slane %v873, 0
        %v898 = vperm.slane %v874, 0
        %v899 = vperm.slane %v875, 0
        %v900 = vperm.slane %v876, 0
        %v901 = vperm.slane %v877, 0
        %v902 = vperm.slane %v878, 0
        %v903 = vperm.slane %v879, 0
        %v904 = vperm.slane %v880, 0
        %v905 = vperm.slane %v881, 0
        %v906 = vperm.slane %v882, 0
        %v907 = vperm.slane %v883, 0
        %v908 = vperm.slane %v884, 0
        %v925 = vunpack.c.l.b16 %v825
        %v926 = vunpack.c.l.b16 %v826
        %v927 = vunpack.c.l.b16 %v827
        %v928 = vunpack.c.l.b16 %v828
        %v929 = vpack.c.b16 %v926, %v925
        %v930 = vpack.c.b16 %v928, %v927
        %vm933 = vcmask 261120
        %v935 = vsel %vm933, %v824, 0
        %937 = vmatpush.bf16.msra.mxu0 0
        %938 = vmatpush.bf16.msra.mxu0 0
        %939 = vmatpush.bf16.msra.mxu0 0
        %940 = vmatpush.bf16.msra.mxu0 0
        %941 = vmatpush.bf16.msra.mxu0 0
        %942 = vmatpush.bf16.msra.mxu0 0
        %943 = vmatpush.bf16.msra.mxu0 %v930
        %944 = vmatpush.bf16.msra.mxu0 %v929
        %945 = vmatmul.bf16.gmra.mxu0 %v935
        %v946 = vpop.f32.mrf.mxu0
        %v947 = vadd.f32 %v897, %v946
        %v948 = vpop.f32.mrf.mxu0
        %949 = vdwg.mxu0
        %v954 = vunpack.c.l.b16 %v829
        %v955 = vunpack.c.l.b16 %v830
        %v956 = vunpack.c.l.b16 %v831
        %v957 = vunpack.c.l.b16 %v832
        %v958 = vpack.c.b16 %v955, %v954
        %v959 = vpack.c.b16 %v957, %v956
        %962 = vmatpush.bf16.msra.mxu0 0
        %963 = vmatpush.bf16.msra.mxu0 0
        %964 = vmatpush.bf16.msra.mxu0 0
        %965 = vmatpush.bf16.msra.mxu0 0
        %966 = vmatpush.bf16.msra.mxu0 0
        %967 = vmatpush.bf16.msra.mxu0 0
        %968 = vmatpush.bf16.msra.mxu0 %v959
        %969 = vmatpush.bf16.msra.mxu0 %v958
        %970 = vmatmul.bf16.gmra.mxu0 %v935
        %v971 = vpop.f32.mrf.mxu0
        %v972 = vadd.f32 %v898, %v971
        %v973 = vpop.f32.mrf.mxu0
        %974 = vdwg.mxu0
        %v979 = vunpack.c.l.b16 %v833
        %v980 = vunpack.c.l.b16 %v834
        %v981 = vunpack.c.l.b16 %v835
        %v982 = vunpack.c.l.b16 %v836
        %v983 = vpack.c.b16 %v980, %v979
        %v984 = vpack.c.b16 %v982, %v981
        %987 = vmatpush.bf16.msra.mxu0 0
        %988 = vmatpush.bf16.msra.mxu0 0
        %989 = vmatpush.bf16.msra.mxu0 0
        %990 = vmatpush.bf16.msra.mxu0 0
        %991 = vmatpush.bf16.msra.mxu0 0
        %992 = vmatpush.bf16.msra.mxu0 0
        %993 = vmatpush.bf16.msra.mxu0 %v984
        %994 = vmatpush.bf16.msra.mxu0 %v983
        %995 = vmatmul.bf16.gmra.mxu0 %v935
        %v996 = vpop.f32.mrf.mxu0
        %v997 = vadd.f32 %v899, %v996
        %v998 = vpop.f32.mrf.mxu0
        %999 = vdwg.mxu0
        %v1004 = vunpack.c.l.b16 %v837
        %v1005 = vunpack.c.l.b16 %v838
        %v1006 = vunpack.c.l.b16 %v839
        %v1007 = vunpack.c.l.b16 %v840
        %v1008 = vpack.c.b16 %v1005, %v1004
        %v1009 = vpack.c.b16 %v1007, %v1006
        %1012 = vmatpush.bf16.msra.mxu0 0
        %1013 = vmatpush.bf16.msra.mxu0 0
        %1014 = vmatpush.bf16.msra.mxu0 0
        %1015 = vmatpush.bf16.msra.mxu0 0
        %1016 = vmatpush.bf16.msra.mxu0 0
        %1017 = vmatpush.bf16.msra.mxu0 0
        %1018 = vmatpush.bf16.msra.mxu0 %v1009
        %1019 = vmatpush.bf16.msra.mxu0 %v1008
        %1020 = vmatmul.bf16.gmra.mxu0 %v935
        %v1021 = vpop.f32.mrf.mxu0
        %v1022 = vadd.f32 %v900, %v1021
        %v1023 = vpop.f32.mrf.mxu0
        %1024 = vdwg.mxu0
        %v1029 = vunpack.c.l.b16 %v841
        %v1030 = vunpack.c.l.b16 %v842
        %v1031 = vunpack.c.l.b16 %v843
        %v1032 = vunpack.c.l.b16 %v844
        %v1033 = vpack.c.b16 %v1030, %v1029
        %v1034 = vpack.c.b16 %v1032, %v1031
        %1037 = vmatpush.bf16.msra.mxu0 0
        %1038 = vmatpush.bf16.msra.mxu0 0
        %1039 = vmatpush.bf16.msra.mxu0 0
        %1040 = vmatpush.bf16.msra.mxu0 0
        %1041 = vmatpush.bf16.msra.mxu0 0
        %1042 = vmatpush.bf16.msra.mxu0 0
        %1043 = vmatpush.bf16.msra.mxu0 %v1034
        %1044 = vmatpush.bf16.msra.mxu0 %v1033
        %1045 = vmatmul.bf16.gmra.mxu0 %v935
        %v1046 = vpop.f32.mrf.mxu0
        %v1047 = vadd.f32 %v901, %v1046
        %v1048 = vpop.f32.mrf.mxu0
        %1049 = vdwg.mxu0
        %v1054 = vunpack.c.l.b16 %v845
        %v1055 = vunpack.c.l.b16 %v846
        %v1056 = vunpack.c.l.b16 %v847
        %v1057 = vunpack.c.l.b16 %v848
        %v1058 = vpack.c.b16 %v1055, %v1054
        %v1059 = vpack.c.b16 %v1057, %v1056
        %1062 = vmatpush.bf16.msra.mxu0 0
        %1063 = vmatpush.bf16.msra.mxu0 0
        %1064 = vmatpush.bf16.msra.mxu0 0
        %1065 = vmatpush.bf16.msra.mxu0 0
        %1066 = vmatpush.bf16.msra.mxu0 0
        %1067 = vmatpush.bf16.msra.mxu0 0
        %1068 = vmatpush.bf16.msra.mxu0 %v1059
        %1069 = vmatpush.bf16.msra.mxu0 %v1058
        %1070 = vmatmul.bf16.gmra.mxu0 %v935
        %v1071 = vpop.f32.mrf.mxu0
        %v1072 = vadd.f32 %v902, %v1071
        %v1073 = vpop.f32.mrf.mxu0
        %1074 = vdwg.mxu0
        %v1079 = vunpack.c.l.b16 %v849
        %v1080 = vunpack.c.l.b16 %v850
        %v1081 = vunpack.c.l.b16 %v851
        %v1082 = vunpack.c.l.b16 %v852
        %v1083 = vpack.c.b16 %v1080, %v1079
        %v1084 = vpack.c.b16 %v1082, %v1081
        %1087 = vmatpush.bf16.msra.mxu0 0
        %1088 = vmatpush.bf16.msra.mxu0 0
        %1089 = vmatpush.bf16.msra.mxu0 0
        %1090 = vmatpush.bf16.msra.mxu0 0
        %1091 = vmatpush.bf16.msra.mxu0 0
        %1092 = vmatpush.bf16.msra.mxu0 0
        %1093 = vmatpush.bf16.msra.mxu0 %v1084
        %1094 = vmatpush.bf16.msra.mxu0 %v1083
        %1095 = vmatmul.bf16.gmra.mxu0 %v935
        %v1096 = vpop.f32.mrf.mxu0
        %v1097 = vadd.f32 %v903, %v1096
        %v1098 = vpop.f32.mrf.mxu0
        %1099 = vdwg.mxu0
        %v1104 = vunpack.c.l.b16 %v853
        %v1105 = vunpack.c.l.b16 %v854
        %v1106 = vunpack.c.l.b16 %v855
        %v1107 = vunpack.c.l.b16 %v856
        %v1108 = vpack.c.b16 %v1105, %v1104
        %v1109 = vpack.c.b16 %v1107, %v1106
        %1112 = vmatpush.bf16.msra.mxu0 0
        %1113 = vmatpush.bf16.msra.mxu0 0
        %1114 = vmatpush.bf16.msra.mxu0 0
        %1115 = vmatpush.bf16.msra.mxu0 0
        %1116 = vmatpush.bf16.msra.mxu0 0
        %1117 = vmatpush.bf16.msra.mxu0 0
        %1118 = vmatpush.bf16.msra.mxu0 %v1109
        %1119 = vmatpush.bf16.msra.mxu0 %v1108
        %1120 = vmatmul.bf16.gmra.mxu0 %v935
        %v1121 = vpop.f32.mrf.mxu0
        %v1122 = vadd.f32 %v904, %v1121
        %v1123 = vpop.f32.mrf.mxu0
        %1124 = vdwg.mxu0
        %v1129 = vunpack.c.l.b16 %v857
        %v1130 = vunpack.c.l.b16 %v858
        %v1131 = vunpack.c.l.b16 %v859
        %v1132 = vunpack.c.l.b16 %v860
        %v1133 = vpack.c.b16 %v1130, %v1129
        %v1134 = vpack.c.b16 %v1132, %v1131
        %1137 = vmatpush.bf16.msra.mxu0 0
        %1138 = vmatpush.bf16.msra.mxu0 0
        %1139 = vmatpush.bf16.msra.mxu0 0
        %1140 = vmatpush.bf16.msra.mxu0 0
        %1141 = vmatpush.bf16.msra.mxu0 0
        %1142 = vmatpush.bf16.msra.mxu0 0
        %1143 = vmatpush.bf16.msra.mxu0 %v1134
        %1144 = vmatpush.bf16.msra.mxu0 %v1133
        %1145 = vmatmul.bf16.gmra.mxu0 %v935
        %v1146 = vpop.f32.mrf.mxu0
        %v1147 = vadd.f32 %v905, %v1146
        %v1148 = vpop.f32.mrf.mxu0
        %1149 = vdwg.mxu0
        %v1154 = vunpack.c.l.b16 %v861
        %v1155 = vunpack.c.l.b16 %v862
        %v1156 = vunpack.c.l.b16 %v863
        %v1157 = vunpack.c.l.b16 %v864
        %v1158 = vpack.c.b16 %v1155, %v1154
        %v1159 = vpack.c.b16 %v1157, %v1156
        %1162 = vmatpush.bf16.msra.mxu0 0
        %1163 = vmatpush.bf16.msra.mxu0 0
        %1164 = vmatpush.bf16.msra.mxu0 0
        %1165 = vmatpush.bf16.msra.mxu0 0
        %1166 = vmatpush.bf16.msra.mxu0 0
        %1167 = vmatpush.bf16.msra.mxu0 0
        %1168 = vmatpush.bf16.msra.mxu0 %v1159
        %1169 = vmatpush.bf16.msra.mxu0 %v1158
        %1170 = vmatmul.bf16.gmra.mxu0 %v935
        %v1171 = vpop.f32.mrf.mxu0
        %v1172 = vadd.f32 %v906, %v1171
        %v1173 = vpop.f32.mrf.mxu0
        %1174 = vdwg.mxu0
        %v1179 = vunpack.c.l.b16 %v865
        %v1180 = vunpack.c.l.b16 %v866
        %v1181 = vunpack.c.l.b16 %v867
        %v1182 = vunpack.c.l.b16 %v868
        %v1183 = vpack.c.b16 %v1180, %v1179
        %v1184 = vpack.c.b16 %v1182, %v1181
        %1187 = vmatpush.bf16.msra.mxu0 0
        %1188 = vmatpush.bf16.msra.mxu0 0
        %1189 = vmatpush.bf16.msra.mxu0 0
        %1190 = vmatpush.bf16.msra.mxu0 0
        %1191 = vmatpush.bf16.msra.mxu0 0
        %1192 = vmatpush.bf16.msra.mxu0 0
        %1193 = vmatpush.bf16.msra.mxu0 %v1184
        %1194 = vmatpush.bf16.msra.mxu0 %v1183
        %1195 = vmatmul.bf16.gmra.mxu0 %v935
        %v1196 = vpop.f32.mrf.mxu0
        %v1197 = vadd.f32 %v907, %v1196
        %v1198 = vpop.f32.mrf.mxu0
        %1199 = vdwg.mxu0
        %v1204 = vunpack.c.l.b16 %v869
        %v1205 = vunpack.c.l.b16 %v870
        %v1206 = vunpack.c.l.b16 %v871
        %v1207 = vunpack.c.l.b16 %v872
        %v1208 = vpack.c.b16 %v1205, %v1204
        %v1209 = vpack.c.b16 %v1207, %v1206
        %1212 = vmatpush.bf16.msra.mxu0 0
        %1213 = vmatpush.bf16.msra.mxu0 0
        %1214 = vmatpush.bf16.msra.mxu0 0
        %1215 = vmatpush.bf16.msra.mxu0 0
        %1216 = vmatpush.bf16.msra.mxu0 0
        %1217 = vmatpush.bf16.msra.mxu0 0
        %1218 = vmatpush.bf16.msra.mxu0 %v1209
        %1219 = vmatpush.bf16.msra.mxu0 %v1208
        %1220 = vmatmul.bf16.gmra.mxu0 %v935
        %v1221 = vpop.f32.mrf.mxu0
        %v1222 = vadd.f32 %v908, %v1221
        %v1223 = vpop.f32.mrf.mxu0
        %1224 = vdwg.mxu0
        %vm1225 = vcmask 64512
        %v1227 = vsel %vm1225, %v947, 0
        %v1230 = vsel %vm1225, %v1047, 0
        %1232 = vmatpush.xpose.msra.mxu0 0.0
        %1233 = vmatpush.xpose.msra.mxu0 0.0
        %1234 = vmatpush.xpose.msra.mxu0 0.0
        %1235 = vmatpush.xpose.msra.mxu0 0.0
        %1236 = vmatpush.xpose.msra.mxu0 0.0
        %1237 = vmatpush.xpose.msra.mxu0 0.0
        %1238 = vmatpush.xpose.msra.mxu0 0.0
        %1239 = vmatpush.xpose.msra.mxu0 0.0
        %1240 = vmatpush.xpose.msra.mxu0 0.0
        %1241 = vmatpush.xpose.msra.mxu0 0.0
        %1242 = vmatpush.xpose.msra.mxu0 0.0
        %1243 = vmatpush.xpose.msra.mxu0 0.0
        %1244 = vmatpush.xpose.msra.mxu0 0.0
        %1245 = vmatpush.xpose.msra.mxu0 0.0
        %1246 = vmatpush.xpose.msra.mxu0 0.0
        %1247 = vmatpush.xpose.msra.mxu0 %v1230
        %1248 = vmatmul.f32.gmra.mxu0 %v1227
        %v1249 = vpop.f32.mrf.mxu0
        %v1250 = vadd.f32 0.0, %v1249
        %1251 = vdwg.mxu0
        %v1253 = vsel %vm1225, %v972, 0
        %v1256 = vsel %vm1225, %v1072, 0
        %1258 = vmatpush.xpose.msra.mxu0 0.0
        %1259 = vmatpush.xpose.msra.mxu0 0.0
        %1260 = vmatpush.xpose.msra.mxu0 0.0
        %1261 = vmatpush.xpose.msra.mxu0 0.0
        %1262 = vmatpush.xpose.msra.mxu0 0.0
        %1263 = vmatpush.xpose.msra.mxu0 0.0
        %1264 = vmatpush.xpose.msra.mxu0 0.0
        %1265 = vmatpush.xpose.msra.mxu0 0.0
        %1266 = vmatpush.xpose.msra.mxu0 0.0
        %1267 = vmatpush.xpose.msra.mxu0 0.0
        %1268 = vmatpush.xpose.msra.mxu0 0.0
        %1269 = vmatpush.xpose.msra.mxu0 0.0
        %1270 = vmatpush.xpose.msra.mxu0 0.0
        %1271 = vmatpush.xpose.msra.mxu0 0.0
        %1272 = vmatpush.xpose.msra.mxu0 0.0
        %1273 = vmatpush.xpose.msra.mxu0 %v1256
        %1274 = vmatmul.f32.gmra.mxu0 %v1253
        %v1275 = vpop.f32.mrf.mxu0
        %v1276 = vadd.f32 0.0, %v1275
        %1277 = vdwg.mxu0
        %v1279 = vsel %vm1225, %v997, 0
        %v1282 = vsel %vm1225, %v1097, 0
        %1284 = vmatpush.xpose.msra.mxu0 0.0
        %1285 = vmatpush.xpose.msra.mxu0 0.0
        %1286 = vmatpush.xpose.msra.mxu0 0.0
        %1287 = vmatpush.xpose.msra.mxu0 0.0
        %1288 = vmatpush.xpose.msra.mxu0 0.0
        %1289 = vmatpush.xpose.msra.mxu0 0.0
        %1290 = vmatpush.xpose.msra.mxu0 0.0
        %1291 = vmatpush.xpose.msra.mxu0 0.0
        %1292 = vmatpush.xpose.msra.mxu0 0.0
        %1293 = vmatpush.xpose.msra.mxu0 0.0
        %1294 = vmatpush.xpose.msra.mxu0 0.0
        %1295 = vmatpush.xpose.msra.mxu0 0.0
        %1296 = vmatpush.xpose.msra.mxu0 0.0
        %1297 = vmatpush.xpose.msra.mxu0 0.0
        %1298 = vmatpush.xpose.msra.mxu0 0.0
        %1299 = vmatpush.xpose.msra.mxu0 %v1282
        %1300 = vmatmul.f32.gmra.mxu0 %v1279
        %v1301 = vpop.f32.mrf.mxu0
        %v1302 = vadd.f32 0.0, %v1301
        %1303 = vdwg.mxu0
        %v1305 = vsel %vm1225, %v1022, 0
        %v1308 = vsel %vm1225, %v1122, 0
        %1310 = vmatpush.xpose.msra.mxu0 0.0
        %1311 = vmatpush.xpose.msra.mxu0 0.0
        %1312 = vmatpush.xpose.msra.mxu0 0.0
        %1313 = vmatpush.xpose.msra.mxu0 0.0
        %1314 = vmatpush.xpose.msra.mxu0 0.0
        %1315 = vmatpush.xpose.msra.mxu0 0.0
        %1316 = vmatpush.xpose.msra.mxu0 0.0
        %1317 = vmatpush.xpose.msra.mxu0 0.0
        %1318 = vmatpush.xpose.msra.mxu0 0.0
        %1319 = vmatpush.xpose.msra.mxu0 0.0
        %1320 = vmatpush.xpose.msra.mxu0 0.0
        %1321 = vmatpush.xpose.msra.mxu0 0.0
        %1322 = vmatpush.xpose.msra.mxu0 0.0
        %1323 = vmatpush.xpose.msra.mxu0 0.0
        %1324 = vmatpush.xpose.msra.mxu0 0.0
        %1325 = vmatpush.xpose.msra.mxu0 %v1308
        %1326 = vmatmul.f32.gmra.mxu0 %v1305
        %v1327 = vpop.f32.mrf.mxu0
        %v1328 = vadd.f32 0.0, %v1327
        %1329 = vdwg.mxu0
        %v1330 = vsel %vm1225, %v1250, -inf
        %1331 = vmax.xlane.f32.xlu0 %v1330
        %v1332 = vpop.xlane.xlu0 %1331
        %v1333 = vsel %vm1225, %v1276, -inf
        %1334 = vmax.xlane.f32.xlu0 %v1333
        %v1335 = vpop.xlane.xlu0 %1334
        %v1336 = vsel %vm1225, %v1302, -inf
        %1337 = vmax.xlane.f32.xlu0 %v1336
        %v1338 = vpop.xlane.xlu0 %1337
        %v1339 = vsel %vm1225, %v1328, -inf
        %1340 = vmax.xlane.f32.xlu0 %v1339
        %v1341 = vpop.xlane.xlu0 %1340
        %v1342 = vsub.f32 %v1250, %v1332
        %v1343 = vsub.f32 %v1276, %v1335
        %v1344 = vsub.f32 %v1302, %v1338
        %v1345 = vsub.f32 %v1328, %v1341
        %v1346 = vmul.f32 %v1342, 1.442695
        %v1347 = vpow.pop %v1346
        %v1348 = vmul.f32 %v1343, 1.442695
        %v1349 = vpow.pop %v1348
        %v1350 = vmul.f32 %v1344, 1.442695
        %v1351 = vpow.pop %v1350
        %v1352 = vmul.f32 %v1345, 1.442695
        %v1353 = vpow.pop %v1352
        %v1354 = vsel %vm1225, %v1347, 0.0
        %1355 = vadd.xlane.f32.xlu0 %v1354
        %v1356 = vpop.xlane.xlu0 %1355
        %v1357 = vsel %vm1225, %v1349, 0.0
        %1358 = vadd.xlane.f32.xlu0 %v1357
        %v1359 = vpop.xlane.xlu0 %1358
        %v1360 = vsel %vm1225, %v1351, 0.0
        %1361 = vadd.xlane.f32.xlu0 %v1360
        %v1362 = vpop.xlane.xlu0 %1361
        %v1363 = vsel %vm1225, %v1353, 0.0
        %1364 = vadd.xlane.f32.xlu0 %v1363
        %v1365 = vpop.xlane.xlu0 %1364
        %v1366 = vrcp.pop %v1356
        %v1367 = vrcp.pop %v1359
        %v1368 = vrcp.pop %v1362
        %v1369 = vrcp.pop %v1365
        %v1370 = vmul.f32 %v1347, %v1366
        %v1371 = vmul.f32 %v1349, %v1367
        %v1372 = vmul.f32 %v1351, %v1368
        %v1373 = vmul.f32 %v1353, %v1369
        %v1375 = vsel %vm1225, %v1370, 0
        %1377 = vmatpush.msra.mxu0 0.0
        %1378 = vmatpush.msra.mxu0 0.0
        %1379 = vmatpush.msra.mxu0 0.0
        %1380 = vmatpush.msra.mxu0 0.0
        %1381 = vmatpush.msra.mxu0 0.0
        %1382 = vmatpush.msra.mxu0 0.0
        %1383 = vmatpush.msra.mxu0 0.0
        %1384 = vmatpush.msra.mxu0 0.0
        %1385 = vmatpush.msra.mxu0 0.0
        %1386 = vmatpush.msra.mxu0 0.0
        %1387 = vmatpush.msra.mxu0 0.0
        %1388 = vmatpush.msra.mxu0 0.0
        %1389 = vmatpush.msra.mxu0 0.0
        %1390 = vmatpush.msra.mxu0 0.0
        %1391 = vmatpush.msra.mxu0 0.0
        %1392 = vmatpush.msra.mxu0 %v1147
        %1393 = vmatmul.f32.gmra.mxu0 %v1375
        %v1394 = vpop.f32.mrf.mxu0
        %v1395 = vadd.f32 0.0, %v1394
        %1396 = vdwg.mxu0
        %v1398 = vsel %vm1225, %v1371, 0
        %1400 = vmatpush.msra.mxu0 0.0
        %1401 = vmatpush.msra.mxu0 0.0
        %1402 = vmatpush.msra.mxu0 0.0
        %1403 = vmatpush.msra.mxu0 0.0
        %1404 = vmatpush.msra.mxu0 0.0
        %1405 = vmatpush.msra.mxu0 0.0
        %1406 = vmatpush.msra.mxu0 0.0
        %1407 = vmatpush.msra.mxu0 0.0
        %1408 = vmatpush.msra.mxu0 0.0
        %1409 = vmatpush.msra.mxu0 0.0
        %1410 = vmatpush.msra.mxu0 0.0
        %1411 = vmatpush.msra.mxu0 0.0
        %1412 = vmatpush.msra.mxu0 0.0
        %1413 = vmatpush.msra.mxu0 0.0
        %1414 = vmatpush.msra.mxu0 0.0
        %1415 = vmatpush.msra.mxu0 %v1172
        %1416 = vmatmul.f32.gmra.mxu0 %v1398
        %v1417 = vpop.f32.mrf.mxu0
        %v1418 = vadd.f32 0.0, %v1417
        %1419 = vdwg.mxu0
        %v1421 = vsel %vm1225, %v1372, 0
        %1423 = vmatpush.msra.mxu0 0.0
        %1424 = vmatpush.msra.mxu0 0.0
        %1425 = vmatpush.msra.mxu0 0.0
        %1426 = vmatpush.msra.mxu0 0.0
        %1427 = vmatpush.msra.mxu0 0.0
        %1428 = vmatpush.msra.mxu0 0.0
        %1429 = vmatpush.msra.mxu0 0.0
        %1430 = vmatpush.msra.mxu0 0.0
        %1431 = vmatpush.msra.mxu0 0.0
        %1432 = vmatpush.msra.mxu0 0.0
        %1433 = vmatpush.msra.mxu0 0.0
        %1434 = vmatpush.msra.mxu0 0.0
        %1435 = vmatpush.msra.mxu0 0.0
        %1436 = vmatpush.msra.mxu0 0.0
        %1437 = vmatpush.msra.mxu0 0.0
        %1438 = vmatpush.msra.mxu0 %v1197
        %1439 = vmatmul.f32.gmra.mxu0 %v1421
        %v1440 = vpop.f32.mrf.mxu0
        %v1441 = vadd.f32 0.0, %v1440
        %1442 = vdwg.mxu0
        %v1444 = vsel %vm1225, %v1373, 0
        %1446 = vmatpush.msra.mxu0 0.0
        %1447 = vmatpush.msra.mxu0 0.0
        %1448 = vmatpush.msra.mxu0 0.0
        %1449 = vmatpush.msra.mxu0 0.0
        %1450 = vmatpush.msra.mxu0 0.0
        %1451 = vmatpush.msra.mxu0 0.0
        %1452 = vmatpush.msra.mxu0 0.0
        %1453 = vmatpush.msra.mxu0 0.0
        %1454 = vmatpush.msra.mxu0 0.0
        %1455 = vmatpush.msra.mxu0 0.0
        %1456 = vmatpush.msra.mxu0 0.0
        %1457 = vmatpush.msra.mxu0 0.0
        %1458 = vmatpush.msra.mxu0 0.0
        %1459 = vmatpush.msra.mxu0 0.0
        %1460 = vmatpush.msra.mxu0 0.0
        %1461 = vmatpush.msra.mxu0 %v1222
        %1462 = vmatmul.f32.gmra.mxu0 %v1444
        %v1463 = vpop.f32.mrf.mxu0
        %v1464 = vadd.f32 0.0, %v1463
        %1465 = vdwg.mxu0
        %v1466 = vpack.c.bf16 %v1395, %v1395
        %v1467 = vpack.c.bf16 %v1418, %v1418
        %v1468 = vpack.c.bf16 %v1441, %v1441
        %v1469 = vpack.c.bf16 %v1464, %v1464
        %v1470 = vld [vmem:[%s747] sm:$0xf]
        %v1471 = vld [vmem:[%s747 + $0x4] sm:$0xf]
        %v1472 = vld [vmem:[%s747 + $0x8] sm:$0xf]
        %v1473 = vld [vmem:[%s747 + $0xc] sm:$0xf]
        %v1475 = vsel %vm1225, %v1466, 0
        %vm1477 = vcmask 1043456
        %v1479 = vsel %vm1477, %v1470, 0
        %1481 = vmatpush.bf16.msra.mxu0 0
        %1482 = vmatpush.bf16.msra.mxu0 0
        %1483 = vmatpush.bf16.msra.mxu0 0
        %1484 = vmatpush.bf16.msra.mxu0 0
        %1485 = vmatpush.bf16.msra.mxu0 0
        %1486 = vmatpush.bf16.msra.mxu0 0
        %1487 = vmatpush.bf16.msra.mxu0 0
        %1488 = vmatpush.bf16.msra.mxu0 %v1479
        %1489 = vmatmul.bf16.gmra.mxu0 %v1475
        %v1490 = vpop.f32.mrf.mxu0
        %v1491 = vadd.f32 0.0, %v1490
        %v1492 = vpop.f32.mrf.mxu0
        %1493 = vdwg.mxu0
        %v1495 = vsel %vm1225, %v1467, 0
        %v1498 = vsel %vm1477, %v1471, 0
        %1500 = vmatpush.bf16.msra.mxu0 0
        %1501 = vmatpush.bf16.msra.mxu0 0
        %1502 = vmatpush.bf16.msra.mxu0 0
        %1503 = vmatpush.bf16.msra.mxu0 0
        %1504 = vmatpush.bf16.msra.mxu0 0
        %1505 = vmatpush.bf16.msra.mxu0 0
        %1506 = vmatpush.bf16.msra.mxu0 0
        %1507 = vmatpush.bf16.msra.mxu0 %v1498
        %1508 = vmatmul.bf16.gmra.mxu0 %v1495
        %v1509 = vpop.f32.mrf.mxu0
        %v1510 = vadd.f32 0.0, %v1509
        %v1511 = vpop.f32.mrf.mxu0
        %1512 = vdwg.mxu0
        %v1514 = vsel %vm1225, %v1468, 0
        %v1517 = vsel %vm1477, %v1472, 0
        %1519 = vmatpush.bf16.msra.mxu0 0
        %1520 = vmatpush.bf16.msra.mxu0 0
        %1521 = vmatpush.bf16.msra.mxu0 0
        %1522 = vmatpush.bf16.msra.mxu0 0
        %1523 = vmatpush.bf16.msra.mxu0 0
        %1524 = vmatpush.bf16.msra.mxu0 0
        %1525 = vmatpush.bf16.msra.mxu0 0
        %1526 = vmatpush.bf16.msra.mxu0 %v1517
        %1527 = vmatmul.bf16.gmra.mxu0 %v1514
        %v1528 = vpop.f32.mrf.mxu0
        %v1529 = vadd.f32 0.0, %v1528
        %v1530 = vpop.f32.mrf.mxu0
        %1531 = vdwg.mxu0
        %v1533 = vsel %vm1225, %v1469, 0
        %v1536 = vsel %vm1477, %v1473, 0
        %1538 = vmatpush.bf16.msra.mxu0 0
        %1539 = vmatpush.bf16.msra.mxu0 0
        %1540 = vmatpush.bf16.msra.mxu0 0
        %1541 = vmatpush.bf16.msra.mxu0 0
        %1542 = vmatpush.bf16.msra.mxu0 0
        %1543 = vmatpush.bf16.msra.mxu0 0
        %1544 = vmatpush.bf16.msra.mxu0 0
        %1545 = vmatpush.bf16.msra.mxu0 %v1536
        %1546 = vmatmul.bf16.gmra.mxu0 %v1533
        %v1547 = vpop.f32.mrf.mxu0
        %v1548 = vadd.f32 0.0, %v1547
        %v1549 = vpop.f32.mrf.mxu0
        %1550 = vdwg.mxu0
        %v1551 = vsel %vm933, %v1491, 0.0
        %v1552 = vsel %vm933, %v1510, 0.0
        %v1553 = vadd.f32 %v1551, %v1552
        %v1554 = vsel %vm933, %v1529, 0.0
        %v1555 = vadd.f32 %v1553, %v1554
        %v1556 = vsel %vm933, %v1548, 0.0
        %v1557 = vadd.f32 %v1555, %v1556
        %v1558 = vld [vmem:[%s750] sm:$0x1]
        %v1560 = vperm.slane %v1558, 0
        %v1562 = vadd.f32 %v1557, %v1560
        %v1563 = vadd.f32 %v823, %v1562
        %v1564 = vld [vmem:[%s753] sm:$0x1]
        %v1565 = vld [vmem:[%s756] sm:$0x1]
        %v1566 = vsel %vm933, %v1563, 0.0
        %1567 = vadd.xlane.f32.xlu0 %v1566
        %v1568 = vpop.xlane.xlu0 %1567
        %v1569 = vmul.f32 %v1563, %v1563
        %v1570 = vsel %vm933, %v1569, 0.0
        %1571 = vadd.xlane.f32.xlu0 %v1570
        %v1572 = vpop.xlane.xlu0 %1571
        %v1573 = vmul.f32 %v1568, 0.03125
        %v1574 = vmul.f32 %v1572, 0.03125
        %v1575 = vmul.f32 %v1573, %v1573
        %v1576 = vsub.f32 %v1574, %v1575
        %v1577 = vsub.f32 %v1563, %v1573
        %v1578 = vadd.f32 %v1576, 1e-05
        %v1579 = vrsqrt.pop %v1578
        %v1580 = vmul.f32 %v1579, %v1578
        %v1581 = vmul.f32 %v1580, %v1579
        %v1582 = vmul.f32 0.5, %v1581
        %v1583 = vsub.f32 1.5, %v1582
        %v1584 = vmul.f32 %v1579, %v1583
        %vm1585 = vweird.f32 %v1578
        %vm1586 = vweird.f32 %v1579
        %vm1587 = vmor %vm1585, %vm1586
        %v1588 = vsel %vm1587, %v1579, %v1584
        %v1589 = vmul.f32 %v1577, %v1588
        %v1591 = vperm.slane %v1564, 0
        %v1593 = vmul.f32 %v1589, %v1591
        %v1595 = vperm.slane %v1565, 0
        %v1597 = vadd.f32 %v1593, %v1595
        %v1598 = vpack.c.bf16 %v1597, %v1597
        %v1599 = vld [vmem:[%s761] sm:$0xff]
        %v1600 = vld [vmem:[%s761 + $0x8] sm:$0xff]
        %v1601 = vld [vmem:[%s761 + $0x10] sm:$0xff]
        %v1602 = vld [vmem:[%s761 + $0x18] sm:$0xff]
        %v1603 = vld [vmem:[%s761 + $0x20] sm:$0xff]
        %v1604 = vld [vmem:[%s761 + $0x28] sm:$0xff]
        %v1605 = vld [vmem:[%s761 + $0x30] sm:$0xff]
        %v1606 = vld [vmem:[%s761 + $0x38] sm:$0xff]
        %v1607 = vld [vmem:[%s761 + $0x40] sm:$0xff]
        %v1608 = vld [vmem:[%s761 + $0x48] sm:$0xff]
        %v1609 = vld [vmem:[%s761 + $0x50] sm:$0xff]
        %v1610 = vld [vmem:[%s761 + $0x58] sm:$0xff]
        %v1611 = vld [vmem:[%s761 + $0x60] sm:$0xff]
        %v1612 = vld [vmem:[%s761 + $0x68] sm:$0xff]
        %v1613 = vld [vmem:[%s761 + $0x70] sm:$0xff]
        %v1614 = vld [vmem:[%s761 + $0x78] sm:$0xff]
        %v1615 = vld [vmem:[%s761 + $0x80] sm:$0xff]
        %v1616 = vld [vmem:[%s761 + $0x88] sm:$0xff]
        %v1617 = vld [vmem:[%s761 + $0x90] sm:$0xff]
        %v1618 = vld [vmem:[%s761 + $0x98] sm:$0xff]
        %v1619 = vld [vmem:[%s761 + $0xa0] sm:$0xff]
        %v1620 = vld [vmem:[%s761 + $0xa8] sm:$0xff]
        %v1621 = vld [vmem:[%s761 + $0xb0] sm:$0xff]
        %v1622 = vld [vmem:[%s761 + $0xb8] sm:$0xff]
        %v1623 = vld [vmem:[%s761 + $0xc0] sm:$0xff]
        %v1624 = vld [vmem:[%s761 + $0xc8] sm:$0xff]
        %v1625 = vld [vmem:[%s761 + $0xd0] sm:$0xff]
        %v1626 = vld [vmem:[%s761 + $0xd8] sm:$0xff]
        %v1627 = vld [vmem:[%s761 + $0xe0] sm:$0xff]
        %v1628 = vld [vmem:[%s761 + $0xe8] sm:$0xff]
        %v1629 = vld [vmem:[%s761 + $0xf0] sm:$0xff]
        %v1630 = vld [vmem:[%s761 + $0xf8] sm:$0xff]
        %v1631 = vld [vmem:[%s765] sm:$0xff]
        %v1632 = vld [vmem:[%s765 + $0x8] sm:$0xff]
        %v1635 = vperm.slane %v1631, 0
        %v1636 = vperm.slane %v1631, 1
        %v1637 = vperm.slane %v1631, 2
        %v1638 = vperm.slane %v1631, 3
        %v1639 = vperm.slane %v1631, 4
        %v1640 = vperm.slane %v1631, 5
        %v1641 = vperm.slane %v1631, 6
        %v1642 = vperm.slane %v1631, 7
        %v1643 = vperm.slane %v1632, 0
        %v1644 = vperm.slane %v1632, 1
        %v1645 = vperm.slane %v1632, 2
        %v1646 = vperm.slane %v1632, 3
        %v1647 = vperm.slane %v1632, 4
        %v1648 = vperm.slane %v1632, 5
        %v1649 = vperm.slane %v1632, 6
        %v1650 = vperm.slane %v1632, 7
        %v1699 = vunpack.c.l.b16 %v1599
        %v1700 = vunpack.c.h.b16 %v1599
        %v1701 = vunpack.c.l.b16 %v1600
        %v1702 = vunpack.c.h.b16 %v1600
        %v1703 = vunpack.c.l.b16 %v1601
        %v1704 = vunpack.c.h.b16 %v1601
        %v1705 = vunpack.c.l.b16 %v1602
        %v1706 = vunpack.c.h.b16 %v1602
        %v1707 = vunpack.c.l.b16 %v1603
        %v1708 = vunpack.c.h.b16 %v1603
        %v1709 = vunpack.c.l.b16 %v1604
        %v1710 = vunpack.c.h.b16 %v1604
        %v1711 = vunpack.c.l.b16 %v1605
        %v1712 = vunpack.c.h.b16 %v1605
        %v1713 = vunpack.c.l.b16 %v1606
        %v1714 = vunpack.c.h.b16 %v1606
        %v1715 = vunpack.c.l.b16 %v1607
        %v1716 = vunpack.c.h.b16 %v1607
        %v1717 = vunpack.c.l.b16 %v1608
        %v1718 = vunpack.c.h.b16 %v1608
        %v1719 = vunpack.c.l.b16 %v1609
        %v1720 = vunpack.c.h.b16 %v1609
        %v1721 = vunpack.c.l.b16 %v1610
        %v1722 = vunpack.c.h.b16 %v1610
        %v1723 = vunpack.c.l.b16 %v1611
        %v1724 = vunpack.c.h.b16 %v1611
        %v1725 = vunpack.c.l.b16 %v1612
        %v1726 = vunpack.c.h.b16 %v1612
        %v1727 = vunpack.c.l.b16 %v1613
        %v1728 = vunpack.c.h.b16 %v1613
        %v1729 = vunpack.c.l.b16 %v1614
        %v1730 = vunpack.c.h.b16 %v1614
        %v1731 = vunpack.c.l.b16 %v1615
        %v1732 = vunpack.c.h.b16 %v1615
        %v1733 = vunpack.c.l.b16 %v1616
        %v1734 = vunpack.c.h.b16 %v1616
        %v1735 = vunpack.c.l.b16 %v1617
        %v1736 = vunpack.c.h.b16 %v1617
        %v1737 = vunpack.c.l.b16 %v1618
        %v1738 = vunpack.c.h.b16 %v1618
        %v1739 = vunpack.c.l.b16 %v1619
        %v1740 = vunpack.c.h.b16 %v1619
        %v1741 = vunpack.c.l.b16 %v1620
        %v1742 = vunpack.c.h.b16 %v1620
        %v1743 = vunpack.c.l.b16 %v1621
        %v1744 = vunpack.c.h.b16 %v1621
        %v1745 = vunpack.c.l.b16 %v1622
        %v1746 = vunpack.c.h.b16 %v1622
        %v1747 = vunpack.c.l.b16 %v1623
        %v1748 = vunpack.c.h.b16 %v1623
        %v1749 = vunpack.c.l.b16 %v1624
        %v1750 = vunpack.c.h.b16 %v1624
        %v1751 = vunpack.c.l.b16 %v1625
        %v1752 = vunpack.c.h.b16 %v1625
        %v1753 = vunpack.c.l.b16 %v1626
        %v1754 = vunpack.c.h.b16 %v1626
        %v1755 = vunpack.c.l.b16 %v1627
        %v1756 = vunpack.c.h.b16 %v1627
        %v1757 = vunpack.c.l.b16 %v1628
        %v1758 = vunpack.c.h.b16 %v1628
        %v1759 = vunpack.c.l.b16 %v1629
        %v1760 = vunpack.c.h.b16 %v1629
        %v1761 = vunpack.c.l.b16 %v1630
        %v1762 = vunpack.c.h.b16 %v1630
        %v1763 = vpack.c.b16 %v1715, %v1699
        %v1764 = vpack.c.b16 %v1716, %v1700
        %v1765 = vpack.c.b16 %v1717, %v1701
        %v1766 = vpack.c.b16 %v1718, %v1702
        %v1767 = vpack.c.b16 %v1719, %v1703
        %v1768 = vpack.c.b16 %v1720, %v1704
        %v1769 = vpack.c.b16 %v1721, %v1705
        %v1770 = vpack.c.b16 %v1722, %v1706
        %v1771 = vpack.c.b16 %v1723, %v1707
        %v1772 = vpack.c.b16 %v1724, %v1708
        %v1773 = vpack.c.b16 %v1725, %v1709
        %v1774 = vpack.c.b16 %v1726, %v1710
        %v1775 = vpack.c.b16 %v1727, %v1711
        %v1776 = vpack.c.b16 %v1728, %v1712
        %v1777 = vpack.c.b16 %v1729, %v1713
        %v1778 = vpack.c.b16 %v1730, %v1714
        %v1779 = vpack.c.b16 %v1747, %v1731
        %v1780 = vpack.c.b16 %v1748, %v1732
        %v1781 = vpack.c.b16 %v1749, %v1733
        %v1782 = vpack.c.b16 %v1750, %v1734
        %v1783 = vpack.c.b16 %v1751, %v1735
        %v1784 = vpack.c.b16 %v1752, %v1736
        %v1785 = vpack.c.b16 %v1753, %v1737
        %v1786 = vpack.c.b16 %v1754, %v1738
        %v1787 = vpack.c.b16 %v1755, %v1739
        %v1788 = vpack.c.b16 %v1756, %v1740
        %v1789 = vpack.c.b16 %v1757, %v1741
        %v1790 = vpack.c.b16 %v1758, %v1742
        %v1791 = vpack.c.b16 %v1759, %v1743
        %v1792 = vpack.c.b16 %v1760, %v1744
        %v1793 = vpack.c.b16 %v1761, %v1745
        %v1794 = vpack.c.b16 %v1762, %v1746
        %v1828 = vsel %vm933, %v1598, 0
        %1830 = vmatpush.bf16.msra.mxu0 0
        %1831 = vmatpush.bf16.msra.mxu0 0
        %1832 = vmatpush.bf16.msra.mxu0 0
        %1833 = vmatpush.bf16.msra.mxu0 0
        %1834 = vmatpush.bf16.msra.mxu0 0
        %1835 = vmatpush.bf16.msra.mxu0 0
        %1836 = vmatpush.bf16.msra.mxu0 %v1779
        %1837 = vmatpush.bf16.msra.mxu0 %v1763
        %1838 = vmatmul.bf16.gmra.mxu0 %v1828
        %v1839 = vpop.f32.mrf.mxu0
        %v1840 = vadd.f32 %v1635, %v1839
        %v1841 = vpop.f32.mrf.mxu0
        %1842 = vdwg.mxu0
        %1843 = vmatpush.bf16.msra.mxu0 0
        %1844 = vmatpush.bf16.msra.mxu0 0
        %1845 = vmatpush.bf16.msra.mxu0 0
        %1846 = vmatpush.bf16.msra.mxu0 0
        %1847 = vmatpush.bf16.msra.mxu0 0
        %1848 = vmatpush.bf16.msra.mxu0 0
        %1849 = vmatpush.bf16.msra.mxu0 %v1780
        %1850 = vmatpush.bf16.msra.mxu0 %v1764
        %1851 = vmatmul.bf16.gmra.mxu0 %v1828
        %v1852 = vpop.f32.mrf.mxu0
        %v1853 = vadd.f32 %v1636, %v1852
        %v1854 = vpop.f32.mrf.mxu0
        %1855 = vdwg.mxu0
        %1856 = vmatpush.bf16.msra.mxu0 0
        %1857 = vmatpush.bf16.msra.mxu0 0
        %1858 = vmatpush.bf16.msra.mxu0 0
        %1859 = vmatpush.bf16.msra.mxu0 0
        %1860 = vmatpush.bf16.msra.mxu0 0
        %1861 = vmatpush.bf16.msra.mxu0 0
        %1862 = vmatpush.bf16.msra.mxu0 %v1781
        %1863 = vmatpush.bf16.msra.mxu0 %v1765
        %1864 = vmatmul.bf16.gmra.mxu0 %v1828
        %v1865 = vpop.f32.mrf.mxu0
        %v1866 = vadd.f32 %v1637, %v1865
        %v1867 = vpop.f32.mrf.mxu0
        %1868 = vdwg.mxu0
        %1869 = vmatpush.bf16.msra.mxu0 0
        %1870 = vmatpush.bf16.msra.mxu0 0
        %1871 = vmatpush.bf16.msra.mxu0 0
        %1872 = vmatpush.bf16.msra.mxu0 0
        %1873 = vmatpush.bf16.msra.mxu0 0
        %1874 = vmatpush.bf16.msra.mxu0 0
        %1875 = vmatpush.bf16.msra.mxu0 %v1782
        %1876 = vmatpush.bf16.msra.mxu0 %v1766
        %1877 = vmatmul.bf16.gmra.mxu0 %v1828
        %v1878 = vpop.f32.mrf.mxu0
        %v1879 = vadd.f32 %v1638, %v1878
        %v1880 = vpop.f32.mrf.mxu0
        %1881 = vdwg.mxu0
        %1882 = vmatpush.bf16.msra.mxu0 0
        %1883 = vmatpush.bf16.msra.mxu0 0
        %1884 = vmatpush.bf16.msra.mxu0 0
        %1885 = vmatpush.bf16.msra.mxu0 0
        %1886 = vmatpush.bf16.msra.mxu0 0
        %1887 = vmatpush.bf16.msra.mxu0 0
        %1888 = vmatpush.bf16.msra.mxu0 %v1783
        %1889 = vmatpush.bf16.msra.mxu0 %v1767
        %1890 = vmatmul.bf16.gmra.mxu0 %v1828
        %v1891 = vpop.f32.mrf.mxu0
        %v1892 = vadd.f32 %v1639, %v1891
        %v1893 = vpop.f32.mrf.mxu0
        %1894 = vdwg.mxu0
        %1895 = vmatpush.bf16.msra.mxu0 0
        %1896 = vmatpush.bf16.msra.mxu0 0
        %1897 = vmatpush.bf16.msra.mxu0 0
        %1898 = vmatpush.bf16.msra.mxu0 0
        %1899 = vmatpush.bf16.msra.mxu0 0
        %1900 = vmatpush.bf16.msra.mxu0 0
        %1901 = vmatpush.bf16.msra.mxu0 %v1784
        %1902 = vmatpush.bf16.msra.mxu0 %v1768
        %1903 = vmatmul.bf16.gmra.mxu0 %v1828
        %v1904 = vpop.f32.mrf.mxu0
        %v1905 = vadd.f32 %v1640, %v1904
        %v1906 = vpop.f32.mrf.mxu0
        %1907 = vdwg.mxu0
        %1908 = vmatpush.bf16.msra.mxu0 0
        %1909 = vmatpush.bf16.msra.mxu0 0
        %1910 = vmatpush.bf16.msra.mxu0 0
        %1911 = vmatpush.bf16.msra.mxu0 0
        %1912 = vmatpush.bf16.msra.mxu0 0
        %1913 = vmatpush.bf16.msra.mxu0 0
        %1914 = vmatpush.bf16.msra.mxu0 %v1785
        %1915 = vmatpush.bf16.msra.mxu0 %v1769
        %1916 = vmatmul.bf16.gmra.mxu0 %v1828
        %v1917 = vpop.f32.mrf.mxu0
        %v1918 = vadd.f32 %v1641, %v1917
        %v1919 = vpop.f32.mrf.mxu0
        %1920 = vdwg.mxu0
        %1921 = vmatpush.bf16.msra.mxu0 0
        %1922 = vmatpush.bf16.msra.mxu0 0
        %1923 = vmatpush.bf16.msra.mxu0 0
        %1924 = vmatpush.bf16.msra.mxu0 0
        %1925 = vmatpush.bf16.msra.mxu0 0
        %1926 = vmatpush.bf16.msra.mxu0 0
        %1927 = vmatpush.bf16.msra.mxu0 %v1786
        %1928 = vmatpush.bf16.msra.mxu0 %v1770
        %1929 = vmatmul.bf16.gmra.mxu0 %v1828
        %v1930 = vpop.f32.mrf.mxu0
        %v1931 = vadd.f32 %v1642, %v1930
        %v1932 = vpop.f32.mrf.mxu0
        %1933 = vdwg.mxu0
        %1934 = vmatpush.bf16.msra.mxu0 0
        %1935 = vmatpush.bf16.msra.mxu0 0
        %1936 = vmatpush.bf16.msra.mxu0 0
        %1937 = vmatpush.bf16.msra.mxu0 0
        %1938 = vmatpush.bf16.msra.mxu0 0
        %1939 = vmatpush.bf16.msra.mxu0 0
        %1940 = vmatpush.bf16.msra.mxu0 %v1787
        %1941 = vmatpush.bf16.msra.mxu0 %v1771
        %1942 = vmatmul.bf16.gmra.mxu0 %v1828
        %v1943 = vpop.f32.mrf.mxu0
        %v1944 = vadd.f32 %v1643, %v1943
        %v1945 = vpop.f32.mrf.mxu0
        %1946 = vdwg.mxu0
        %1947 = vmatpush.bf16.msra.mxu0 0
        %1948 = vmatpush.bf16.msra.mxu0 0
        %1949 = vmatpush.bf16.msra.mxu0 0
        %1950 = vmatpush.bf16.msra.mxu0 0
        %1951 = vmatpush.bf16.msra.mxu0 0
        %1952 = vmatpush.bf16.msra.mxu0 0
        %1953 = vmatpush.bf16.msra.mxu0 %v1788
        %1954 = vmatpush.bf16.msra.mxu0 %v1772
        %1955 = vmatmul.bf16.gmra.mxu0 %v1828
        %v1956 = vpop.f32.mrf.mxu0
        %v1957 = vadd.f32 %v1644, %v1956
        %v1958 = vpop.f32.mrf.mxu0
        %1959 = vdwg.mxu0
        %1960 = vmatpush.bf16.msra.mxu0 0
        %1961 = vmatpush.bf16.msra.mxu0 0
        %1962 = vmatpush.bf16.msra.mxu0 0
        %1963 = vmatpush.bf16.msra.mxu0 0
        %1964 = vmatpush.bf16.msra.mxu0 0
        %1965 = vmatpush.bf16.msra.mxu0 0
        %1966 = vmatpush.bf16.msra.mxu0 %v1789
        %1967 = vmatpush.bf16.msra.mxu0 %v1773
        %1968 = vmatmul.bf16.gmra.mxu0 %v1828
        %v1969 = vpop.f32.mrf.mxu0
        %v1970 = vadd.f32 %v1645, %v1969
        %v1971 = vpop.f32.mrf.mxu0
        %1972 = vdwg.mxu0
        %1973 = vmatpush.bf16.msra.mxu0 0
        %1974 = vmatpush.bf16.msra.mxu0 0
        %1975 = vmatpush.bf16.msra.mxu0 0
        %1976 = vmatpush.bf16.msra.mxu0 0
        %1977 = vmatpush.bf16.msra.mxu0 0
        %1978 = vmatpush.bf16.msra.mxu0 0
        %1979 = vmatpush.bf16.msra.mxu0 %v1790
        %1980 = vmatpush.bf16.msra.mxu0 %v1774
        %1981 = vmatmul.bf16.gmra.mxu0 %v1828
        %v1982 = vpop.f32.mrf.mxu0
        %v1983 = vadd.f32 %v1646, %v1982
        %v1984 = vpop.f32.mrf.mxu0
        %1985 = vdwg.mxu0
        %1986 = vmatpush.bf16.msra.mxu0 0
        %1987 = vmatpush.bf16.msra.mxu0 0
        %1988 = vmatpush.bf16.msra.mxu0 0
        %1989 = vmatpush.bf16.msra.mxu0 0
        %1990 = vmatpush.bf16.msra.mxu0 0
        %1991 = vmatpush.bf16.msra.mxu0 0
        %1992 = vmatpush.bf16.msra.mxu0 %v1791
        %1993 = vmatpush.bf16.msra.mxu0 %v1775
        %1994 = vmatmul.bf16.gmra.mxu0 %v1828
        %v1995 = vpop.f32.mrf.mxu0
        %v1996 = vadd.f32 %v1647, %v1995
        %v1997 = vpop.f32.mrf.mxu0
        %1998 = vdwg.mxu0
        %1999 = vmatpush.bf16.msra.mxu0 0
        %2000 = vmatpush.bf16.msra.mxu0 0
        %2001 = vmatpush.bf16.msra.mxu0 0
        %2002 = vmatpush.bf16.msra.mxu0 0
        %2003 = vmatpush.bf16.msra.mxu0 0
        %2004 = vmatpush.bf16.msra.mxu0 0
        %2005 = vmatpush.bf16.msra.mxu0 %v1792
        %2006 = vmatpush.bf16.msra.mxu0 %v1776
        %2007 = vmatmul.bf16.gmra.mxu0 %v1828
        %v2008 = vpop.f32.mrf.mxu0
        %v2009 = vadd.f32 %v1648, %v2008
        %v2010 = vpop.f32.mrf.mxu0
        %2011 = vdwg.mxu0
        %2012 = vmatpush.bf16.msra.mxu0 0
        %2013 = vmatpush.bf16.msra.mxu0 0
        %2014 = vmatpush.bf16.msra.mxu0 0
        %2015 = vmatpush.bf16.msra.mxu0 0
        %2016 = vmatpush.bf16.msra.mxu0 0
        %2017 = vmatpush.bf16.msra.mxu0 0
        %2018 = vmatpush.bf16.msra.mxu0 %v1793
        %2019 = vmatpush.bf16.msra.mxu0 %v1777
        %2020 = vmatmul.bf16.gmra.mxu0 %v1828
        %v2021 = vpop.f32.mrf.mxu0
        %v2022 = vadd.f32 %v1649, %v2021
        %v2023 = vpop.f32.mrf.mxu0
        %2024 = vdwg.mxu0
        %2025 = vmatpush.bf16.msra.mxu0 0
        %2026 = vmatpush.bf16.msra.mxu0 0
        %2027 = vmatpush.bf16.msra.mxu0 0
        %2028 = vmatpush.bf16.msra.mxu0 0
        %2029 = vmatpush.bf16.msra.mxu0 0
        %2030 = vmatpush.bf16.msra.mxu0 0
        %2031 = vmatpush.bf16.msra.mxu0 %v1794
        %2032 = vmatpush.bf16.msra.mxu0 %v1778
        %2033 = vmatmul.bf16.gmra.mxu0 %v1828
        %v2034 = vpop.f32.mrf.mxu0
        %v2035 = vadd.f32 %v1650, %v2034
        %v2036 = vpop.f32.mrf.mxu0
        %2037 = vdwg.mxu0
        %v2038 = vmax.f32 %v1840, 0.0
        %v2039 = vmax.f32 %v1853, 0.0
        %v2040 = vmax.f32 %v1866, 0.0
        %v2041 = vmax.f32 %v1879, 0.0
        %v2042 = vmax.f32 %v1892, 0.0
        %v2043 = vmax.f32 %v1905, 0.0
        %v2044 = vmax.f32 %v1918, 0.0
        %v2045 = vmax.f32 %v1931, 0.0
        %v2046 = vmax.f32 %v1944, 0.0
        %v2047 = vmax.f32 %v1957, 0.0
        %v2048 = vmax.f32 %v1970, 0.0
        %v2049 = vmax.f32 %v1983, 0.0
        %v2050 = vmax.f32 %v1996, 0.0
        %v2051 = vmax.f32 %v2009, 0.0
        %v2052 = vmax.f32 %v2022, 0.0
        %v2053 = vmax.f32 %v2035, 0.0
        %v2054 = vpack.c.bf16 %v2038, %v2038
        %v2055 = vpack.c.bf16 %v2039, %v2039
        %v2056 = vpack.c.bf16 %v2040, %v2040
        %v2057 = vpack.c.bf16 %v2041, %v2041
        %v2058 = vpack.c.bf16 %v2042, %v2042
        %v2059 = vpack.c.bf16 %v2043, %v2043
        %v2060 = vpack.c.bf16 %v2044, %v2044
        %v2061 = vpack.c.bf16 %v2045, %v2045
        %v2062 = vpack.c.bf16 %v2046, %v2046
        %v2063 = vpack.c.bf16 %v2047, %v2047
        %v2064 = vpack.c.bf16 %v2048, %v2048
        %v2065 = vpack.c.bf16 %v2049, %v2049
        %v2066 = vpack.c.bf16 %v2050, %v2050
        %v2067 = vpack.c.bf16 %v2051, %v2051
        %v2068 = vpack.c.bf16 %v2052, %v2052
        %v2069 = vpack.c.bf16 %v2053, %v2053
        %v2070 = vld [vmem:[%s770] sm:$0xf]
        %v2071 = vld [vmem:[%s770 + $0x4] sm:$0xf]
        %v2072 = vld [vmem:[%s770 + $0x8] sm:$0xf]
        %v2073 = vld [vmem:[%s770 + $0xc] sm:$0xf]
        %v2074 = vld [vmem:[%s770 + $0x10] sm:$0xf]
        %v2075 = vld [vmem:[%s770 + $0x14] sm:$0xf]
        %v2076 = vld [vmem:[%s770 + $0x18] sm:$0xf]
        %v2077 = vld [vmem:[%s770 + $0x1c] sm:$0xf]
        %v2078 = vld [vmem:[%s770 + $0x20] sm:$0xf]
        %v2079 = vld [vmem:[%s770 + $0x24] sm:$0xf]
        %v2080 = vld [vmem:[%s770 + $0x28] sm:$0xf]
        %v2081 = vld [vmem:[%s770 + $0x2c] sm:$0xf]
        %v2082 = vld [vmem:[%s770 + $0x30] sm:$0xf]
        %v2083 = vld [vmem:[%s770 + $0x34] sm:$0xf]
        %v2084 = vld [vmem:[%s770 + $0x38] sm:$0xf]
        %v2085 = vld [vmem:[%s770 + $0x3c] sm:$0xf]
        %v2086 = vld [vmem:[%s770 + $0x40] sm:$0xf]
        %v2087 = vld [vmem:[%s770 + $0x44] sm:$0xf]
        %v2088 = vld [vmem:[%s770 + $0x48] sm:$0xf]
        %v2089 = vld [vmem:[%s770 + $0x4c] sm:$0xf]
        %v2090 = vld [vmem:[%s770 + $0x50] sm:$0xf]
        %v2091 = vld [vmem:[%s770 + $0x54] sm:$0xf]
        %v2092 = vld [vmem:[%s770 + $0x58] sm:$0xf]
        %v2093 = vld [vmem:[%s770 + $0x5c] sm:$0xf]
        %v2094 = vld [vmem:[%s770 + $0x60] sm:$0xf]
        %v2095 = vld [vmem:[%s770 + $0x64] sm:$0xf]
        %v2096 = vld [vmem:[%s770 + $0x68] sm:$0xf]
        %v2097 = vld [vmem:[%s770 + $0x6c] sm:$0xf]
        %v2098 = vld [vmem:[%s770 + $0x70] sm:$0xf]
        %v2099 = vld [vmem:[%s770 + $0x74] sm:$0xf]
        %v2100 = vld [vmem:[%s770 + $0x78] sm:$0xf]
        %v2101 = vld [vmem:[%s770 + $0x7c] sm:$0xf]
        %v2102 = vld [vmem:[%s770 + $0x80] sm:$0xf]
        %v2103 = vld [vmem:[%s770 + $0x84] sm:$0xf]
        %v2104 = vld [vmem:[%s770 + $0x88] sm:$0xf]
        %v2105 = vld [vmem:[%s770 + $0x8c] sm:$0xf]
        %v2106 = vld [vmem:[%s770 + $0x90] sm:$0xf]
        %v2107 = vld [vmem:[%s770 + $0x94] sm:$0xf]
        %v2108 = vld [vmem:[%s770 + $0x98] sm:$0xf]
        %v2109 = vld [vmem:[%s770 + $0x9c] sm:$0xf]
        %v2110 = vld [vmem:[%s770 + $0xa0] sm:$0xf]
        %v2111 = vld [vmem:[%s770 + $0xa4] sm:$0xf]
        %v2112 = vld [vmem:[%s770 + $0xa8] sm:$0xf]
        %v2113 = vld [vmem:[%s770 + $0xac] sm:$0xf]
        %v2114 = vld [vmem:[%s770 + $0xb0] sm:$0xf]
        %v2115 = vld [vmem:[%s770 + $0xb4] sm:$0xf]
        %v2116 = vld [vmem:[%s770 + $0xb8] sm:$0xf]
        %v2117 = vld [vmem:[%s770 + $0xbc] sm:$0xf]
        %v2118 = vld [vmem:[%s770 + $0xc0] sm:$0xf]
        %v2119 = vld [vmem:[%s770 + $0xc4] sm:$0xf]
        %v2120 = vld [vmem:[%s770 + $0xc8] sm:$0xf]
        %v2121 = vld [vmem:[%s770 + $0xcc] sm:$0xf]
        %v2122 = vld [vmem:[%s770 + $0xd0] sm:$0xf]
        %v2123 = vld [vmem:[%s770 + $0xd4] sm:$0xf]
        %v2124 = vld [vmem:[%s770 + $0xd8] sm:$0xf]
        %v2125 = vld [vmem:[%s770 + $0xdc] sm:$0xf]
        %v2126 = vld [vmem:[%s770 + $0xe0] sm:$0xf]
        %v2127 = vld [vmem:[%s770 + $0xe4] sm:$0xf]
        %v2128 = vld [vmem:[%s770 + $0xe8] sm:$0xf]
        %v2129 = vld [vmem:[%s770 + $0xec] sm:$0xf]
        %v2130 = vld [vmem:[%s770 + $0xf0] sm:$0xf]
        %v2131 = vld [vmem:[%s770 + $0xf4] sm:$0xf]
        %v2132 = vld [vmem:[%s770 + $0xf8] sm:$0xf]
        %v2133 = vld [vmem:[%s770 + $0xfc] sm:$0xf]
        %v2134 = vld [vmem:[%s770 + $0x100] sm:$0xf]
        %v2135 = vld [vmem:[%s770 + $0x104] sm:$0xf]
        %v2136 = vld [vmem:[%s770 + $0x108] sm:$0xf]
        %v2137 = vld [vmem:[%s770 + $0x10c] sm:$0xf]
        %v2138 = vld [vmem:[%s770 + $0x110] sm:$0xf]
        %v2139 = vld [vmem:[%s770 + $0x114] sm:$0xf]
        %v2140 = vld [vmem:[%s770 + $0x118] sm:$0xf]
        %v2141 = vld [vmem:[%s770 + $0x11c] sm:$0xf]
        %v2142 = vld [vmem:[%s770 + $0x120] sm:$0xf]
        %v2143 = vld [vmem:[%s770 + $0x124] sm:$0xf]
        %v2144 = vld [vmem:[%s770 + $0x128] sm:$0xf]
        %v2145 = vld [vmem:[%s770 + $0x12c] sm:$0xf]
        %v2146 = vld [vmem:[%s770 + $0x130] sm:$0xf]
        %v2147 = vld [vmem:[%s770 + $0x134] sm:$0xf]
        %v2148 = vld [vmem:[%s770 + $0x138] sm:$0xf]
        %v2149 = vld [vmem:[%s770 + $0x13c] sm:$0xf]
        %v2150 = vld [vmem:[%s770 + $0x140] sm:$0xf]
        %v2151 = vld [vmem:[%s770 + $0x144] sm:$0xf]
        %v2152 = vld [vmem:[%s770 + $0x148] sm:$0xf]
        %v2153 = vld [vmem:[%s770 + $0x14c] sm:$0xf]
        %v2154 = vld [vmem:[%s770 + $0x150] sm:$0xf]
        %v2155 = vld [vmem:[%s770 + $0x154] sm:$0xf]
        %v2156 = vld [vmem:[%s770 + $0x158] sm:$0xf]
        %v2157 = vld [vmem:[%s770 + $0x15c] sm:$0xf]
        %v2158 = vld [vmem:[%s770 + $0x160] sm:$0xf]
        %v2159 = vld [vmem:[%s770 + $0x164] sm:$0xf]
        %v2160 = vld [vmem:[%s770 + $0x168] sm:$0xf]
        %v2161 = vld [vmem:[%s770 + $0x16c] sm:$0xf]
        %v2162 = vld [vmem:[%s770 + $0x170] sm:$0xf]
        %v2163 = vld [vmem:[%s770 + $0x174] sm:$0xf]
        %v2164 = vld [vmem:[%s770 + $0x178] sm:$0xf]
        %v2165 = vld [vmem:[%s770 + $0x17c] sm:$0xf]
        %v2166 = vld [vmem:[%s770 + $0x180] sm:$0xf]
        %v2167 = vld [vmem:[%s770 + $0x184] sm:$0xf]
        %v2168 = vld [vmem:[%s770 + $0x188] sm:$0xf]
        %v2169 = vld [vmem:[%s770 + $0x18c] sm:$0xf]
        %v2170 = vld [vmem:[%s770 + $0x190] sm:$0xf]
        %v2171 = vld [vmem:[%s770 + $0x194] sm:$0xf]
        %v2172 = vld [vmem:[%s770 + $0x198] sm:$0xf]
        %v2173 = vld [vmem:[%s770 + $0x19c] sm:$0xf]
        %v2174 = vld [vmem:[%s770 + $0x1a0] sm:$0xf]
        %v2175 = vld [vmem:[%s770 + $0x1a4] sm:$0xf]
        %v2176 = vld [vmem:[%s770 + $0x1a8] sm:$0xf]
        %v2177 = vld [vmem:[%s770 + $0x1ac] sm:$0xf]
        %v2178 = vld [vmem:[%s770 + $0x1b0] sm:$0xf]
        %v2179 = vld [vmem:[%s770 + $0x1b4] sm:$0xf]
        %v2180 = vld [vmem:[%s770 + $0x1b8] sm:$0xf]
        %v2181 = vld [vmem:[%s770 + $0x1bc] sm:$0xf]
        %v2182 = vld [vmem:[%s770 + $0x1c0] sm:$0xf]
        %v2183 = vld [vmem:[%s770 + $0x1c4] sm:$0xf]
        %v2184 = vld [vmem:[%s770 + $0x1c8] sm:$0xf]
        %v2185 = vld [vmem:[%s770 + $0x1cc] sm:$0xf]
        %v2186 = vld [vmem:[%s770 + $0x1d0] sm:$0xf]
        %v2187 = vld [vmem:[%s770 + $0x1d4] sm:$0xf]
        %v2188 = vld [vmem:[%s770 + $0x1d8] sm:$0xf]
        %v2189 = vld [vmem:[%s770 + $0x1dc] sm:$0xf]
        %v2190 = vld [vmem:[%s770 + $0x1e0] sm:$0xf]
        %v2191 = vld [vmem:[%s770 + $0x1e4] sm:$0xf]
        %v2192 = vld [vmem:[%s770 + $0x1e8] sm:$0xf]
        %v2193 = vld [vmem:[%s770 + $0x1ec] sm:$0xf]
        %v2194 = vld [vmem:[%s770 + $0x1f0] sm:$0xf]
        %v2195 = vld [vmem:[%s770 + $0x1f4] sm:$0xf]
        %v2196 = vld [vmem:[%s770 + $0x1f8] sm:$0xf]
        %v2197 = vld [vmem:[%s770 + $0x1fc] sm:$0xf]
        %v2198 = vld [vmem:[%s770 + $0x200] sm:$0xf]
        %v2199 = vld [vmem:[%s770 + $0x204] sm:$0xf]
        %v2200 = vld [vmem:[%s770 + $0x208] sm:$0xf]
        %v2201 = vld [vmem:[%s770 + $0x20c] sm:$0xf]
        %v2202 = vld [vmem:[%s770 + $0x210] sm:$0xf]
        %v2203 = vld [vmem:[%s770 + $0x214] sm:$0xf]
        %v2204 = vld [vmem:[%s770 + $0x218] sm:$0xf]
        %v2205 = vld [vmem:[%s770 + $0x21c] sm:$0xf]
        %v2206 = vld [vmem:[%s770 + $0x220] sm:$0xf]
        %v2207 = vld [vmem:[%s770 + $0x224] sm:$0xf]
        %v2208 = vld [vmem:[%s770 + $0x228] sm:$0xf]
        %v2209 = vld [vmem:[%s770 + $0x22c] sm:$0xf]
        %v2210 = vld [vmem:[%s770 + $0x230] sm:$0xf]
        %v2211 = vld [vmem:[%s770 + $0x234] sm:$0xf]
        %v2212 = vld [vmem:[%s770 + $0x238] sm:$0xf]
        %v2213 = vld [vmem:[%s770 + $0x23c] sm:$0xf]
        %v2214 = vld [vmem:[%s770 + $0x240] sm:$0xf]
        %v2215 = vld [vmem:[%s770 + $0x244] sm:$0xf]
        %v2216 = vld [vmem:[%s770 + $0x248] sm:$0xf]
        %v2217 = vld [vmem:[%s770 + $0x24c] sm:$0xf]
        %v2218 = vld [vmem:[%s770 + $0x250] sm:$0xf]
        %v2219 = vld [vmem:[%s770 + $0x254] sm:$0xf]
        %v2220 = vld [vmem:[%s770 + $0x258] sm:$0xf]
        %v2221 = vld [vmem:[%s770 + $0x25c] sm:$0xf]
        %v2222 = vld [vmem:[%s770 + $0x260] sm:$0xf]
        %v2223 = vld [vmem:[%s770 + $0x264] sm:$0xf]
        %v2224 = vld [vmem:[%s770 + $0x268] sm:$0xf]
        %v2225 = vld [vmem:[%s770 + $0x26c] sm:$0xf]
        %v2226 = vld [vmem:[%s770 + $0x270] sm:$0xf]
        %v2227 = vld [vmem:[%s770 + $0x274] sm:$0xf]
        %v2228 = vld [vmem:[%s770 + $0x278] sm:$0xf]
        %v2229 = vld [vmem:[%s770 + $0x27c] sm:$0xf]
        %v2230 = vld [vmem:[%s770 + $0x280] sm:$0xf]
        %v2231 = vld [vmem:[%s770 + $0x284] sm:$0xf]
        %v2232 = vld [vmem:[%s770 + $0x288] sm:$0xf]
        %v2233 = vld [vmem:[%s770 + $0x28c] sm:$0xf]
        %v2234 = vld [vmem:[%s770 + $0x290] sm:$0xf]
        %v2235 = vld [vmem:[%s770 + $0x294] sm:$0xf]
        %v2236 = vld [vmem:[%s770 + $0x298] sm:$0xf]
        %v2237 = vld [vmem:[%s770 + $0x29c] sm:$0xf]
        %v2238 = vld [vmem:[%s770 + $0x2a0] sm:$0xf]
        %v2239 = vld [vmem:[%s770 + $0x2a4] sm:$0xf]
        %v2240 = vld [vmem:[%s770 + $0x2a8] sm:$0xf]
        %v2241 = vld [vmem:[%s770 + $0x2ac] sm:$0xf]
        %v2242 = vld [vmem:[%s770 + $0x2b0] sm:$0xf]
        %v2243 = vld [vmem:[%s770 + $0x2b4] sm:$0xf]
        %v2244 = vld [vmem:[%s770 + $0x2b8] sm:$0xf]
        %v2245 = vld [vmem:[%s770 + $0x2bc] sm:$0xf]
        %v2246 = vld [vmem:[%s770 + $0x2c0] sm:$0xf]
        %v2247 = vld [vmem:[%s770 + $0x2c4] sm:$0xf]
        %v2248 = vld [vmem:[%s770 + $0x2c8] sm:$0xf]
        %v2249 = vld [vmem:[%s770 + $0x2cc] sm:$0xf]
        %v2250 = vld [vmem:[%s770 + $0x2d0] sm:$0xf]
        %v2251 = vld [vmem:[%s770 + $0x2d4] sm:$0xf]
        %v2252 = vld [vmem:[%s770 + $0x2d8] sm:$0xf]
        %v2253 = vld [vmem:[%s770 + $0x2dc] sm:$0xf]
        %v2254 = vld [vmem:[%s770 + $0x2e0] sm:$0xf]
        %v2255 = vld [vmem:[%s770 + $0x2e4] sm:$0xf]
        %v2256 = vld [vmem:[%s770 + $0x2e8] sm:$0xf]
        %v2257 = vld [vmem:[%s770 + $0x2ec] sm:$0xf]
        %v2258 = vld [vmem:[%s770 + $0x2f0] sm:$0xf]
        %v2259 = vld [vmem:[%s770 + $0x2f4] sm:$0xf]
        %v2260 = vld [vmem:[%s770 + $0x2f8] sm:$0xf]
        %v2261 = vld [vmem:[%s770 + $0x2fc] sm:$0xf]
        %v2262 = vld [vmem:[%s770 + $0x300] sm:$0xf]
        %v2263 = vld [vmem:[%s770 + $0x304] sm:$0xf]
        %v2264 = vld [vmem:[%s770 + $0x308] sm:$0xf]
        %v2265 = vld [vmem:[%s770 + $0x30c] sm:$0xf]
        %v2266 = vld [vmem:[%s770 + $0x310] sm:$0xf]
        %v2267 = vld [vmem:[%s770 + $0x314] sm:$0xf]
        %v2268 = vld [vmem:[%s770 + $0x318] sm:$0xf]
        %v2269 = vld [vmem:[%s770 + $0x31c] sm:$0xf]
        %v2270 = vld [vmem:[%s770 + $0x320] sm:$0xf]
        %v2271 = vld [vmem:[%s770 + $0x324] sm:$0xf]
        %v2272 = vld [vmem:[%s770 + $0x328] sm:$0xf]
        %v2273 = vld [vmem:[%s770 + $0x32c] sm:$0xf]
        %v2274 = vld [vmem:[%s770 + $0x330] sm:$0xf]
        %v2275 = vld [vmem:[%s770 + $0x334] sm:$0xf]
        %v2276 = vld [vmem:[%s770 + $0x338] sm:$0xf]
        %v2277 = vld [vmem:[%s770 + $0x33c] sm:$0xf]
        %v2278 = vld [vmem:[%s770 + $0x340] sm:$0xf]
        %v2279 = vld [vmem:[%s770 + $0x344] sm:$0xf]
        %v2280 = vld [vmem:[%s770 + $0x348] sm:$0xf]
        %v2281 = vld [vmem:[%s770 + $0x34c] sm:$0xf]
        %v2282 = vld [vmem:[%s770 + $0x350] sm:$0xf]
        %v2283 = vld [vmem:[%s770 + $0x354] sm:$0xf]
        %v2284 = vld [vmem:[%s770 + $0x358] sm:$0xf]
        %v2285 = vld [vmem:[%s770 + $0x35c] sm:$0xf]
        %v2286 = vld [vmem:[%s770 + $0x360] sm:$0xf]
        %v2287 = vld [vmem:[%s770 + $0x364] sm:$0xf]
        %v2288 = vld [vmem:[%s770 + $0x368] sm:$0xf]
        %v2289 = vld [vmem:[%s770 + $0x36c] sm:$0xf]
        %v2290 = vld [vmem:[%s770 + $0x370] sm:$0xf]
        %v2291 = vld [vmem:[%s770 + $0x374] sm:$0xf]
        %v2292 = vld [vmem:[%s770 + $0x378] sm:$0xf]
        %v2293 = vld [vmem:[%s770 + $0x37c] sm:$0xf]
        %v2294 = vld [vmem:[%s770 + $0x380] sm:$0xf]
        %v2295 = vld [vmem:[%s770 + $0x384] sm:$0xf]
        %v2296 = vld [vmem:[%s770 + $0x388] sm:$0xf]
        %v2297 = vld [vmem:[%s770 + $0x38c] sm:$0xf]
        %v2298 = vld [vmem:[%s770 + $0x390] sm:$0xf]
        %v2299 = vld [vmem:[%s770 + $0x394] sm:$0xf]
        %v2300 = vld [vmem:[%s770 + $0x398] sm:$0xf]
        %v2301 = vld [vmem:[%s770 + $0x39c] sm:$0xf]
        %v2302 = vld [vmem:[%s770 + $0x3a0] sm:$0xf]
        %v2303 = vld [vmem:[%s770 + $0x3a4] sm:$0xf]
        %v2304 = vld [vmem:[%s770 + $0x3a8] sm:$0xf]
        %v2305 = vld [vmem:[%s770 + $0x3ac] sm:$0xf]
        %v2306 = vld [vmem:[%s770 + $0x3b0] sm:$0xf]
        %v2307 = vld [vmem:[%s770 + $0x3b4] sm:$0xf]
        %v2308 = vld [vmem:[%s770 + $0x3b8] sm:$0xf]
        %v2309 = vld [vmem:[%s770 + $0x3bc] sm:$0xf]
        %v2310 = vld [vmem:[%s770 + $0x3c0] sm:$0xf]
        %v2311 = vld [vmem:[%s770 + $0x3c4] sm:$0xf]
        %v2312 = vld [vmem:[%s770 + $0x3c8] sm:$0xf]
        %v2313 = vld [vmem:[%s770 + $0x3cc] sm:$0xf]
        %v2314 = vld [vmem:[%s770 + $0x3d0] sm:$0xf]
        %v2315 = vld [vmem:[%s770 + $0x3d4] sm:$0xf]
        %v2316 = vld [vmem:[%s770 + $0x3d8] sm:$0xf]
        %v2317 = vld [vmem:[%s770 + $0x3dc] sm:$0xf]
        %v2318 = vld [vmem:[%s770 + $0x3e0] sm:$0xf]
        %v2319 = vld [vmem:[%s770 + $0x3e4] sm:$0xf]
        %v2320 = vld [vmem:[%s770 + $0x3e8] sm:$0xf]
        %v2321 = vld [vmem:[%s770 + $0x3ec] sm:$0xf]
        %v2322 = vld [vmem:[%s770 + $0x3f0] sm:$0xf]
        %v2323 = vld [vmem:[%s770 + $0x3f4] sm:$0xf]
        %v2324 = vld [vmem:[%s770 + $0x3f8] sm:$0xf]
        %v2325 = vld [vmem:[%s770 + $0x3fc] sm:$0xf]
        %v2326 = vld [vmem:[%s773] sm:$0x1]
        %v2328 = vperm.slane %v2326, 0
        %v2586 = vunpack.c.l.b16 %v2070
        %v2587 = vunpack.c.l.b16 %v2071
        %v2588 = vunpack.c.l.b16 %v2072
        %v2589 = vunpack.c.l.b16 %v2073
        %v2590 = vunpack.c.l.b16 %v2074
        %v2591 = vunpack.c.l.b16 %v2075
        %v2592 = vunpack.c.l.b16 %v2076
        %v2593 = vunpack.c.l.b16 %v2077
        %v2594 = vunpack.c.l.b16 %v2078
        %v2595 = vunpack.c.l.b16 %v2079
        %v2596 = vunpack.c.l.b16 %v2080
        %v2597 = vunpack.c.l.b16 %v2081
        %v2598 = vunpack.c.l.b16 %v2082
        %v2599 = vunpack.c.l.b16 %v2083
        %v2600 = vunpack.c.l.b16 %v2084
        %v2601 = vunpack.c.l.b16 %v2085
        %v2602 = vunpack.c.l.b16 %v2086
        %v2603 = vunpack.c.l.b16 %v2087
        %v2604 = vunpack.c.l.b16 %v2088
        %v2605 = vunpack.c.l.b16 %v2089
        %v2606 = vunpack.c.l.b16 %v2090
        %v2607 = vunpack.c.l.b16 %v2091
        %v2608 = vunpack.c.l.b16 %v2092
        %v2609 = vunpack.c.l.b16 %v2093
        %v2610 = vunpack.c.l.b16 %v2094
        %v2611 = vunpack.c.l.b16 %v2095
        %v2612 = vunpack.c.l.b16 %v2096
        %v2613 = vunpack.c.l.b16 %v2097
        %v2614 = vunpack.c.l.b16 %v2098
        %v2615 = vunpack.c.l.b16 %v2099
        %v2616 = vunpack.c.l.b16 %v2100
        %v2617 = vunpack.c.l.b16 %v2101
        %v2618 = vunpack.c.l.b16 %v2102
        %v2619 = vunpack.c.l.b16 %v2103
        %v2620 = vunpack.c.l.b16 %v2104
        %v2621 = vunpack.c.l.b16 %v2105
        %v2622 = vunpack.c.l.b16 %v2106
        %v2623 = vunpack.c.l.b16 %v2107
        %v2624 = vunpack.c.l.b16 %v2108
        %v2625 = vunpack.c.l.b16 %v2109
        %v2626 = vunpack.c.l.b16 %v2110
        %v2627 = vunpack.c.l.b16 %v2111
        %v2628 = vunpack.c.l.b16 %v2112
        %v2629 = vunpack.c.l.b16 %v2113
        %v2630 = vunpack.c.l.b16 %v2114
        %v2631 = vunpack.c.l.b16 %v2115
        %v2632 = vunpack.c.l.b16 %v2116
        %v2633 = vunpack.c.l.b16 %v2117
        %v2634 = vunpack.c.l.b16 %v2118
        %v2635 = vunpack.c.l.b16 %v2119
        %v2636 = vunpack.c.l.b16 %v2120
        %v2637 = vunpack.c.l.b16 %v2121
        %v2638 = vunpack.c.l.b16 %v2122
        %v2639 = vunpack.c.l.b16 %v2123
        %v2640 = vunpack.c.l.b16 %v2124
        %v2641 = vunpack.c.l.b16 %v2125
        %v2642 = vunpack.c.l.b16 %v2126
        %v2643 = vunpack.c.l.b16 %v2127
        %v2644 = vunpack.c.l.b16 %v2128
        %v2645 = vunpack.c.l.b16 %v2129
        %v2646 = vunpack.c.l.b16 %v2130
        %v2647 = vunpack.c.l.b16 %v2131
        %v2648 = vunpack.c.l.b16 %v2132
        %v2649 = vunpack.c.l.b16 %v2133
        %v2650 = vunpack.c.l.b16 %v2134
        %v2651 = vunpack.c.l.b16 %v2135
        %v2652 = vunpack.c.l.b16 %v2136
        %v2653 = vunpack.c.l.b16 %v2137
        %v2654 = vunpack.c.l.b16 %v2138
        %v2655 = vunpack.c.l.b16 %v2139
        %v2656 = vunpack.c.l.b16 %v2140
        %v2657 = vunpack.c.l.b16 %v2141
        %v2658 = vunpack.c.l.b16 %v2142
        %v2659 = vunpack.c.l.b16 %v2143
        %v2660 = vunpack.c.l.b16 %v2144
        %v2661 = vunpack.c.l.b16 %v2145
        %v2662 = vunpack.c.l.b16 %v2146
        %v2663 = vunpack.c.l.b16 %v2147
        %v2664 = vunpack.c.l.b16 %v2148
        %v2665 = vunpack.c.l.b16 %v2149
        %v2666 = vunpack.c.l.b16 %v2150
        %v2667 = vunpack.c.l.b16 %v2151
        %v2668 = vunpack.c.l.b16 %v2152
        %v2669 = vunpack.c.l.b16 %v2153
        %v2670 = vunpack.c.l.b16 %v2154
        %v2671 = vunpack.c.l.b16 %v2155
        %v2672 = vunpack.c.l.b16 %v2156
        %v2673 = vunpack.c.l.b16 %v2157
        %v2674 = vunpack.c.l.b16 %v2158
        %v2675 = vunpack.c.l.b16 %v2159
        %v2676 = vunpack.c.l.b16 %v2160
        %v2677 = vunpack.c.l.b16 %v2161
        %v2678 = vunpack.c.l.b16 %v2162
        %v2679 = vunpack.c.l.b16 %v2163
        %v2680 = vunpack.c.l.b16 %v2164
        %v2681 = vunpack.c.l.b16 %v2165
        %v2682 = vunpack.c.l.b16 %v2166
        %v2683 = vunpack.c.l.b16 %v2167
        %v2684 = vunpack.c.l.b16 %v2168
        %v2685 = vunpack.c.l.b16 %v2169
        %v2686 = vunpack.c.l.b16 %v2170
        %v2687 = vunpack.c.l.b16 %v2171
        %v2688 = vunpack.c.l.b16 %v2172
        %v2689 = vunpack.c.l.b16 %v2173
        %v2690 = vunpack.c.l.b16 %v2174
        %v2691 = vunpack.c.l.b16 %v2175
        %v2692 = vunpack.c.l.b16 %v2176
        %v2693 = vunpack.c.l.b16 %v2177
        %v2694 = vunpack.c.l.b16 %v2178
        %v2695 = vunpack.c.l.b16 %v2179
        %v2696 = vunpack.c.l.b16 %v2180
        %v2697 = vunpack.c.l.b16 %v2181
        %v2698 = vunpack.c.l.b16 %v2182
        %v2699 = vunpack.c.l.b16 %v2183
        %v2700 = vunpack.c.l.b16 %v2184
        %v2701 = vunpack.c.l.b16 %v2185
        %v2702 = vunpack.c.l.b16 %v2186
        %v2703 = vunpack.c.l.b16 %v2187
        %v2704 = vunpack.c.l.b16 %v2188
        %v2705 = vunpack.c.l.b16 %v2189
        %v2706 = vunpack.c.l.b16 %v2190
        %v2707 = vunpack.c.l.b16 %v2191
        %v2708 = vunpack.c.l.b16 %v2192
        %v2709 = vunpack.c.l.b16 %v2193
        %v2710 = vunpack.c.l.b16 %v2194
        %v2711 = vunpack.c.l.b16 %v2195
        %v2712 = vunpack.c.l.b16 %v2196
        %v2713 = vunpack.c.l.b16 %v2197
        %v2714 = vunpack.c.l.b16 %v2198
        %v2715 = vunpack.c.l.b16 %v2199
        %v2716 = vunpack.c.l.b16 %v2200
        %v2717 = vunpack.c.l.b16 %v2201
        %v2718 = vunpack.c.l.b16 %v2202
        %v2719 = vunpack.c.l.b16 %v2203
        %v2720 = vunpack.c.l.b16 %v2204
        %v2721 = vunpack.c.l.b16 %v2205
        %v2722 = vunpack.c.l.b16 %v2206
        %v2723 = vunpack.c.l.b16 %v2207
        %v2724 = vunpack.c.l.b16 %v2208
        %v2725 = vunpack.c.l.b16 %v2209
        %v2726 = vunpack.c.l.b16 %v2210
        %v2727 = vunpack.c.l.b16 %v2211
        %v2728 = vunpack.c.l.b16 %v2212
        %v2729 = vunpack.c.l.b16 %v2213
        %v2730 = vunpack.c.l.b16 %v2214
        %v2731 = vunpack.c.l.b16 %v2215
        %v2732 = vunpack.c.l.b16 %v2216
        %v2733 = vunpack.c.l.b16 %v2217
        %v2734 = vunpack.c.l.b16 %v2218
        %v2735 = vunpack.c.l.b16 %v2219
        %v2736 = vunpack.c.l.b16 %v2220
        %v2737 = vunpack.c.l.b16 %v2221
        %v2738 = vunpack.c.l.b16 %v2222
        %v2739 = vunpack.c.l.b16 %v2223
        %v2740 = vunpack.c.l.b16 %v2224
        %v2741 = vunpack.c.l.b16 %v2225
        %v2742 = vunpack.c.l.b16 %v2226
        %v2743 = vunpack.c.l.b16 %v2227
        %v2744 = vunpack.c.l.b16 %v2228
        %v2745 = vunpack.c.l.b16 %v2229
        %v2746 = vunpack.c.l.b16 %v2230
        %v2747 = vunpack.c.l.b16 %v2231
        %v2748 = vunpack.c.l.b16 %v2232
        %v2749 = vunpack.c.l.b16 %v2233
        %v2750 = vunpack.c.l.b16 %v2234
        %v2751 = vunpack.c.l.b16 %v2235
        %v2752 = vunpack.c.l.b16 %v2236
        %v2753 = vunpack.c.l.b16 %v2237
        %v2754 = vunpack.c.l.b16 %v2238
        %v2755 = vunpack.c.l.b16 %v2239
        %v2756 = vunpack.c.l.b16 %v2240
        %v2757 = vunpack.c.l.b16 %v2241
        %v2758 = vunpack.c.l.b16 %v2242
        %v2759 = vunpack.c.l.b16 %v2243
        %v2760 = vunpack.c.l.b16 %v2244
        %v2761 = vunpack.c.l.b16 %v2245
        %v2762 = vunpack.c.l.b16 %v2246
        %v2763 = vunpack.c.l.b16 %v2247
        %v2764 = vunpack.c.l.b16 %v2248
        %v2765 = vunpack.c.l.b16 %v2249
        %v2766 = vunpack.c.l.b16 %v2250
        %v2767 = vunpack.c.l.b16 %v2251
        %v2768 = vunpack.c.l.b16 %v2252
        %v2769 = vunpack.c.l.b16 %v2253
        %v2770 = vunpack.c.l.b16 %v2254
        %v2771 = vunpack.c.l.b16 %v2255
        %v2772 = vunpack.c.l.b16 %v2256
        %v2773 = vunpack.c.l.b16 %v2257
        %v2774 = vunpack.c.l.b16 %v2258
        %v2775 = vunpack.c.l.b16 %v2259
        %v2776 = vunpack.c.l.b16 %v2260
        %v2777 = vunpack.c.l.b16 %v2261
        %v2778 = vunpack.c.l.b16 %v2262
        %v2779 = vunpack.c.l.b16 %v2263
        %v2780 = vunpack.c.l.b16 %v2264
        %v2781 = vunpack.c.l.b16 %v2265
        %v2782 = vunpack.c.l.b16 %v2266
        %v2783 = vunpack.c.l.b16 %v2267
        %v2784 = vunpack.c.l.b16 %v2268
        %v2785 = vunpack.c.l.b16 %v2269
        %v2786 = vunpack.c.l.b16 %v2270
        %v2787 = vunpack.c.l.b16 %v2271
        %v2788 = vunpack.c.l.b16 %v2272
        %v2789 = vunpack.c.l.b16 %v2273
        %v2790 = vunpack.c.l.b16 %v2274
        %v2791 = vunpack.c.l.b16 %v2275
        %v2792 = vunpack.c.l.b16 %v2276
        %v2793 = vunpack.c.l.b16 %v2277
        %v2794 = vunpack.c.l.b16 %v2278
        %v2795 = vunpack.c.l.b16 %v2279
        %v2796 = vunpack.c.l.b16 %v2280
        %v2797 = vunpack.c.l.b16 %v2281
        %v2798 = vunpack.c.l.b16 %v2282
        %v2799 = vunpack.c.l.b16 %v2283
        %v2800 = vunpack.c.l.b16 %v2284
        %v2801 = vunpack.c.l.b16 %v2285
        %v2802 = vunpack.c.l.b16 %v2286
        %v2803 = vunpack.c.l.b16 %v2287
        %v2804 = vunpack.c.l.b16 %v2288
        %v2805 = vunpack.c.l.b16 %v2289
        %v2806 = vunpack.c.l.b16 %v2290
        %v2807 = vunpack.c.l.b16 %v2291
        %v2808 = vunpack.c.l.b16 %v2292
        %v2809 = vunpack.c.l.b16 %v2293
        %v2810 = vunpack.c.l.b16 %v2294
        %v2811 = vunpack.c.l.b16 %v2295
        %v2812 = vunpack.c.l.b16 %v2296
        %v2813 = vunpack.c.l.b16 %v2297
        %v2814 = vunpack.c.l.b16 %v2298
        %v2815 = vunpack.c.l.b16 %v2299
        %v2816 = vunpack.c.l.b16 %v2300
        %v2817 = vunpack.c.l.b16 %v2301
        %v2818 = vunpack.c.l.b16 %v2302
        %v2819 = vunpack.c.l.b16 %v2303
        %v2820 = vunpack.c.l.b16 %v2304
        %v2821 = vunpack.c.l.b16 %v2305
        %v2822 = vunpack.c.l.b16 %v2306
        %v2823 = vunpack.c.l.b16 %v2307
        %v2824 = vunpack.c.l.b16 %v2308
        %v2825 = vunpack.c.l.b16 %v2309
        %v2826 = vunpack.c.l.b16 %v2310
        %v2827 = vunpack.c.l.b16 %v2311
        %v2828 = vunpack.c.l.b16 %v2312
        %v2829 = vunpack.c.l.b16 %v2313
        %v2830 = vunpack.c.l.b16 %v2314
        %v2831 = vunpack.c.l.b16 %v2315
        %v2832 = vunpack.c.l.b16 %v2316
        %v2833 = vunpack.c.l.b16 %v2317
        %v2834 = vunpack.c.l.b16 %v2318
        %v2835 = vunpack.c.l.b16 %v2319
        %v2836 = vunpack.c.l.b16 %v2320
        %v2837 = vunpack.c.l.b16 %v2321
        %v2838 = vunpack.c.l.b16 %v2322
        %v2839 = vunpack.c.l.b16 %v2323
        %v2840 = vunpack.c.l.b16 %v2324
        %v2841 = vunpack.c.l.b16 %v2325
        %v2842 = vpack.c.b16 %v2587, %v2586
        %v2843 = vpack.c.b16 %v2589, %v2588
        %v2844 = vpack.c.b16 %v2591, %v2590
        %v2845 = vpack.c.b16 %v2593, %v2592
        %v2846 = vpack.c.b16 %v2595, %v2594
        %v2847 = vpack.c.b16 %v2597, %v2596
        %v2848 = vpack.c.b16 %v2599, %v2598
        %v2849 = vpack.c.b16 %v2601, %v2600
        %v2850 = vpack.c.b16 %v2603, %v2602
        %v2851 = vpack.c.b16 %v2605, %v2604
        %v2852 = vpack.c.b16 %v2607, %v2606
        %v2853 = vpack.c.b16 %v2609, %v2608
        %v2854 = vpack.c.b16 %v2611, %v2610
        %v2855 = vpack.c.b16 %v2613, %v2612
        %v2856 = vpack.c.b16 %v2615, %v2614
        %v2857 = vpack.c.b16 %v2617, %v2616
        %v2858 = vpack.c.b16 %v2619, %v2618
        %v2859 = vpack.c.b16 %v2621, %v2620
        %v2860 = vpack.c.b16 %v2623, %v2622
        %v2861 = vpack.c.b16 %v2625, %v2624
        %v2862 = vpack.c.b16 %v2627, %v2626
        %v2863 = vpack.c.b16 %v2629, %v2628
        %v2864 = vpack.c.b16 %v2631, %v2630
        %v2865 = vpack.c.b16 %v2633, %v2632
        %v2866 = vpack.c.b16 %v2635, %v2634
        %v2867 = vpack.c.b16 %v2637, %v2636
        %v2868 = vpack.c.b16 %v2639, %v2638
        %v2869 = vpack.c.b16 %v2641, %v2640
        %v2870 = vpack.c.b16 %v2643, %v2642
        %v2871 = vpack.c.b16 %v2645, %v2644
        %v2872 = vpack.c.b16 %v2647, %v2646
        %v2873 = vpack.c.b16 %v2649, %v2648
        %v2874 = vpack.c.b16 %v2651, %v2650
        %v2875 = vpack.c.b16 %v2653, %v2652
        %v2876 = vpack.c.b16 %v2655, %v2654
        %v2877 = vpack.c.b16 %v2657, %v2656
        %v2878 = vpack.c.b16 %v2659, %v2658
        %v2879 = vpack.c.b16 %v2661, %v2660
        %v2880 = vpack.c.b16 %v2663, %v2662
        %v2881 = vpack.c.b16 %v2665, %v2664
        %v2882 = vpack.c.b16 %v2667, %v2666
        %v2883 = vpack.c.b16 %v2669, %v2668
        %v2884 = vpack.c.b16 %v2671, %v2670
        %v2885 = vpack.c.b16 %v2673, %v2672
        %v2886 = vpack.c.b16 %v2675, %v2674
        %v2887 = vpack.c.b16 %v2677, %v2676
        %v2888 = vpack.c.b16 %v2679, %v2678
        %v2889 = vpack.c.b16 %v2681, %v2680
        %v2890 = vpack.c.b16 %v2683, %v2682
        %v2891 = vpack.c.b16 %v2685, %v2684
        %v2892 = vpack.c.b16 %v2687, %v2686
        %v2893 = vpack.c.b16 %v2689, %v2688
        %v2894 = vpack.c.b16 %v2691, %v2690
        %v2895 = vpack.c.b16 %v2693, %v2692
        %v2896 = vpack.c.b16 %v2695, %v2694
        %v2897 = vpack.c.b16 %v2697, %v2696
        %v2898 = vpack.c.b16 %v2699, %v2698
        %v2899 = vpack.c.b16 %v2701, %v2700
        %v2900 = vpack.c.b16 %v2703, %v2702
        %v2901 = vpack.c.b16 %v2705, %v2704
        %v2902 = vpack.c.b16 %v2707, %v2706
        %v2903 = vpack.c.b16 %v2709, %v2708
        %v2904 = vpack.c.b16 %v2711, %v2710
        %v2905 = vpack.c.b16 %v2713, %v2712
        %v2906 = vpack.c.b16 %v2715, %v2714
        %v2907 = vpack.c.b16 %v2717, %v2716
        %v2908 = vpack.c.b16 %v2719, %v2718
        %v2909 = vpack.c.b16 %v2721, %v2720
        %v2910 = vpack.c.b16 %v2723, %v2722
        %v2911 = vpack.c.b16 %v2725, %v2724
        %v2912 = vpack.c.b16 %v2727, %v2726
        %v2913 = vpack.c.b16 %v2729, %v2728
        %v2914 = vpack.c.b16 %v2731, %v2730
        %v2915 = vpack.c.b16 %v2733, %v2732
        %v2916 = vpack.c.b16 %v2735, %v2734
        %v2917 = vpack.c.b16 %v2737, %v2736
        %v2918 = vpack.c.b16 %v2739, %v2738
        %v2919 = vpack.c.b16 %v2741, %v2740
        %v2920 = vpack.c.b16 %v2743, %v2742
        %v2921 = vpack.c.b16 %v2745, %v2744
        %v2922 = vpack.c.b16 %v2747, %v2746
        %v2923 = vpack.c.b16 %v2749, %v2748
        %v2924 = vpack.c.b16 %v2751, %v2750
        %v2925 = vpack.c.b16 %v2753, %v2752
        %v2926 = vpack.c.b16 %v2755, %v2754
        %v2927 = vpack.c.b16 %v2757, %v2756
        %v2928 = vpack.c.b16 %v2759, %v2758
        %v2929 = vpack.c.b16 %v2761, %v2760
        %v2930 = vpack.c.b16 %v2763, %v2762
        %v2931 = vpack.c.b16 %v2765, %v2764
        %v2932 = vpack.c.b16 %v2767, %v2766
        %v2933 = vpack.c.b16 %v2769, %v2768
        %v2934 = vpack.c.b16 %v2771, %v2770
        %v2935 = vpack.c.b16 %v2773, %v2772
        %v2936 = vpack.c.b16 %v2775, %v2774
        %v2937 = vpack.c.b16 %v2777, %v2776
        %v2938 = vpack.c.b16 %v2779, %v2778
        %v2939 = vpack.c.b16 %v2781, %v2780
        %v2940 = vpack.c.b16 %v2783, %v2782
        %v2941 = vpack.c.b16 %v2785, %v2784
        %v2942 = vpack.c.b16 %v2787, %v2786
        %v2943 = vpack.c.b16 %v2789, %v2788
        %v2944 = vpack.c.b16 %v2791, %v2790
        %v2945 = vpack.c.b16 %v2793, %v2792
        %v2946 = vpack.c.b16 %v2795, %v2794
        %v2947 = vpack.c.b16 %v2797, %v2796
        %v2948 = vpack.c.b16 %v2799, %v2798
        %v2949 = vpack.c.b16 %v2801, %v2800
        %v2950 = vpack.c.b16 %v2803, %v2802
        %v2951 = vpack.c.b16 %v2805, %v2804
        %v2952 = vpack.c.b16 %v2807, %v2806
        %v2953 = vpack.c.b16 %v2809, %v2808
        %v2954 = vpack.c.b16 %v2811, %v2810
        %v2955 = vpack.c.b16 %v2813, %v2812
        %v2956 = vpack.c.b16 %v2815, %v2814
        %v2957 = vpack.c.b16 %v2817, %v2816
        %v2958 = vpack.c.b16 %v2819, %v2818
        %v2959 = vpack.c.b16 %v2821, %v2820
        %v2960 = vpack.c.b16 %v2823, %v2822
        %v2961 = vpack.c.b16 %v2825, %v2824
        %v2962 = vpack.c.b16 %v2827, %v2826
        %v2963 = vpack.c.b16 %v2829, %v2828
        %v2964 = vpack.c.b16 %v2831, %v2830
        %v2965 = vpack.c.b16 %v2833, %v2832
        %v2966 = vpack.c.b16 %v2835, %v2834
        %v2967 = vpack.c.b16 %v2837, %v2836
        %v2968 = vpack.c.b16 %v2839, %v2838
        %v2969 = vpack.c.b16 %v2841, %v2840
        %3098 = vmatpush.bf16.msra.mxu0 %v2849
        %3099 = vmatpush.bf16.msra.mxu0 %v2848
        %3100 = vmatpush.bf16.msra.mxu0 %v2847
        %3101 = vmatpush.bf16.msra.mxu0 %v2846
        %3102 = vmatpush.bf16.msra.mxu0 %v2845
        %3103 = vmatpush.bf16.msra.mxu0 %v2844
        %3104 = vmatpush.bf16.msra.mxu0 %v2843
        %3105 = vmatpush.bf16.msra.mxu0 %v2842
        %3106 = vmatmul.bf16.gmra.mxu0 %v2054
        %v3107 = vpop.f32.mrf.mxu0
        %v3108 = vadd.f32 %v2328, %v3107
        %v3109 = vpop.f32.mrf.mxu0
        %3110 = vdwg.mxu0
        %3111 = vmatpush.bf16.msra.mxu0 %v2857
        %3112 = vmatpush.bf16.msra.mxu0 %v2856
        %3113 = vmatpush.bf16.msra.mxu0 %v2855
        %3114 = vmatpush.bf16.msra.mxu0 %v2854
        %3115 = vmatpush.bf16.msra.mxu0 %v2853
        %3116 = vmatpush.bf16.msra.mxu0 %v2852
        %3117 = vmatpush.bf16.msra.mxu0 %v2851
        %3118 = vmatpush.bf16.msra.mxu0 %v2850
        %3119 = vmatmul.bf16.gmra.mxu0 %v2055
        %v3120 = vpop.f32.mrf.mxu0
        %v3121 = vadd.f32 %v3108, %v3120
        %v3122 = vpop.f32.mrf.mxu0
        %3123 = vdwg.mxu0
        %3124 = vmatpush.bf16.msra.mxu0 %v2865
        %3125 = vmatpush.bf16.msra.mxu0 %v2864
        %3126 = vmatpush.bf16.msra.mxu0 %v2863
        %3127 = vmatpush.bf16.msra.mxu0 %v2862
        %3128 = vmatpush.bf16.msra.mxu0 %v2861
        %3129 = vmatpush.bf16.msra.mxu0 %v2860
        %3130 = vmatpush.bf16.msra.mxu0 %v2859
        %3131 = vmatpush.bf16.msra.mxu0 %v2858
        %3132 = vmatmul.bf16.gmra.mxu0 %v2056
        %v3133 = vpop.f32.mrf.mxu0
        %v3134 = vadd.f32 %v3121, %v3133
        %v3135 = vpop.f32.mrf.mxu0
        %3136 = vdwg.mxu0
        %3137 = vmatpush.bf16.msra.mxu0 %v2873
        %3138 = vmatpush.bf16.msra.mxu0 %v2872
        %3139 = vmatpush.bf16.msra.mxu0 %v2871
        %3140 = vmatpush.bf16.msra.mxu0 %v2870
        %3141 = vmatpush.bf16.msra.mxu0 %v2869
        %3142 = vmatpush.bf16.msra.mxu0 %v2868
        %3143 = vmatpush.bf16.msra.mxu0 %v2867
        %3144 = vmatpush.bf16.msra.mxu0 %v2866
        %3145 = vmatmul.bf16.gmra.mxu0 %v2057
        %v3146 = vpop.f32.mrf.mxu0
        %v3147 = vadd.f32 %v3134, %v3146
        %v3148 = vpop.f32.mrf.mxu0
        %3149 = vdwg.mxu0
        %3150 = vmatpush.bf16.msra.mxu0 %v2881
        %3151 = vmatpush.bf16.msra.mxu0 %v2880
        %3152 = vmatpush.bf16.msra.mxu0 %v2879
        %3153 = vmatpush.bf16.msra.mxu0 %v2878
        %3154 = vmatpush.bf16.msra.mxu0 %v2877
        %3155 = vmatpush.bf16.msra.mxu0 %v2876
        %3156 = vmatpush.bf16.msra.mxu0 %v2875
        %3157 = vmatpush.bf16.msra.mxu0 %v2874
        %3158 = vmatmul.bf16.gmra.mxu0 %v2058
        %v3159 = vpop.f32.mrf.mxu0
        %v3160 = vadd.f32 %v3147, %v3159
        %v3161 = vpop.f32.mrf.mxu0
        %3162 = vdwg.mxu0
        %3163 = vmatpush.bf16.msra.mxu0 %v2889
        %3164 = vmatpush.bf16.msra.mxu0 %v2888
        %3165 = vmatpush.bf16.msra.mxu0 %v2887
        %3166 = vmatpush.bf16.msra.mxu0 %v2886
        %3167 = vmatpush.bf16.msra.mxu0 %v2885
        %3168 = vmatpush.bf16.msra.mxu0 %v2884
        %3169 = vmatpush.bf16.msra.mxu0 %v2883
        %3170 = vmatpush.bf16.msra.mxu0 %v2882
        %3171 = vmatmul.bf16.gmra.mxu0 %v2059
        %v3172 = vpop.f32.mrf.mxu0
        %v3173 = vadd.f32 %v3160, %v3172
        %v3174 = vpop.f32.mrf.mxu0
        %3175 = vdwg.mxu0
        %3176 = vmatpush.bf16.msra.mxu0 %v2897
        %3177 = vmatpush.bf16.msra.mxu0 %v2896
        %3178 = vmatpush.bf16.msra.mxu0 %v2895
        %3179 = vmatpush.bf16.msra.mxu0 %v2894
        %3180 = vmatpush.bf16.msra.mxu0 %v2893
        %3181 = vmatpush.bf16.msra.mxu0 %v2892
        %3182 = vmatpush.bf16.msra.mxu0 %v2891
        %3183 = vmatpush.bf16.msra.mxu0 %v2890
        %3184 = vmatmul.bf16.gmra.mxu0 %v2060
        %v3185 = vpop.f32.mrf.mxu0
        %v3186 = vadd.f32 %v3173, %v3185
        %v3187 = vpop.f32.mrf.mxu0
        %3188 = vdwg.mxu0
        %3189 = vmatpush.bf16.msra.mxu0 %v2905
        %3190 = vmatpush.bf16.msra.mxu0 %v2904
        %3191 = vmatpush.bf16.msra.mxu0 %v2903
        %3192 = vmatpush.bf16.msra.mxu0 %v2902
        %3193 = vmatpush.bf16.msra.mxu0 %v2901
        %3194 = vmatpush.bf16.msra.mxu0 %v2900
        %3195 = vmatpush.bf16.msra.mxu0 %v2899
        %3196 = vmatpush.bf16.msra.mxu0 %v2898
        %3197 = vmatmul.bf16.gmra.mxu0 %v2061
        %v3198 = vpop.f32.mrf.mxu0
        %v3199 = vadd.f32 %v3186, %v3198
        %v3200 = vpop.f32.mrf.mxu0
        %3201 = vdwg.mxu0
        %3202 = vmatpush.bf16.msra.mxu0 %v2913
        %3203 = vmatpush.bf16.msra.mxu0 %v2912
        %3204 = vmatpush.bf16.msra.mxu0 %v2911
        %3205 = vmatpush.bf16.msra.mxu0 %v2910
        %3206 = vmatpush.bf16.msra.mxu0 %v2909
        %3207 = vmatpush.bf16.msra.mxu0 %v2908
        %3208 = vmatpush.bf16.msra.mxu0 %v2907
        %3209 = vmatpush.bf16.msra.mxu0 %v2906
        %3210 = vmatmul.bf16.gmra.mxu0 %v2062
        %v3211 = vpop.f32.mrf.mxu0
        %v3212 = vadd.f32 %v3199, %v3211
        %v3213 = vpop.f32.mrf.mxu0
        %3214 = vdwg.mxu0
        %3215 = vmatpush.bf16.msra.mxu0 %v2921
        %3216 = vmatpush.bf16.msra.mxu0 %v2920
        %3217 = vmatpush.bf16.msra.mxu0 %v2919
        %3218 = vmatpush.bf16.msra.mxu0 %v2918
        %3219 = vmatpush.bf16.msra.mxu0 %v2917
        %3220 = vmatpush.bf16.msra.mxu0 %v2916
        %3221 = vmatpush.bf16.msra.mxu0 %v2915
        %3222 = vmatpush.bf16.msra.mxu0 %v2914
        %3223 = vmatmul.bf16.gmra.mxu0 %v2063
        %v3224 = vpop.f32.mrf.mxu0
        %v3225 = vadd.f32 %v3212, %v3224
        %v3226 = vpop.f32.mrf.mxu0
        %3227 = vdwg.mxu0
        %3228 = vmatpush.bf16.msra.mxu0 %v2929
        %3229 = vmatpush.bf16.msra.mxu0 %v2928
        %3230 = vmatpush.bf16.msra.mxu0 %v2927
        %3231 = vmatpush.bf16.msra.mxu0 %v2926
        %3232 = vmatpush.bf16.msra.mxu0 %v2925
        %3233 = vmatpush.bf16.msra.mxu0 %v2924
        %3234 = vmatpush.bf16.msra.mxu0 %v2923
        %3235 = vmatpush.bf16.msra.mxu0 %v2922
        %3236 = vmatmul.bf16.gmra.mxu0 %v2064
        %v3237 = vpop.f32.mrf.mxu0
        %v3238 = vadd.f32 %v3225, %v3237
        %v3239 = vpop.f32.mrf.mxu0
        %3240 = vdwg.mxu0
        %3241 = vmatpush.bf16.msra.mxu0 %v2937
        %3242 = vmatpush.bf16.msra.mxu0 %v2936
        %3243 = vmatpush.bf16.msra.mxu0 %v2935
        %3244 = vmatpush.bf16.msra.mxu0 %v2934
        %3245 = vmatpush.bf16.msra.mxu0 %v2933
        %3246 = vmatpush.bf16.msra.mxu0 %v2932
        %3247 = vmatpush.bf16.msra.mxu0 %v2931
        %3248 = vmatpush.bf16.msra.mxu0 %v2930
        %3249 = vmatmul.bf16.gmra.mxu0 %v2065
        %v3250 = vpop.f32.mrf.mxu0
        %v3251 = vadd.f32 %v3238, %v3250
        %v3252 = vpop.f32.mrf.mxu0
        %3253 = vdwg.mxu0
        %3254 = vmatpush.bf16.msra.mxu0 %v2945
        %3255 = vmatpush.bf16.msra.mxu0 %v2944
        %3256 = vmatpush.bf16.msra.mxu0 %v2943
        %3257 = vmatpush.bf16.msra.mxu0 %v2942
        %3258 = vmatpush.bf16.msra.mxu0 %v2941
        %3259 = vmatpush.bf16.msra.mxu0 %v2940
        %3260 = vmatpush.bf16.msra.mxu0 %v2939
        %3261 = vmatpush.bf16.msra.mxu0 %v2938
        %3262 = vmatmul.bf16.gmra.mxu0 %v2066
        %v3263 = vpop.f32.mrf.mxu0
        %v3264 = vadd.f32 %v3251, %v3263
        %v3265 = vpop.f32.mrf.mxu0
        %3266 = vdwg.mxu0
        %3267 = vmatpush.bf16.msra.mxu0 %v2953
        %3268 = vmatpush.bf16.msra.mxu0 %v2952
        %3269 = vmatpush.bf16.msra.mxu0 %v2951
        %3270 = vmatpush.bf16.msra.mxu0 %v2950
        %3271 = vmatpush.bf16.msra.mxu0 %v2949
        %3272 = vmatpush.bf16.msra.mxu0 %v2948
        %3273 = vmatpush.bf16.msra.mxu0 %v2947
        %3274 = vmatpush.bf16.msra.mxu0 %v2946
        %3275 = vmatmul.bf16.gmra.mxu0 %v2067
        %v3276 = vpop.f32.mrf.mxu0
        %v3277 = vadd.f32 %v3264, %v3276
        %v3278 = vpop.f32.mrf.mxu0
        %3279 = vdwg.mxu0
        %3280 = vmatpush.bf16.msra.mxu0 %v2961
        %3281 = vmatpush.bf16.msra.mxu0 %v2960
        %3282 = vmatpush.bf16.msra.mxu0 %v2959
        %3283 = vmatpush.bf16.msra.mxu0 %v2958
        %3284 = vmatpush.bf16.msra.mxu0 %v2957
        %3285 = vmatpush.bf16.msra.mxu0 %v2956
        %3286 = vmatpush.bf16.msra.mxu0 %v2955
        %3287 = vmatpush.bf16.msra.mxu0 %v2954
        %3288 = vmatmul.bf16.gmra.mxu0 %v2068
        %v3289 = vpop.f32.mrf.mxu0
        %v3290 = vadd.f32 %v3277, %v3289
        %v3291 = vpop.f32.mrf.mxu0
        %3292 = vdwg.mxu0
        %3293 = vmatpush.bf16.msra.mxu0 %v2969
        %3294 = vmatpush.bf16.msra.mxu0 %v2968
        %3295 = vmatpush.bf16.msra.mxu0 %v2967
        %3296 = vmatpush.bf16.msra.mxu0 %v2966
        %3297 = vmatpush.bf16.msra.mxu0 %v2965
        %3298 = vmatpush.bf16.msra.mxu0 %v2964
        %3299 = vmatpush.bf16.msra.mxu0 %v2963
        %3300 = vmatpush.bf16.msra.mxu0 %v2962
        %3301 = vmatmul.bf16.gmra.mxu0 %v2069
        %v3302 = vpop.f32.mrf.mxu0
        %v3303 = vadd.f32 %v3290, %v3302
        %v3304 = vpop.f32.mrf.mxu0
        %3305 = vdwg.mxu0
        %v3306 = vadd.f32 %v1597, %v3303
        %v3307 = vld [vmem:[%s776] sm:$0x1]
        %v3308 = vld [vmem:[%s779] sm:$0x1]
        %v3309 = vsel %vm933, %v3306, 0.0
        %3310 = vadd.xlane.f32.xlu0 %v3309
        %v3311 = vpop.xlane.xlu0 %3310
        %v3312 = vmul.f32 %v3306, %v3306
        %v3313 = vsel %vm933, %v3312, 0.0
        %3314 = vadd.xlane.f32.xlu0 %v3313
        %v3315 = vpop.xlane.xlu0 %3314
        %v3316 = vmul.f32 %v3311, 0.03125
        %v3317 = vmul.f32 %v3315, 0.03125
        %v3318 = vmul.f32 %v3316, %v3316
        %v3319 = vsub.f32 %v3317, %v3318
        %v3320 = vsub.f32 %v3306, %v3316
        %v3321 = vadd.f32 %v3319, 1e-05
        %v3322 = vrsqrt.pop %v3321
        %v3323 = vmul.f32 %v3322, %v3321
        %v3324 = vmul.f32 %v3323, %v3322
        %v3325 = vmul.f32 0.5, %v3324
        %v3326 = vsub.f32 1.5, %v3325
        %v3327 = vmul.f32 %v3322, %v3326
        %vm3328 = vweird.f32 %v3321
        %vm3329 = vweird.f32 %v3322
        %vm3330 = vmor %vm3328, %vm3329
        %v3331 = vsel %vm3330, %v3322, %v3327
        %v3332 = vmul.f32 %v3320, %v3331
        %v3334 = vperm.slane %v3307, 0
        %v3336 = vmul.f32 %v3332, %v3334
        %v3338 = vperm.slane %v3308, 0
        %v3340 = vadd.f32 %v3336, %v3338
        %3341 = vst.msk [vmem:[#allocation2] sm:$0xff] %vm933, %v3340
        %p3342 = scmp.eq.s32.totalorder %s37, 1
        // Predicated region
        $region97: #{tpu_custom_call.1} parent=91 // pred_check
          %p3343 = pneg %p3342
        $region98: #{tpu_custom_call.1} parent=91 // pred_check_branch
          %3345 = sbr.rel (%p3343) target = $region100
        $region99: #{tpu_custom_call.1} parent=91 // pred_region
          %v3346 = vld [vmem:[%s16] sm:$0xff]
          %v3347 = vld [vmem:[%s16 + $0x8] sm:$0xff]
          %v3348 = vld [vmem:[%s16 + $0x10] sm:$0xff]
          %v3349 = vld [vmem:[%s16 + $0x18] sm:$0xff]
          %v3350 = vld [vmem:[%s17] sm:$0x1]
          %v3352 = vrot.slane %v3340, 7
          %v3353 = vsel %vm933, %v3352, 0
          %3355 = vmatpush.msra.mxu0 0.0
          %3356 = vmatpush.msra.mxu0 0.0
          %3357 = vmatpush.msra.mxu0 0.0
          %3358 = vmatpush.msra.mxu0 0.0
          %3359 = vmatpush.msra.mxu0 0.0
          %3360 = vmatpush.msra.mxu0 0.0
          %3361 = vmatpush.msra.mxu0 0.0
          %3362 = vmatpush.msra.mxu0 0.0
          %3363 = vmatpush.msra.mxu0 0.0
          %3364 = vmatpush.msra.mxu0 0.0
          %3365 = vmatpush.msra.mxu0 0.0
          %3366 = vmatpush.msra.mxu0 0.0
          %3367 = vmatpush.msra.mxu0 %v3349
          %3368 = vmatpush.msra.mxu0 %v3348
          %3369 = vmatpush.msra.mxu0 %v3347
          %3370 = vmatpush.msra.mxu0 %v3346
          %3371 = vmatmul.f32.gmra.mxu0 %v3353
          %v3372 = vpop.f32.mrf.mxu0
          %v3373 = vadd.f32 %v3350, %v3372
          %3374 = vdwg.mxu0
          %vm3375 = vcmask 24576
          %3376 = vst.msk [vmem:[%s729] sm:$0x1] %vm3375, %v3373
        $region100: #{tpu_custom_call.1} parent=91 // pred_fallthru
          _
        %s3377 = sand.u32 %s495, 1
        %s3378 = scalar_lea.sflag [#allocation4], %s3377
        %s3379 = sand.u32 %s495, 1
        %s3380 = scalar_lea.vmem [#allocation3], %s3379
        // Predicated region
        $region101: #{tpu_custom_call.1} parent=91 // pred_check
          %p3381 = pneg %p505
        $region102: #{tpu_custom_call.1} parent=91 // pred_check_branch
          %3383 = sbr.rel (%p3381) target = $region104
        $region103: #{tpu_custom_call.1} parent=91 // pred_region
          %3385 = vsyncadd %s3378, 0
          %s3386 = scalar_lea.hbm %s18, %s36
          %s3388 = sshll.u32 %s3380, 4
          %s3389 = int_to_ptr.vmem [resolvable:$true] %s3388
          %s3390 = sshll.u32 %s3386, 4
          %s3391 = int_to_ptr.hbm [resolvable:$true] %s3390
          %3393 = dma.vmem_to_hbm [thread:$0]  %s3389, 16, %s3391, %s3378
        $region104: #{tpu_custom_call.1} parent=91 // pred_fallthru
          _
      $region92: #{tpu_custom_call.1} parent=5 // pred_fallthru
        _
      %p3394 = scmp.le.s32.totalorder 2, %s27
      // Predicated region
      $region105: #{tpu_custom_call.1} parent=5 // pred_check
        %p3395 = pneg %p3394
      $region106: #{tpu_custom_call.1} parent=5 // pred_check_branch
        %3397 = sbr.rel (%p3395) target = $region108
      $region107: #{tpu_custom_call.1} parent=5 // pred_region
        %s3398 = ssub.s32 %s27, 2
        // Predicated region
        $region109: #{tpu_custom_call.1} parent=107 // pred_check
          %p3399 = pneg %p511
        $region110: #{tpu_custom_call.1} parent=107 // pred_check_branch
          %3401 = sbr.rel (%p3399) target = $region112
        $region111: #{tpu_custom_call.1} parent=107 // pred_region
          %s3402 = sand.u32 %s496, 1
          %s3403 = scalar_lea.sflag [#allocation4], %s3402
          %s3404 = sand.u32 %s496, 1
          %s3405 = scalar_lea.vmem [#allocation3], %s3404
          %3407 = dma.done %s3403, 16
        $region112: #{tpu_custom_call.1} parent=107 // pred_fallthru
          _
      $region108: #{tpu_custom_call.1} parent=5 // pred_fallthru
        _
    $region6: #{tpu_custom_call.1} parent=1 // loop_footer
      %s31 = sadd.s32 1, %s27
    $region7: #{tpu_custom_call.1} parent=1 // loop_footer_branch
      %26 = sbr.rel target = $region3
    $region8: #{tpu_custom_call.1} parent=1 // loop_exit
      _
    %3408 = vsyncpa [#allocation4], 1
    %s3409 = scalar_lea.sflag [#allocation4], 1
    %3410 = vsyncpa %s3409, 1

</llo_original>
